<compile_context>
chip_gen: v7x
topology: tpu7x:2x2x1
jax: 0.10.0
libtpu: 0.0.40
codegen_flags: <defaults>
</compile_context>

<pallas_src>
import functools

import jax
import jax.numpy as jnp
from jax.experimental import pallas as pl


# ---------------------------------------------------------------------------
# In-kernel helpers
# ---------------------------------------------------------------------------
def _layernorm(y, gamma, beta, inv_n, eps=1e-5):
    # PyTorch LayerNorm: biased variance over the last axis, eps=1e-5.
    mu = jnp.sum(y, axis=-1, keepdims=True) * inv_n
    d = y - mu
    var = jnp.sum(d * d, axis=-1, keepdims=True) * inv_n
    return d * jax.lax.rsqrt(var + eps) * gamma + beta


def _attention(q_flat, k_flat, v_flat, wo, bo, bias, *, num_heads, head_dim):
    """Multi-head attention with heads stored contiguously on the lane axis.

    q_flat : (Sq, H*A)  -- scale already folded into the Q projection
    k_flat : (Sk, H*A)
    v_flat : (Sk, H*A)
    wo     : (H*A, E)   bo: (1, E)
    bias   : (Sq, Sk) additive mask (0 / -1e30) or None
    """
    A = head_dim
    cdt = wo.dtype  # matmul compute dtype (f32 here; bf16 on v6e/v7x at scale)
    ctx_heads = []
    for h in range(num_heads):           # static lane slices per head
        lo = h * A
        qh = q_flat[:, lo:lo + A]
        kh = k_flat[:, lo:lo + A]
        vh = v_flat[:, lo:lo + A]
        # Contraction over head_dim via dimension numbers (no explicit k.T).
        s = jax.lax.dot_general(
            qh.astype(cdt), kh.astype(cdt),
            dimension_numbers=(((1,), (1,)), ((), ())),
            preferred_element_type=jnp.float32)            # (Sq, Sk)
        if bias is not None:
            s = s + bias
        m = jnp.max(s, axis=-1, keepdims=True)
        p = jnp.exp(s - m)
        p = p / jnp.sum(p, axis=-1, keepdims=True)          # exact softmax
        ctx_heads.append(
            jnp.dot(p.astype(cdt), vh.astype(cdt),
                    preferred_element_type=jnp.float32))     # (Sq, A)
    # concat(heads) @ Wo : one lane-dense (Sq, H*A) x (H*A, E) matmul that
    # accumulates over heads inside the MXU.
    ctx = jnp.concatenate(ctx_heads, axis=-1)                # (Sq, H*A)
    return jnp.dot(ctx.astype(cdt), wo,
                   preferred_element_type=jnp.float32) + bo  # (Sq, E)


# ---------------------------------------------------------------------------
# Kernel
# ---------------------------------------------------------------------------
def _decoder_block_kernel(
    dec_ref, enc_ref,
    sa_wqkv_ref, sa_bqkv_ref, sa_wo_ref, sa_bo_ref,
    ca_wq_ref, ca_bq_ref, ca_wkv_ref, ca_bkv_ref, ca_wo_ref, ca_bo_ref,
    ln_g_ref, ln_b_ref, wff_ref, bff_ref,
    out_ref,
    *,
    num_heads: int,
    head_dim: int,
):
    H, A = num_heads, head_dim
    HA = H * A

    x = dec_ref[...].astype(jnp.float32)      # (S, E) decoder input
    y = enc_ref[...].astype(jnp.float32)      # (T, E) encoder memory
    S = x.shape[0]

    gamma = ln_g_ref[...]                     # loaded once, reused 3x
    beta = ln_b_ref[...]
    inv_e = 1.0 / x.shape[-1]

    # Causal additive bias, built once as a 2-D tensor and reused per head.
    # TODO(synk): mask convention inferred (standard lower-triangular causal);
    # the reference MultiHeadAttention source was not provided.
    row = jax.lax.broadcasted_iota(jnp.int32, (S, S), 0)
    col = jax.lax.broadcasted_iota(jnp.int32, (S, S), 1)
    causal_bias = jnp.where(row >= col, 0.0, -1e30).astype(jnp.float32)

    cdt = sa_wqkv_ref.dtype                   # matmul operand dtype

    # --- Masked (causal) self-attention: fused lane-dense QKV projection ---
    qkv = jnp.dot(x.astype(cdt), sa_wqkv_ref[...],
                  preferred_element_type=jnp.float32) + sa_bqkv_ref[...]
    x2 = _attention(qkv[:, :HA], qkv[:, HA:2 * HA], qkv[:, 2 * HA:],
                    sa_wo_ref[...], sa_bo_ref[...], causal_bias,
                    num_heads=H, head_dim=A)
    x3 = _layernorm(x2 + x, gamma, beta, inv_e)

    # --- Encoder-decoder cross-attention (Q from x3, fused K/V from enc_y) ---
    q = jnp.dot(x3.astype(cdt), ca_wq_ref[...],
                preferred_element_type=jnp.float32) + ca_bq_ref[...]
    kv = jnp.dot(y.astype(cdt), ca_wkv_ref[...],
                 preferred_element_type=jnp.float32) + ca_bkv_ref[...]
    x4 = _attention(q, kv[:, :HA], kv[:, HA:],
                    ca_wo_ref[...], ca_bo_ref[...], None,
                    num_heads=H, head_dim=A)
    x5 = _layernorm(x4 + x3, gamma, beta, inv_e)

    # --- Feed-forward (Linear E -> E) + final Add&Norm ---
    x6 = jnp.dot(x5.astype(cdt), wff_ref[...],
                 preferred_element_type=jnp.float32) + bff_ref[...]
    out_ref[...] = _layernorm(x6 + x5, gamma, beta, inv_e).astype(out_ref.dtype)


# ---------------------------------------------------------------------------
# Host-side wrapper
# ---------------------------------------------------------------------------
def decoder_block(dec_x, enc_y, packed, *, num_heads, head_dim):
    S, E = dec_x.shape
    kernel = functools.partial(
        _decoder_block_kernel, num_heads=num_heads, head_dim=head_dim)

    args = (
        dec_x, enc_y,
        packed["sa_wqkv"], packed["sa_bqkv"], packed["sa_wo"], packed["sa_bo"],
        packed["ca_wq"], packed["ca_bq"], packed["ca_wkv"], packed["ca_bkv"],
        packed["ca_wo"], packed["ca_bo"],
        packed["ln_g"], packed["ln_b"], packed["wff"], packed["bff"],
    )
    full = lambda a: pl.BlockSpec(a.shape, lambda: (0,) * a.ndim)

    # Single sequence => single full-block grid point on one TensorCore.
    # (With a batch of sequences, add a leading grid axis marked "parallel"
    #  so v7x's second TensorCore picks up half the batch.)
    return pl.pallas_call(
        kernel,
        out_shape=jax.ShapeDtypeStruct((S, E), jnp.float32),
        grid=(),
        in_specs=[full(a) for a in args],
        out_specs=pl.BlockSpec((S, E), lambda: (0, 0)),
    )(*args)


# ---------------------------------------------------------------------------
# Parameters: natural per-head layout + host-side packing/fusing
# ---------------------------------------------------------------------------
def init_params(key, embedding_size, attention_size, attention_heads):
    """Per-head 'natural' parameterization (mirrors the PyTorch module)."""
    E, A, H = embedding_size, attention_size, attention_heads
    ks = jax.random.split(key, 4)
    s_in = 1.0 / (E ** 0.5)
    s_ha = 1.0 / ((H * A) ** 0.5)

    def attn(k):
        kq, kk, kv, ko, kbq, kbk, kbv, kbo = jax.random.split(k, 8)
        return {
            "wq": jax.random.normal(kq, (H, E, A), jnp.float32) * s_in,
            "bq": jax.random.normal(kbq, (H, A), jnp.float32) * 0.01,
            "wk": jax.random.normal(kk, (H, E, A), jnp.float32) * s_in,
            "bk": jax.random.normal(kbk, (H, A), jnp.float32) * 0.01,
            "wv": jax.random.normal(kv, (H, E, A), jnp.float32) * s_in,
            "bv": jax.random.normal(kbv, (H, A), jnp.float32) * 0.01,
            "wo": jax.random.normal(ko, (H, A, E), jnp.float32) * s_ha,
            "bo": jax.random.normal(kbo, (1, E), jnp.float32) * 0.01,
        }

    return {
        "self_attn": attn(ks[0]),
        "cross_attn": attn(ks[1]),
        "ln_g": jnp.ones((1, E), jnp.float32),
        "ln_b": jnp.zeros((1, E), jnp.float32),
        "wff": jax.random.normal(ks[2], (E, E), jnp.float32) * s_in,
        "bff": jax.random.normal(ks[3], (1, E), jnp.float32) * 0.01,
    }


def pack_params(params, *, num_heads, head_dim, compute_dtype=jnp.float32):
    """Host-side weight prep for the kernel:
       * fuse QKV (self-attn) and KV (cross-attn) into single weight matrices,
       * flatten heads onto the lane axis: (H,E,A) -> (E, H*A), (H,A,E) -> (H*A,E),
       * reshape biases to lane-dense (1, H*A) rows,
       * fold 1/sqrt(head_dim) into the query projection (weights AND bias),
       * optionally cast weight matrices to bf16 (v6e/v7x) -- biases/LN stay f32.
    """
    H, A = num_heads, head_dim
    HA = H * A
    scale = 1.0 / (A ** 0.5)

    def flat_w(w):            # (H, E, A) -> (E, H*A)
        return jnp.transpose(w, (1, 0, 2)).reshape(w.shape[1], HA)

    def flat_b(b):            # (H, A) -> (1, H*A)
        return b.reshape(1, HA)

    sa, ca = params["self_attn"], params["cross_attn"]
    return {
        "sa_wqkv": jnp.concatenate(
            [flat_w(sa["wq"]) * scale, flat_w(sa["wk"]), flat_w(sa["wv"])],
            axis=1).astype(compute_dtype),                        # (E, 3*H*A)
        "sa_bqkv": jnp.concatenate(
            [flat_b(sa["bq"]) * scale, flat_b(sa["bk"]), flat_b(sa["bv"])],
            axis=1),                                              # (1, 3*H*A)
        "sa_wo": sa["wo"].reshape(HA, -1).astype(compute_dtype),  # (H*A, E)
        "sa_bo": sa["bo"],                                        # (1, E)
        "ca_wq": (flat_w(ca["wq"]) * scale).astype(compute_dtype),
        "ca_bq": flat_b(ca["bq"]) * scale,
        "ca_wkv": jnp.concatenate(
            [flat_w(ca["wk"]), flat_w(ca["wv"])], axis=1).astype(compute_dtype),
        "ca_bkv": jnp.concatenate(
            [flat_b(ca["bk"]), flat_b(ca["bv"])], axis=1),
        "ca_wo": ca["wo"].reshape(HA, -1).astype(compute_dtype),
        "ca_bo": ca["bo"],
        "ln_g": params["ln_g"],
        "ln_b": params["ln_b"],
        "wff": params["wff"].astype(compute_dtype),
        "bff": params["bff"],
    }


# ---------------------------------------------------------------------------
if __name__ == "__main__":
    # Small shapes consistent with the module's forward:
    #   dec_x: (seq_length, embedding_size), enc_y: (enc_seq_length, embedding_size)
    seq_len = 8
    enc_len = 16
    embedding_size = 32
    attention_size = 16
    attention_heads = 8

    key = jax.random.PRNGKey(0)
    kx, ky, kp = jax.random.split(key, 3)
    dec_x = jax.random.normal(kx, (seq_len, embedding_size), jnp.float32)
    enc_y = jax.random.normal(ky, (enc_len, embedding_size), jnp.float32)

    params = init_params(kp, embedding_size, attention_size, attention_heads)
    # Keep f32 matmul operands here to track the f32 PyTorch reference; pass
    # compute_dtype=jnp.bfloat16 on v6e/v7x at realistic E for MXU-native ops.
    packed = pack_params(params, num_heads=attention_heads,
                         head_dim=attention_size,
                         compute_dtype=jnp.float32)

    out = decoder_block(dec_x, enc_y, packed,
                        num_heads=attention_heads, head_dim=attention_size)
    jax.block_until_ready(out)
    assert out.shape == (seq_len, embedding_size)
    print("KERNEL_OK")
</pallas_src>

<mosaic_0001>
module attributes {stable_mosaic.version = 11 : i64} {
  func.func @_decoder_block_kernel(%arg0: memref<8x32xf32, #tpu.memory_space<vmem>>, %arg1: memref<16x32xf32, #tpu.memory_space<vmem>>, %arg2: memref<32x384xf32, #tpu.memory_space<vmem>>, %arg3: memref<1x384xf32, #tpu.memory_space<vmem>>, %arg4: memref<128x32xf32, #tpu.memory_space<vmem>>, %arg5: memref<1x32xf32, #tpu.memory_space<vmem>>, %arg6: memref<32x128xf32, #tpu.memory_space<vmem>>, %arg7: memref<1x128xf32, #tpu.memory_space<vmem>>, %arg8: memref<32x256xf32, #tpu.memory_space<vmem>>, %arg9: memref<1x256xf32, #tpu.memory_space<vmem>>, %arg10: memref<128x32xf32, #tpu.memory_space<vmem>>, %arg11: memref<1x32xf32, #tpu.memory_space<vmem>>, %arg12: memref<1x32xf32, #tpu.memory_space<vmem>>, %arg13: memref<1x32xf32, #tpu.memory_space<vmem>>, %arg14: memref<32x32xf32, #tpu.memory_space<vmem>>, %arg15: memref<1x32xf32, #tpu.memory_space<vmem>>, %arg16: memref<8x32xf32, #tpu.memory_space<vmem>>) attributes {dimension_semantics = [], scalar_prefetch = 0 : i64, scratch_operands = 0 : i64, tpu.core_type = #tpu.core_type<tc>} {
    %c0 = arith.constant 0 : index
    %c0_0 = arith.constant 0 : index
    %0 = vector.load %arg0[%c0, %c0_0] : memref<8x32xf32, #tpu.memory_space<vmem>>, vector<8x32xf32>
    %c0_1 = arith.constant 0 : index
    %c0_2 = arith.constant 0 : index
    %1 = vector.load %arg1[%c0_1, %c0_2] : memref<16x32xf32, #tpu.memory_space<vmem>>, vector<16x32xf32>
    %c0_3 = arith.constant 0 : index
    %c0_4 = arith.constant 0 : index
    %2 = vector.load %arg12[%c0_3, %c0_4] : memref<1x32xf32, #tpu.memory_space<vmem>>, vector<1x32xf32>
    %c0_5 = arith.constant 0 : index
    %c0_6 = arith.constant 0 : index
    %3 = vector.load %arg13[%c0_5, %c0_6] : memref<1x32xf32, #tpu.memory_space<vmem>>, vector<1x32xf32>
    %4 = tpu.iota {dimensions = array<i32: 0>} : vector<8x8xi32>
    %5 = tpu.iota {dimensions = array<i32: 1>} : vector<8x8xi32>
    %6 = arith.cmpi sge, %4, %5 : vector<8x8xi32>
    %cst = arith.constant 0.000000e+00 : f32
    %cst_7 = arith.constant -1.000000e+30 : f32
    %7 = vector.broadcast %cst : f32 to vector<8x8xf32>
    %8 = vector.broadcast %cst_7 : f32 to vector<8x8xf32>
    %9 = arith.select %6, %7, %8 : vector<8x8xi1>, vector<8x8xf32>
    %c0_8 = arith.constant 0 : index
    %c0_9 = arith.constant 0 : index
    %10 = vector.load %arg2[%c0_8, %c0_9] : memref<32x384xf32, #tpu.memory_space<vmem>>, vector<32x384xf32>
    %cst_10 = arith.constant dense<0.000000e+00> : vector<8x384xf32>
    %11 = tpu.matmul %0, %10, %cst_10 {dimension_numbers = #tpu.dot_dimension_numbers<[1], [0], [0], [1], [0, 0, 1, 1], [], []>} : vector<8x32xf32>, vector<32x384xf32>, vector<8x384xf32> -> vector<8x384xf32>
    %c0_11 = arith.constant 0 : index
    %c0_12 = arith.constant 0 : index
    %12 = vector.load %arg3[%c0_11, %c0_12] : memref<1x384xf32, #tpu.memory_space<vmem>>, vector<1x384xf32>
    %13 = vector.broadcast %12 : vector<1x384xf32> to vector<8x384xf32>
    %14 = arith.addf %11, %13 : vector<8x384xf32>
    %15 = vector.extract_strided_slice %14 {offsets = [0, 0], sizes = [8, 128], strides = [1, 1]} : vector<8x384xf32> to vector<8x128xf32>
    %16 = vector.extract_strided_slice %14 {offsets = [0, 128], sizes = [8, 128], strides = [1, 1]} : vector<8x384xf32> to vector<8x128xf32>
    %17 = vector.extract_strided_slice %14 {offsets = [0, 256], sizes = [8, 128], strides = [1, 1]} : vector<8x384xf32> to vector<8x128xf32>
    %c0_13 = arith.constant 0 : index
    %c0_14 = arith.constant 0 : index
    %18 = vector.load %arg4[%c0_13, %c0_14] : memref<128x32xf32, #tpu.memory_space<vmem>>, vector<128x32xf32>
    %c0_15 = arith.constant 0 : index
    %c0_16 = arith.constant 0 : index
    %19 = vector.load %arg5[%c0_15, %c0_16] : memref<1x32xf32, #tpu.memory_space<vmem>>, vector<1x32xf32>
    %20 = vector.extract_strided_slice %15 {offsets = [0, 0], sizes = [8, 16], strides = [1, 1]} : vector<8x128xf32> to vector<8x16xf32>
    %21 = vector.extract_strided_slice %16 {offsets = [0, 0], sizes = [8, 16], strides = [1, 1]} : vector<8x128xf32> to vector<8x16xf32>
    %22 = vector.extract_strided_slice %17 {offsets = [0, 0], sizes = [8, 16], strides = [1, 1]} : vector<8x128xf32> to vector<8x16xf32>
    %cst_17 = arith.constant dense<0.000000e+00> : vector<8x8xf32>
    %23 = tpu.matmul %20, %21, %cst_17 {dimension_numbers = #tpu.dot_dimension_numbers<[1], [1], [0], [0], [0, 0, 1, 0], [], []>} : vector<8x16xf32>, vector<8x16xf32>, vector<8x8xf32> -> vector<8x8xf32>
    %24 = arith.addf %23, %9 : vector<8x8xf32>
    %cst_18 = arith.constant dense<0xFF800000> : vector<8xf32>
    %25 = vector.multi_reduction <maximumf>, %24, %cst_18 [1] : vector<8x8xf32> to vector<8xf32>
    %26 = vector.shape_cast %25 : vector<8xf32> to vector<8x1xf32>
    %27 = vector.broadcast %26 : vector<8x1xf32> to vector<8x8xf32>
    %28 = arith.subf %24, %27 : vector<8x8xf32>
    %29 = math.exp %28 : vector<8x8xf32>
    %cst_19 = arith.constant dense<0.000000e+00> : vector<8xf32>
    %30 = vector.multi_reduction <add>, %29, %cst_19 [1] : vector<8x8xf32> to vector<8xf32>
    %31 = vector.shape_cast %30 : vector<8xf32> to vector<8x1xf32>
    %32 = vector.broadcast %31 : vector<8x1xf32> to vector<8x8xf32>
    %33 = arith.divf %29, %32 : vector<8x8xf32>
    %cst_20 = arith.constant dense<0.000000e+00> : vector<8x16xf32>
    %34 = tpu.matmul %33, %22, %cst_20 {dimension_numbers = #tpu.dot_dimension_numbers<[1], [0], [0], [1], [0, 0, 1, 1], [], []>} : vector<8x8xf32>, vector<8x16xf32>, vector<8x16xf32> -> vector<8x16xf32>
    %35 = vector.extract_strided_slice %15 {offsets = [0, 16], sizes = [8, 16], strides = [1, 1]} : vector<8x128xf32> to vector<8x16xf32>
    %36 = vector.extract_strided_slice %16 {offsets = [0, 16], sizes = [8, 16], strides = [1, 1]} : vector<8x128xf32> to vector<8x16xf32>
    %37 = vector.extract_strided_slice %17 {offsets = [0, 16], sizes = [8, 16], strides = [1, 1]} : vector<8x128xf32> to vector<8x16xf32>
    %cst_21 = arith.constant dense<0.000000e+00> : vector<8x8xf32>
    %38 = tpu.matmul %35, %36, %cst_21 {dimension_numbers = #tpu.dot_dimension_numbers<[1], [1], [0], [0], [0, 0, 1, 0], [], []>} : vector<8x16xf32>, vector<8x16xf32>, vector<8x8xf32> -> vector<8x8xf32>
    %39 = arith.addf %38, %9 : vector<8x8xf32>
    %cst_22 = arith.constant dense<0xFF800000> : vector<8xf32>
    %40 = vector.multi_reduction <maximumf>, %39, %cst_22 [1] : vector<8x8xf32> to vector<8xf32>
    %41 = vector.shape_cast %40 : vector<8xf32> to vector<8x1xf32>
    %42 = vector.broadcast %41 : vector<8x1xf32> to vector<8x8xf32>
    %43 = arith.subf %39, %42 : vector<8x8xf32>
    %44 = math.exp %43 : vector<8x8xf32>
    %cst_23 = arith.constant dense<0.000000e+00> : vector<8xf32>
    %45 = vector.multi_reduction <add>, %44, %cst_23 [1] : vector<8x8xf32> to vector<8xf32>
    %46 = vector.shape_cast %45 : vector<8xf32> to vector<8x1xf32>
    %47 = vector.broadcast %46 : vector<8x1xf32> to vector<8x8xf32>
    %48 = arith.divf %44, %47 : vector<8x8xf32>
    %cst_24 = arith.constant dense<0.000000e+00> : vector<8x16xf32>
    %49 = tpu.matmul %48, %37, %cst_24 {dimension_numbers = #tpu.dot_dimension_numbers<[1], [0], [0], [1], [0, 0, 1, 1], [], []>} : vector<8x8xf32>, vector<8x16xf32>, vector<8x16xf32> -> vector<8x16xf32>
    %50 = vector.extract_strided_slice %15 {offsets = [0, 32], sizes = [8, 16], strides = [1, 1]} : vector<8x128xf32> to vector<8x16xf32>
    %51 = vector.extract_strided_slice %16 {offsets = [0, 32], sizes = [8, 16], strides = [1, 1]} : vector<8x128xf32> to vector<8x16xf32>
    %52 = vector.extract_strided_slice %17 {offsets = [0, 32], sizes = [8, 16], strides = [1, 1]} : vector<8x128xf32> to vector<8x16xf32>
    %cst_25 = arith.constant dense<0.000000e+00> : vector<8x8xf32>
    %53 = tpu.matmul %50, %51, %cst_25 {dimension_numbers = #tpu.dot_dimension_numbers<[1], [1], [0], [0], [0, 0, 1, 0], [], []>} : vector<8x16xf32>, vector<8x16xf32>, vector<8x8xf32> -> vector<8x8xf32>
    %54 = arith.addf %53, %9 : vector<8x8xf32>
    %cst_26 = arith.constant dense<0xFF800000> : vector<8xf32>
    %55 = vector.multi_reduction <maximumf>, %54, %cst_26 [1] : vector<8x8xf32> to vector<8xf32>
    %56 = vector.shape_cast %55 : vector<8xf32> to vector<8x1xf32>
    %57 = vector.broadcast %56 : vector<8x1xf32> to vector<8x8xf32>
    %58 = arith.subf %54, %57 : vector<8x8xf32>
    %59 = math.exp %58 : vector<8x8xf32>
    %cst_27 = arith.constant dense<0.000000e+00> : vector<8xf32>
    %60 = vector.multi_reduction <add>, %59, %cst_27 [1] : vector<8x8xf32> to vector<8xf32>
    %61 = vector.shape_cast %60 : vector<8xf32> to vector<8x1xf32>
    %62 = vector.broadcast %61 : vector<8x1xf32> to vector<8x8xf32>
    %63 = arith.divf %59, %62 : vector<8x8xf32>
    %cst_28 = arith.constant dense<0.000000e+00> : vector<8x16xf32>
    %64 = tpu.matmul %63, %52, %cst_28 {dimension_numbers = #tpu.dot_dimension_numbers<[1], [0], [0], [1], [0, 0, 1, 1], [], []>} : vector<8x8xf32>, vector<8x16xf32>, vector<8x16xf32> -> vector<8x16xf32>
    %65 = vector.extract_strided_slice %15 {offsets = [0, 48], sizes = [8, 16], strides = [1, 1]} : vector<8x128xf32> to vector<8x16xf32>
    %66 = vector.extract_strided_slice %16 {offsets = [0, 48], sizes = [8, 16], strides = [1, 1]} : vector<8x128xf32> to vector<8x16xf32>
    %67 = vector.extract_strided_slice %17 {offsets = [0, 48], sizes = [8, 16], strides = [1, 1]} : vector<8x128xf32> to vector<8x16xf32>
    %cst_29 = arith.constant dense<0.000000e+00> : vector<8x8xf32>
    %68 = tpu.matmul %65, %66, %cst_29 {dimension_numbers = #tpu.dot_dimension_numbers<[1], [1], [0], [0], [0, 0, 1, 0], [], []>} : vector<8x16xf32>, vector<8x16xf32>, vector<8x8xf32> -> vector<8x8xf32>
    %69 = arith.addf %68, %9 : vector<8x8xf32>
    %cst_30 = arith.constant dense<0xFF800000> : vector<8xf32>
    %70 = vector.multi_reduction <maximumf>, %69, %cst_30 [1] : vector<8x8xf32> to vector<8xf32>
    %71 = vector.shape_cast %70 : vector<8xf32> to vector<8x1xf32>
    %72 = vector.broadcast %71 : vector<8x1xf32> to vector<8x8xf32>
    %73 = arith.subf %69, %72 : vector<8x8xf32>
    %74 = math.exp %73 : vector<8x8xf32>
    %cst_31 = arith.constant dense<0.000000e+00> : vector<8xf32>
    %75 = vector.multi_reduction <add>, %74, %cst_31 [1] : vector<8x8xf32> to vector<8xf32>
    %76 = vector.shape_cast %75 : vector<8xf32> to vector<8x1xf32>
    %77 = vector.broadcast %76 : vector<8x1xf32> to vector<8x8xf32>
    %78 = arith.divf %74, %77 : vector<8x8xf32>
    %cst_32 = arith.constant dense<0.000000e+00> : vector<8x16xf32>
    %79 = tpu.matmul %78, %67, %cst_32 {dimension_numbers = #tpu.dot_dimension_numbers<[1], [0], [0], [1], [0, 0, 1, 1], [], []>} : vector<8x8xf32>, vector<8x16xf32>, vector<8x16xf32> -> vector<8x16xf32>
    %80 = vector.extract_strided_slice %15 {offsets = [0, 64], sizes = [8, 16], strides = [1, 1]} : vector<8x128xf32> to vector<8x16xf32>
    %81 = vector.extract_strided_slice %16 {offsets = [0, 64], sizes = [8, 16], strides = [1, 1]} : vector<8x128xf32> to vector<8x16xf32>
    %82 = vector.extract_strided_slice %17 {offsets = [0, 64], sizes = [8, 16], strides = [1, 1]} : vector<8x128xf32> to vector<8x16xf32>
    %cst_33 = arith.constant dense<0.000000e+00> : vector<8x8xf32>
    %83 = tpu.matmul %80, %81, %cst_33 {dimension_numbers = #tpu.dot_dimension_numbers<[1], [1], [0], [0], [0, 0, 1, 0], [], []>} : vector<8x16xf32>, vector<8x16xf32>, vector<8x8xf32> -> vector<8x8xf32>
    %84 = arith.addf %83, %9 : vector<8x8xf32>
    %cst_34 = arith.constant dense<0xFF800000> : vector<8xf32>
    %85 = vector.multi_reduction <maximumf>, %84, %cst_34 [1] : vector<8x8xf32> to vector<8xf32>
    %86 = vector.shape_cast %85 : vector<8xf32> to vector<8x1xf32>
    %87 = vector.broadcast %86 : vector<8x1xf32> to vector<8x8xf32>
    %88 = arith.subf %84, %87 : vector<8x8xf32>
    %89 = math.exp %88 : vector<8x8xf32>
    %cst_35 = arith.constant dense<0.000000e+00> : vector<8xf32>
    %90 = vector.multi_reduction <add>, %89, %cst_35 [1] : vector<8x8xf32> to vector<8xf32>
    %91 = vector.shape_cast %90 : vector<8xf32> to vector<8x1xf32>
    %92 = vector.broadcast %91 : vector<8x1xf32> to vector<8x8xf32>
    %93 = arith.divf %89, %92 : vector<8x8xf32>
    %cst_36 = arith.constant dense<0.000000e+00> : vector<8x16xf32>
    %94 = tpu.matmul %93, %82, %cst_36 {dimension_numbers = #tpu.dot_dimension_numbers<[1], [0], [0], [1], [0, 0, 1, 1], [], []>} : vector<8x8xf32>, vector<8x16xf32>, vector<8x16xf32> -> vector<8x16xf32>
    %95 = vector.extract_strided_slice %15 {offsets = [0, 80], sizes = [8, 16], strides = [1, 1]} : vector<8x128xf32> to vector<8x16xf32>
    %96 = vector.extract_strided_slice %16 {offsets = [0, 80], sizes = [8, 16], strides = [1, 1]} : vector<8x128xf32> to vector<8x16xf32>
    %97 = vector.extract_strided_slice %17 {offsets = [0, 80], sizes = [8, 16], strides = [1, 1]} : vector<8x128xf32> to vector<8x16xf32>
    %cst_37 = arith.constant dense<0.000000e+00> : vector<8x8xf32>
    %98 = tpu.matmul %95, %96, %cst_37 {dimension_numbers = #tpu.dot_dimension_numbers<[1], [1], [0], [0], [0, 0, 1, 0], [], []>} : vector<8x16xf32>, vector<8x16xf32>, vector<8x8xf32> -> vector<8x8xf32>
    %99 = arith.addf %98, %9 : vector<8x8xf32>
    %cst_38 = arith.constant dense<0xFF800000> : vector<8xf32>
    %100 = vector.multi_reduction <maximumf>, %99, %cst_38 [1] : vector<8x8xf32> to vector<8xf32>
    %101 = vector.shape_cast %100 : vector<8xf32> to vector<8x1xf32>
    %102 = vector.broadcast %101 : vector<8x1xf32> to vector<8x8xf32>
    %103 = arith.subf %99, %102 : vector<8x8xf32>
    %104 = math.exp %103 : vector<8x8xf32>
    %cst_39 = arith.constant dense<0.000000e+00> : vector<8xf32>
    %105 = vector.multi_reduction <add>, %104, %cst_39 [1] : vector<8x8xf32> to vector<8xf32>
    %106 = vector.shape_cast %105 : vector<8xf32> to vector<8x1xf32>
    %107 = vector.broadcast %106 : vector<8x1xf32> to vector<8x8xf32>
    %108 = arith.divf %104, %107 : vector<8x8xf32>
    %cst_40 = arith.constant dense<0.000000e+00> : vector<8x16xf32>
    %109 = tpu.matmul %108, %97, %cst_40 {dimension_numbers = #tpu.dot_dimension_numbers<[1], [0], [0], [1], [0, 0, 1, 1], [], []>} : vector<8x8xf32>, vector<8x16xf32>, vector<8x16xf32> -> vector<8x16xf32>
    %110 = vector.extract_strided_slice %15 {offsets = [0, 96], sizes = [8, 16], strides = [1, 1]} : vector<8x128xf32> to vector<8x16xf32>
    %111 = vector.extract_strided_slice %16 {offsets = [0, 96], sizes = [8, 16], strides = [1, 1]} : vector<8x128xf32> to vector<8x16xf32>
    %112 = vector.extract_strided_slice %17 {offsets = [0, 96], sizes = [8, 16], strides = [1, 1]} : vector<8x128xf32> to vector<8x16xf32>
    %cst_41 = arith.constant dense<0.000000e+00> : vector<8x8xf32>
    %113 = tpu.matmul %110, %111, %cst_41 {dimension_numbers = #tpu.dot_dimension_numbers<[1], [1], [0], [0], [0, 0, 1, 0], [], []>} : vector<8x16xf32>, vector<8x16xf32>, vector<8x8xf32> -> vector<8x8xf32>
    %114 = arith.addf %113, %9 : vector<8x8xf32>
    %cst_42 = arith.constant dense<0xFF800000> : vector<8xf32>
    %115 = vector.multi_reduction <maximumf>, %114, %cst_42 [1] : vector<8x8xf32> to vector<8xf32>
    %116 = vector.shape_cast %115 : vector<8xf32> to vector<8x1xf32>
    %117 = vector.broadcast %116 : vector<8x1xf32> to vector<8x8xf32>
    %118 = arith.subf %114, %117 : vector<8x8xf32>
    %119 = math.exp %118 : vector<8x8xf32>
    %cst_43 = arith.constant dense<0.000000e+00> : vector<8xf32>
    %120 = vector.multi_reduction <add>, %119, %cst_43 [1] : vector<8x8xf32> to vector<8xf32>
    %121 = vector.shape_cast %120 : vector<8xf32> to vector<8x1xf32>
    %122 = vector.broadcast %121 : vector<8x1xf32> to vector<8x8xf32>
    %123 = arith.divf %119, %122 : vector<8x8xf32>
    %cst_44 = arith.constant dense<0.000000e+00> : vector<8x16xf32>
    %124 = tpu.matmul %123, %112, %cst_44 {dimension_numbers = #tpu.dot_dimension_numbers<[1], [0], [0], [1], [0, 0, 1, 1], [], []>} : vector<8x8xf32>, vector<8x16xf32>, vector<8x16xf32> -> vector<8x16xf32>
    %125 = vector.extract_strided_slice %15 {offsets = [0, 112], sizes = [8, 16], strides = [1, 1]} : vector<8x128xf32> to vector<8x16xf32>
    %126 = vector.extract_strided_slice %16 {offsets = [0, 112], sizes = [8, 16], strides = [1, 1]} : vector<8x128xf32> to vector<8x16xf32>
    %127 = vector.extract_strided_slice %17 {offsets = [0, 112], sizes = [8, 16], strides = [1, 1]} : vector<8x128xf32> to vector<8x16xf32>
    %cst_45 = arith.constant dense<0.000000e+00> : vector<8x8xf32>
    %128 = tpu.matmul %125, %126, %cst_45 {dimension_numbers = #tpu.dot_dimension_numbers<[1], [1], [0], [0], [0, 0, 1, 0], [], []>} : vector<8x16xf32>, vector<8x16xf32>, vector<8x8xf32> -> vector<8x8xf32>
    %129 = arith.addf %128, %9 : vector<8x8xf32>
    %cst_46 = arith.constant dense<0xFF800000> : vector<8xf32>
    %130 = vector.multi_reduction <maximumf>, %129, %cst_46 [1] : vector<8x8xf32> to vector<8xf32>
    %131 = vector.shape_cast %130 : vector<8xf32> to vector<8x1xf32>
    %132 = vector.broadcast %131 : vector<8x1xf32> to vector<8x8xf32>
    %133 = arith.subf %129, %132 : vector<8x8xf32>
    %134 = math.exp %133 : vector<8x8xf32>
    %cst_47 = arith.constant dense<0.000000e+00> : vector<8xf32>
    %135 = vector.multi_reduction <add>, %134, %cst_47 [1] : vector<8x8xf32> to vector<8xf32>
    %136 = vector.shape_cast %135 : vector<8xf32> to vector<8x1xf32>
    %137 = vector.broadcast %136 : vector<8x1xf32> to vector<8x8xf32>
    %138 = arith.divf %134, %137 : vector<8x8xf32>
    %cst_48 = arith.constant dense<0.000000e+00> : vector<8x16xf32>
    %139 = tpu.matmul %138, %127, %cst_48 {dimension_numbers = #tpu.dot_dimension_numbers<[1], [0], [0], [1], [0, 0, 1, 1], [], []>} : vector<8x8xf32>, vector<8x16xf32>, vector<8x16xf32> -> vector<8x16xf32>
    %140 = tpu.concatenate %34, %49, %64, %79, %94, %109, %124, %139 in 1 : vector<8x16xf32>, vector<8x16xf32>, vector<8x16xf32>, vector<8x16xf32>, vector<8x16xf32>, vector<8x16xf32>, vector<8x16xf32>, vector<8x16xf32> -> vector<8x128xf32>
    %cst_49 = arith.constant dense<0.000000e+00> : vector<8x32xf32>
    %141 = tpu.matmul %140, %18, %cst_49 {dimension_numbers = #tpu.dot_dimension_numbers<[1], [0], [0], [1], [0, 0, 1, 1], [], []>} : vector<8x128xf32>, vector<128x32xf32>, vector<8x32xf32> -> vector<8x32xf32>
    %142 = vector.broadcast %19 : vector<1x32xf32> to vector<8x32xf32>
    %143 = arith.addf %141, %142 : vector<8x32xf32>
    %144 = arith.addf %143, %0 : vector<8x32xf32>
    %cst_50 = arith.constant dense<0.000000e+00> : vector<8xf32>
    %145 = vector.multi_reduction <add>, %144, %cst_50 [1] : vector<8x32xf32> to vector<8xf32>
    %146 = vector.shape_cast %145 : vector<8xf32> to vector<8x1xf32>
    %cst_51 = arith.constant 3.125000e-02 : f32
    %147 = vector.broadcast %cst_51 : f32 to vector<8x1xf32>
    %148 = arith.mulf %146, %147 : vector<8x1xf32>
    %149 = vector.broadcast %148 : vector<8x1xf32> to vector<8x32xf32>
    %150 = arith.subf %144, %149 : vector<8x32xf32>
    %151 = arith.mulf %150, %150 : vector<8x32xf32>
    %cst_52 = arith.constant dense<0.000000e+00> : vector<8xf32>
    %152 = vector.multi_reduction <add>, %151, %cst_52 [1] : vector<8x32xf32> to vector<8xf32>
    %153 = vector.shape_cast %152 : vector<8xf32> to vector<8x1xf32>
    %cst_53 = arith.constant 3.125000e-02 : f32
    %154 = vector.broadcast %cst_53 : f32 to vector<8x1xf32>
    %155 = arith.mulf %153, %154 : vector<8x1xf32>
    %cst_54 = arith.constant 9.99999974E-6 : f32
    %156 = vector.broadcast %cst_54 : f32 to vector<8x1xf32>
    %157 = arith.addf %155, %156 : vector<8x1xf32>
    %158 = math.rsqrt %157 : vector<8x1xf32>
    %159 = vector.broadcast %158 : vector<8x1xf32> to vector<8x32xf32>
    %160 = arith.mulf %150, %159 : vector<8x32xf32>
    %161 = vector.broadcast %2 : vector<1x32xf32> to vector<8x32xf32>
    %162 = arith.mulf %160, %161 : vector<8x32xf32>
    %163 = vector.broadcast %3 : vector<1x32xf32> to vector<8x32xf32>
    %164 = arith.addf %162, %163 : vector<8x32xf32>
    %c0_55 = arith.constant 0 : index
    %c0_56 = arith.constant 0 : index
    %165 = vector.load %arg6[%c0_55, %c0_56] : memref<32x128xf32, #tpu.memory_space<vmem>>, vector<32x128xf32>
    %cst_57 = arith.constant dense<0.000000e+00> : vector<8x128xf32>
    %166 = tpu.matmul %164, %165, %cst_57 {dimension_numbers = #tpu.dot_dimension_numbers<[1], [0], [0], [1], [0, 0, 1, 1], [], []>} : vector<8x32xf32>, vector<32x128xf32>, vector<8x128xf32> -> vector<8x128xf32>
    %c0_58 = arith.constant 0 : index
    %c0_59 = arith.constant 0 : index
    %167 = vector.load %arg7[%c0_58, %c0_59] : memref<1x128xf32, #tpu.memory_space<vmem>>, vector<1x128xf32>
    %168 = vector.broadcast %167 : vector<1x128xf32> to vector<8x128xf32>
    %169 = arith.addf %166, %168 : vector<8x128xf32>
    %c0_60 = arith.constant 0 : index
    %c0_61 = arith.constant 0 : index
    %170 = vector.load %arg8[%c0_60, %c0_61] : memref<32x256xf32, #tpu.memory_space<vmem>>, vector<32x256xf32>
    %cst_62 = arith.constant dense<0.000000e+00> : vector<16x256xf32>
    %171 = tpu.matmul %1, %170, %cst_62 {dimension_numbers = #tpu.dot_dimension_numbers<[1], [0], [0], [1], [0, 0, 1, 1], [], []>} : vector<16x32xf32>, vector<32x256xf32>, vector<16x256xf32> -> vector<16x256xf32>
    %c0_63 = arith.constant 0 : index
    %c0_64 = arith.constant 0 : index
    %172 = vector.load %arg9[%c0_63, %c0_64] : memref<1x256xf32, #tpu.memory_space<vmem>>, vector<1x256xf32>
    %173 = vector.broadcast %172 : vector<1x256xf32> to vector<16x256xf32>
    %174 = arith.addf %171, %173 : vector<16x256xf32>
    %175 = vector.extract_strided_slice %174 {offsets = [0, 0], sizes = [16, 128], strides = [1, 1]} : vector<16x256xf32> to vector<16x128xf32>
    %176 = vector.extract_strided_slice %174 {offsets = [0, 128], sizes = [16, 128], strides = [1, 1]} : vector<16x256xf32> to vector<16x128xf32>
    %c0_65 = arith.constant 0 : index
    %c0_66 = arith.constant 0 : index
    %177 = vector.load %arg10[%c0_65, %c0_66] : memref<128x32xf32, #tpu.memory_space<vmem>>, vector<128x32xf32>
    %c0_67 = arith.constant 0 : index
    %c0_68 = arith.constant 0 : index
    %178 = vector.load %arg11[%c0_67, %c0_68] : memref<1x32xf32, #tpu.memory_space<vmem>>, vector<1x32xf32>
    %179 = vector.extract_strided_slice %169 {offsets = [0, 0], sizes = [8, 16], strides = [1, 1]} : vector<8x128xf32> to vector<8x16xf32>
    %180 = vector.extract_strided_slice %175 {offsets = [0, 0], sizes = [16, 16], strides = [1, 1]} : vector<16x128xf32> to vector<16x16xf32>
    %181 = vector.extract_strided_slice %176 {offsets = [0, 0], sizes = [16, 16], strides = [1, 1]} : vector<16x128xf32> to vector<16x16xf32>
    %cst_69 = arith.constant dense<0.000000e+00> : vector<8x16xf32>
    %182 = tpu.matmul %179, %180, %cst_69 {dimension_numbers = #tpu.dot_dimension_numbers<[1], [1], [0], [0], [0, 0, 1, 0], [], []>} : vector<8x16xf32>, vector<16x16xf32>, vector<8x16xf32> -> vector<8x16xf32>
    %cst_70 = arith.constant dense<0xFF800000> : vector<8xf32>
    %183 = vector.multi_reduction <maximumf>, %182, %cst_70 [1] : vector<8x16xf32> to vector<8xf32>
    %184 = vector.shape_cast %183 : vector<8xf32> to vector<8x1xf32>
    %185 = vector.broadcast %184 : vector<8x1xf32> to vector<8x16xf32>
    %186 = arith.subf %182, %185 : vector<8x16xf32>
    %187 = math.exp %186 : vector<8x16xf32>
    %cst_71 = arith.constant dense<0.000000e+00> : vector<8xf32>
    %188 = vector.multi_reduction <add>, %187, %cst_71 [1] : vector<8x16xf32> to vector<8xf32>
    %189 = vector.shape_cast %188 : vector<8xf32> to vector<8x1xf32>
    %190 = vector.broadcast %189 : vector<8x1xf32> to vector<8x16xf32>
    %191 = arith.divf %187, %190 : vector<8x16xf32>
    %cst_72 = arith.constant dense<0.000000e+00> : vector<8x16xf32>
    %192 = tpu.matmul %191, %181, %cst_72 {dimension_numbers = #tpu.dot_dimension_numbers<[1], [0], [0], [1], [0, 0, 1, 1], [], []>} : vector<8x16xf32>, vector<16x16xf32>, vector<8x16xf32> -> vector<8x16xf32>
    %193 = vector.extract_strided_slice %169 {offsets = [0, 16], sizes = [8, 16], strides = [1, 1]} : vector<8x128xf32> to vector<8x16xf32>
    %194 = vector.extract_strided_slice %175 {offsets = [0, 16], sizes = [16, 16], strides = [1, 1]} : vector<16x128xf32> to vector<16x16xf32>
    %195 = vector.extract_strided_slice %176 {offsets = [0, 16], sizes = [16, 16], strides = [1, 1]} : vector<16x128xf32> to vector<16x16xf32>
    %cst_73 = arith.constant dense<0.000000e+00> : vector<8x16xf32>
    %196 = tpu.matmul %193, %194, %cst_73 {dimension_numbers = #tpu.dot_dimension_numbers<[1], [1], [0], [0], [0, 0, 1, 0], [], []>} : vector<8x16xf32>, vector<16x16xf32>, vector<8x16xf32> -> vector<8x16xf32>
    %cst_74 = arith.constant dense<0xFF800000> : vector<8xf32>
    %197 = vector.multi_reduction <maximumf>, %196, %cst_74 [1] : vector<8x16xf32> to vector<8xf32>
    %198 = vector.shape_cast %197 : vector<8xf32> to vector<8x1xf32>
    %199 = vector.broadcast %198 : vector<8x1xf32> to vector<8x16xf32>
    %200 = arith.subf %196, %199 : vector<8x16xf32>
    %201 = math.exp %200 : vector<8x16xf32>
    %cst_75 = arith.constant dense<0.000000e+00> : vector<8xf32>
    %202 = vector.multi_reduction <add>, %201, %cst_75 [1] : vector<8x16xf32> to vector<8xf32>
    %203 = vector.shape_cast %202 : vector<8xf32> to vector<8x1xf32>
    %204 = vector.broadcast %203 : vector<8x1xf32> to vector<8x16xf32>
    %205 = arith.divf %201, %204 : vector<8x16xf32>
    %cst_76 = arith.constant dense<0.000000e+00> : vector<8x16xf32>
    %206 = tpu.matmul %205, %195, %cst_76 {dimension_numbers = #tpu.dot_dimension_numbers<[1], [0], [0], [1], [0, 0, 1, 1], [], []>} : vector<8x16xf32>, vector<16x16xf32>, vector<8x16xf32> -> vector<8x16xf32>
    %207 = vector.extract_strided_slice %169 {offsets = [0, 32], sizes = [8, 16], strides = [1, 1]} : vector<8x128xf32> to vector<8x16xf32>
    %208 = vector.extract_strided_slice %175 {offsets = [0, 32], sizes = [16, 16], strides = [1, 1]} : vector<16x128xf32> to vector<16x16xf32>
    %209 = vector.extract_strided_slice %176 {offsets = [0, 32], sizes = [16, 16], strides = [1, 1]} : vector<16x128xf32> to vector<16x16xf32>
    %cst_77 = arith.constant dense<0.000000e+00> : vector<8x16xf32>
    %210 = tpu.matmul %207, %208, %cst_77 {dimension_numbers = #tpu.dot_dimension_numbers<[1], [1], [0], [0], [0, 0, 1, 0], [], []>} : vector<8x16xf32>, vector<16x16xf32>, vector<8x16xf32> -> vector<8x16xf32>
    %cst_78 = arith.constant dense<0xFF800000> : vector<8xf32>
    %211 = vector.multi_reduction <maximumf>, %210, %cst_78 [1] : vector<8x16xf32> to vector<8xf32>
    %212 = vector.shape_cast %211 : vector<8xf32> to vector<8x1xf32>
    %213 = vector.broadcast %212 : vector<8x1xf32> to vector<8x16xf32>
    %214 = arith.subf %210, %213 : vector<8x16xf32>
    %215 = math.exp %214 : vector<8x16xf32>
    %cst_79 = arith.constant dense<0.000000e+00> : vector<8xf32>
    %216 = vector.multi_reduction <add>, %215, %cst_79 [1] : vector<8x16xf32> to vector<8xf32>
    %217 = vector.shape_cast %216 : vector<8xf32> to vector<8x1xf32>
    %218 = vector.broadcast %217 : vector<8x1xf32> to vector<8x16xf32>
    %219 = arith.divf %215, %218 : vector<8x16xf32>
    %cst_80 = arith.constant dense<0.000000e+00> : vector<8x16xf32>
    %220 = tpu.matmul %219, %209, %cst_80 {dimension_numbers = #tpu.dot_dimension_numbers<[1], [0], [0], [1], [0, 0, 1, 1], [], []>} : vector<8x16xf32>, vector<16x16xf32>, vector<8x16xf32> -> vector<8x16xf32>
    %221 = vector.extract_strided_slice %169 {offsets = [0, 48], sizes = [8, 16], strides = [1, 1]} : vector<8x128xf32> to vector<8x16xf32>
    %222 = vector.extract_strided_slice %175 {offsets = [0, 48], sizes = [16, 16], strides = [1, 1]} : vector<16x128xf32> to vector<16x16xf32>
    %223 = vector.extract_strided_slice %176 {offsets = [0, 48], sizes = [16, 16], strides = [1, 1]} : vector<16x128xf32> to vector<16x16xf32>
    %cst_81 = arith.constant dense<0.000000e+00> : vector<8x16xf32>
    %224 = tpu.matmul %221, %222, %cst_81 {dimension_numbers = #tpu.dot_dimension_numbers<[1], [1], [0], [0], [0, 0, 1, 0], [], []>} : vector<8x16xf32>, vector<16x16xf32>, vector<8x16xf32> -> vector<8x16xf32>
    %cst_82 = arith.constant dense<0xFF800000> : vector<8xf32>
    %225 = vector.multi_reduction <maximumf>, %224, %cst_82 [1] : vector<8x16xf32> to vector<8xf32>
    %226 = vector.shape_cast %225 : vector<8xf32> to vector<8x1xf32>
    %227 = vector.broadcast %226 : vector<8x1xf32> to vector<8x16xf32>
    %228 = arith.subf %224, %227 : vector<8x16xf32>
    %229 = math.exp %228 : vector<8x16xf32>
    %cst_83 = arith.constant dense<0.000000e+00> : vector<8xf32>
    %230 = vector.multi_reduction <add>, %229, %cst_83 [1] : vector<8x16xf32> to vector<8xf32>
    %231 = vector.shape_cast %230 : vector<8xf32> to vector<8x1xf32>
    %232 = vector.broadcast %231 : vector<8x1xf32> to vector<8x16xf32>
    %233 = arith.divf %229, %232 : vector<8x16xf32>
    %cst_84 = arith.constant dense<0.000000e+00> : vector<8x16xf32>
    %234 = tpu.matmul %233, %223, %cst_84 {dimension_numbers = #tpu.dot_dimension_numbers<[1], [0], [0], [1], [0, 0, 1, 1], [], []>} : vector<8x16xf32>, vector<16x16xf32>, vector<8x16xf32> -> vector<8x16xf32>
    %235 = vector.extract_strided_slice %169 {offsets = [0, 64], sizes = [8, 16], strides = [1, 1]} : vector<8x128xf32> to vector<8x16xf32>
    %236 = vector.extract_strided_slice %175 {offsets = [0, 64], sizes = [16, 16], strides = [1, 1]} : vector<16x128xf32> to vector<16x16xf32>
    %237 = vector.extract_strided_slice %176 {offsets = [0, 64], sizes = [16, 16], strides = [1, 1]} : vector<16x128xf32> to vector<16x16xf32>
    %cst_85 = arith.constant dense<0.000000e+00> : vector<8x16xf32>
    %238 = tpu.matmul %235, %236, %cst_85 {dimension_numbers = #tpu.dot_dimension_numbers<[1], [1], [0], [0], [0, 0, 1, 0], [], []>} : vector<8x16xf32>, vector<16x16xf32>, vector<8x16xf32> -> vector<8x16xf32>
    %cst_86 = arith.constant dense<0xFF800000> : vector<8xf32>
    %239 = vector.multi_reduction <maximumf>, %238, %cst_86 [1] : vector<8x16xf32> to vector<8xf32>
    %240 = vector.shape_cast %239 : vector<8xf32> to vector<8x1xf32>
    %241 = vector.broadcast %240 : vector<8x1xf32> to vector<8x16xf32>
    %242 = arith.subf %238, %241 : vector<8x16xf32>
    %243 = math.exp %242 : vector<8x16xf32>
    %cst_87 = arith.constant dense<0.000000e+00> : vector<8xf32>
    %244 = vector.multi_reduction <add>, %243, %cst_87 [1] : vector<8x16xf32> to vector<8xf32>
    %245 = vector.shape_cast %244 : vector<8xf32> to vector<8x1xf32>
    %246 = vector.broadcast %245 : vector<8x1xf32> to vector<8x16xf32>
    %247 = arith.divf %243, %246 : vector<8x16xf32>
    %cst_88 = arith.constant dense<0.000000e+00> : vector<8x16xf32>
    %248 = tpu.matmul %247, %237, %cst_88 {dimension_numbers = #tpu.dot_dimension_numbers<[1], [0], [0], [1], [0, 0, 1, 1], [], []>} : vector<8x16xf32>, vector<16x16xf32>, vector<8x16xf32> -> vector<8x16xf32>
    %249 = vector.extract_strided_slice %169 {offsets = [0, 80], sizes = [8, 16], strides = [1, 1]} : vector<8x128xf32> to vector<8x16xf32>
    %250 = vector.extract_strided_slice %175 {offsets = [0, 80], sizes = [16, 16], strides = [1, 1]} : vector<16x128xf32> to vector<16x16xf32>
    %251 = vector.extract_strided_slice %176 {offsets = [0, 80], sizes = [16, 16], strides = [1, 1]} : vector<16x128xf32> to vector<16x16xf32>
    %cst_89 = arith.constant dense<0.000000e+00> : vector<8x16xf32>
    %252 = tpu.matmul %249, %250, %cst_89 {dimension_numbers = #tpu.dot_dimension_numbers<[1], [1], [0], [0], [0, 0, 1, 0], [], []>} : vector<8x16xf32>, vector<16x16xf32>, vector<8x16xf32> -> vector<8x16xf32>
    %cst_90 = arith.constant dense<0xFF800000> : vector<8xf32>
    %253 = vector.multi_reduction <maximumf>, %252, %cst_90 [1] : vector<8x16xf32> to vector<8xf32>
    %254 = vector.shape_cast %253 : vector<8xf32> to vector<8x1xf32>
    %255 = vector.broadcast %254 : vector<8x1xf32> to vector<8x16xf32>
    %256 = arith.subf %252, %255 : vector<8x16xf32>
    %257 = math.exp %256 : vector<8x16xf32>
    %cst_91 = arith.constant dense<0.000000e+00> : vector<8xf32>
    %258 = vector.multi_reduction <add>, %257, %cst_91 [1] : vector<8x16xf32> to vector<8xf32>
    %259 = vector.shape_cast %258 : vector<8xf32> to vector<8x1xf32>
    %260 = vector.broadcast %259 : vector<8x1xf32> to vector<8x16xf32>
    %261 = arith.divf %257, %260 : vector<8x16xf32>
    %cst_92 = arith.constant dense<0.000000e+00> : vector<8x16xf32>
    %262 = tpu.matmul %261, %251, %cst_92 {dimension_numbers = #tpu.dot_dimension_numbers<[1], [0], [0], [1], [0, 0, 1, 1], [], []>} : vector<8x16xf32>, vector<16x16xf32>, vector<8x16xf32> -> vector<8x16xf32>
    %263 = vector.extract_strided_slice %169 {offsets = [0, 96], sizes = [8, 16], strides = [1, 1]} : vector<8x128xf32> to vector<8x16xf32>
    %264 = vector.extract_strided_slice %175 {offsets = [0, 96], sizes = [16, 16], strides = [1, 1]} : vector<16x128xf32> to vector<16x16xf32>
    %265 = vector.extract_strided_slice %176 {offsets = [0, 96], sizes = [16, 16], strides = [1, 1]} : vector<16x128xf32> to vector<16x16xf32>
    %cst_93 = arith.constant dense<0.000000e+00> : vector<8x16xf32>
    %266 = tpu.matmul %263, %264, %cst_93 {dimension_numbers = #tpu.dot_dimension_numbers<[1], [1], [0], [0], [0, 0, 1, 0], [], []>} : vector<8x16xf32>, vector<16x16xf32>, vector<8x16xf32> -> vector<8x16xf32>
    %cst_94 = arith.constant dense<0xFF800000> : vector<8xf32>
    %267 = vector.multi_reduction <maximumf>, %266, %cst_94 [1] : vector<8x16xf32> to vector<8xf32>
    %268 = vector.shape_cast %267 : vector<8xf32> to vector<8x1xf32>
    %269 = vector.broadcast %268 : vector<8x1xf32> to vector<8x16xf32>
    %270 = arith.subf %266, %269 : vector<8x16xf32>
    %271 = math.exp %270 : vector<8x16xf32>
    %cst_95 = arith.constant dense<0.000000e+00> : vector<8xf32>
    %272 = vector.multi_reduction <add>, %271, %cst_95 [1] : vector<8x16xf32> to vector<8xf32>
    %273 = vector.shape_cast %272 : vector<8xf32> to vector<8x1xf32>
    %274 = vector.broadcast %273 : vector<8x1xf32> to vector<8x16xf32>
    %275 = arith.divf %271, %274 : vector<8x16xf32>
    %cst_96 = arith.constant dense<0.000000e+00> : vector<8x16xf32>
    %276 = tpu.matmul %275, %265, %cst_96 {dimension_numbers = #tpu.dot_dimension_numbers<[1], [0], [0], [1], [0, 0, 1, 1], [], []>} : vector<8x16xf32>, vector<16x16xf32>, vector<8x16xf32> -> vector<8x16xf32>
    %277 = vector.extract_strided_slice %169 {offsets = [0, 112], sizes = [8, 16], strides = [1, 1]} : vector<8x128xf32> to vector<8x16xf32>
    %278 = vector.extract_strided_slice %175 {offsets = [0, 112], sizes = [16, 16], strides = [1, 1]} : vector<16x128xf32> to vector<16x16xf32>
    %279 = vector.extract_strided_slice %176 {offsets = [0, 112], sizes = [16, 16], strides = [1, 1]} : vector<16x128xf32> to vector<16x16xf32>
    %cst_97 = arith.constant dense<0.000000e+00> : vector<8x16xf32>
    %280 = tpu.matmul %277, %278, %cst_97 {dimension_numbers = #tpu.dot_dimension_numbers<[1], [1], [0], [0], [0, 0, 1, 0], [], []>} : vector<8x16xf32>, vector<16x16xf32>, vector<8x16xf32> -> vector<8x16xf32>
    %cst_98 = arith.constant dense<0xFF800000> : vector<8xf32>
    %281 = vector.multi_reduction <maximumf>, %280, %cst_98 [1] : vector<8x16xf32> to vector<8xf32>
    %282 = vector.shape_cast %281 : vector<8xf32> to vector<8x1xf32>
    %283 = vector.broadcast %282 : vector<8x1xf32> to vector<8x16xf32>
    %284 = arith.subf %280, %283 : vector<8x16xf32>
    %285 = math.exp %284 : vector<8x16xf32>
    %cst_99 = arith.constant dense<0.000000e+00> : vector<8xf32>
    %286 = vector.multi_reduction <add>, %285, %cst_99 [1] : vector<8x16xf32> to vector<8xf32>
    %287 = vector.shape_cast %286 : vector<8xf32> to vector<8x1xf32>
    %288 = vector.broadcast %287 : vector<8x1xf32> to vector<8x16xf32>
    %289 = arith.divf %285, %288 : vector<8x16xf32>
    %cst_100 = arith.constant dense<0.000000e+00> : vector<8x16xf32>
    %290 = tpu.matmul %289, %279, %cst_100 {dimension_numbers = #tpu.dot_dimension_numbers<[1], [0], [0], [1], [0, 0, 1, 1], [], []>} : vector<8x16xf32>, vector<16x16xf32>, vector<8x16xf32> -> vector<8x16xf32>
    %291 = tpu.concatenate %192, %206, %220, %234, %248, %262, %276, %290 in 1 : vector<8x16xf32>, vector<8x16xf32>, vector<8x16xf32>, vector<8x16xf32>, vector<8x16xf32>, vector<8x16xf32>, vector<8x16xf32>, vector<8x16xf32> -> vector<8x128xf32>
    %cst_101 = arith.constant dense<0.000000e+00> : vector<8x32xf32>
    %292 = tpu.matmul %291, %177, %cst_101 {dimension_numbers = #tpu.dot_dimension_numbers<[1], [0], [0], [1], [0, 0, 1, 1], [], []>} : vector<8x128xf32>, vector<128x32xf32>, vector<8x32xf32> -> vector<8x32xf32>
    %293 = vector.broadcast %178 : vector<1x32xf32> to vector<8x32xf32>
    %294 = arith.addf %292, %293 : vector<8x32xf32>
    %295 = arith.addf %294, %164 : vector<8x32xf32>
    %cst_102 = arith.constant dense<0.000000e+00> : vector<8xf32>
    %296 = vector.multi_reduction <add>, %295, %cst_102 [1] : vector<8x32xf32> to vector<8xf32>
    %297 = vector.shape_cast %296 : vector<8xf32> to vector<8x1xf32>
    %cst_103 = arith.constant 3.125000e-02 : f32
    %298 = vector.broadcast %cst_103 : f32 to vector<8x1xf32>
    %299 = arith.mulf %297, %298 : vector<8x1xf32>
    %300 = vector.broadcast %299 : vector<8x1xf32> to vector<8x32xf32>
    %301 = arith.subf %295, %300 : vector<8x32xf32>
    %302 = arith.mulf %301, %301 : vector<8x32xf32>
    %cst_104 = arith.constant dense<0.000000e+00> : vector<8xf32>
    %303 = vector.multi_reduction <add>, %302, %cst_104 [1] : vector<8x32xf32> to vector<8xf32>
    %304 = vector.shape_cast %303 : vector<8xf32> to vector<8x1xf32>
    %cst_105 = arith.constant 3.125000e-02 : f32
    %305 = vector.broadcast %cst_105 : f32 to vector<8x1xf32>
    %306 = arith.mulf %304, %305 : vector<8x1xf32>
    %cst_106 = arith.constant 9.99999974E-6 : f32
    %307 = vector.broadcast %cst_106 : f32 to vector<8x1xf32>
    %308 = arith.addf %306, %307 : vector<8x1xf32>
    %309 = math.rsqrt %308 : vector<8x1xf32>
    %310 = vector.broadcast %309 : vector<8x1xf32> to vector<8x32xf32>
    %311 = arith.mulf %301, %310 : vector<8x32xf32>
    %312 = vector.broadcast %2 : vector<1x32xf32> to vector<8x32xf32>
    %313 = arith.mulf %311, %312 : vector<8x32xf32>
    %314 = vector.broadcast %3 : vector<1x32xf32> to vector<8x32xf32>
    %315 = arith.addf %313, %314 : vector<8x32xf32>
    %c0_107 = arith.constant 0 : index
    %c0_108 = arith.constant 0 : index
    %316 = vector.load %arg14[%c0_107, %c0_108] : memref<32x32xf32, #tpu.memory_space<vmem>>, vector<32x32xf32>
    %cst_109 = arith.constant dense<0.000000e+00> : vector<8x32xf32>
    %317 = tpu.matmul %315, %316, %cst_109 {dimension_numbers = #tpu.dot_dimension_numbers<[1], [0], [0], [1], [0, 0, 1, 1], [], []>} : vector<8x32xf32>, vector<32x32xf32>, vector<8x32xf32> -> vector<8x32xf32>
    %c0_110 = arith.constant 0 : index
    %c0_111 = arith.constant 0 : index
    %318 = vector.load %arg15[%c0_110, %c0_111] : memref<1x32xf32, #tpu.memory_space<vmem>>, vector<1x32xf32>
    %319 = vector.broadcast %318 : vector<1x32xf32> to vector<8x32xf32>
    %320 = arith.addf %317, %319 : vector<8x32xf32>
    %321 = arith.addf %320, %315 : vector<8x32xf32>
    %cst_112 = arith.constant dense<0.000000e+00> : vector<8xf32>
    %322 = vector.multi_reduction <add>, %321, %cst_112 [1] : vector<8x32xf32> to vector<8xf32>
    %323 = vector.shape_cast %322 : vector<8xf32> to vector<8x1xf32>
    %cst_113 = arith.constant 3.125000e-02 : f32
    %324 = vector.broadcast %cst_113 : f32 to vector<8x1xf32>
    %325 = arith.mulf %323, %324 : vector<8x1xf32>
    %326 = vector.broadcast %325 : vector<8x1xf32> to vector<8x32xf32>
    %327 = arith.subf %321, %326 : vector<8x32xf32>
    %328 = arith.mulf %327, %327 : vector<8x32xf32>
    %cst_114 = arith.constant dense<0.000000e+00> : vector<8xf32>
    %329 = vector.multi_reduction <add>, %328, %cst_114 [1] : vector<8x32xf32> to vector<8xf32>
    %330 = vector.shape_cast %329 : vector<8xf32> to vector<8x1xf32>
    %cst_115 = arith.constant 3.125000e-02 : f32
    %331 = vector.broadcast %cst_115 : f32 to vector<8x1xf32>
    %332 = arith.mulf %330, %331 : vector<8x1xf32>
    %cst_116 = arith.constant 9.99999974E-6 : f32
    %333 = vector.broadcast %cst_116 : f32 to vector<8x1xf32>
    %334 = arith.addf %332, %333 : vector<8x1xf32>
    %335 = math.rsqrt %334 : vector<8x1xf32>
    %336 = vector.broadcast %335 : vector<8x1xf32> to vector<8x32xf32>
    %337 = arith.mulf %327, %336 : vector<8x32xf32>
    %338 = vector.broadcast %2 : vector<1x32xf32> to vector<8x32xf32>
    %339 = arith.mulf %337, %338 : vector<8x32xf32>
    %340 = vector.broadcast %3 : vector<1x32xf32> to vector<8x32xf32>
    %341 = arith.addf %339, %340 : vector<8x32xf32>
    %c0_117 = arith.constant 0 : index
    %c0_118 = arith.constant 0 : index
    %342 = vector.load %arg16[%c0_117, %c0_118] : memref<8x32xf32, #tpu.memory_space<vmem>>, vector<8x32xf32>
    tpu.vector_store %arg16[%c0_117, %c0_118], %341 {strides = array<i32>} : memref<8x32xf32, #tpu.memory_space<vmem>>, vector<8x32xf32>,
    return
  }
}

</mosaic_0001>

<llo_original>
// kernel: tpu_custom_call.1
$region0: #{tpu_custom_call.1}
  #allocation0 [shape = 'u32[]', space=smem, size = 0x4, offset = 0x4, fixed_abs, tag = 'smem constant byte address 0x4 - core index']
  #allocation1 [shape = 'u32[144,128]{1,0:T(1,128)}', space=vmem, size = 0x12000, scoped, tag = 'internal scratch']
  %s0 = inlined_call_operand.vmem [shape: f32[8,32], index: 0, kind: input, shape index: {}]
  %s1 = inlined_call_operand.vmem [shape: f32[16,32], index: 1, kind: input, shape index: {}]
  %s2 = inlined_call_operand.vmem [shape: f32[32,384], index: 2, kind: input, shape index: {}]
  %s3 = inlined_call_operand.vmem [shape: f32[1,384], index: 3, kind: input, shape index: {}]
  %s4 = inlined_call_operand.vmem [shape: f32[128,32], index: 4, kind: input, shape index: {}]
  %s5 = inlined_call_operand.vmem [shape: f32[1,32], index: 5, kind: input, shape index: {}]
  %s6 = inlined_call_operand.vmem [shape: f32[32,128], index: 6, kind: input, shape index: {}]
  %s7 = inlined_call_operand.vmem [shape: f32[1,128], index: 7, kind: input, shape index: {}]
  %s8 = inlined_call_operand.vmem [shape: f32[32,256], index: 8, kind: input, shape index: {}]
  %s9 = inlined_call_operand.vmem [shape: f32[1,256], index: 9, kind: input, shape index: {}]
  %s10 = inlined_call_operand.vmem [shape: f32[128,32], index: 10, kind: input, shape index: {}]
  %s11 = inlined_call_operand.vmem [shape: f32[1,32], index: 11, kind: input, shape index: {}]
  %s12 = inlined_call_operand.vmem [shape: f32[1,32], index: 12, kind: input, shape index: {}]
  %s13 = inlined_call_operand.vmem [shape: f32[1,32], index: 13, kind: input, shape index: {}]
  %s14 = inlined_call_operand.vmem [shape: f32[32,32], index: 14, kind: input, shape index: {}]
  %s15 = inlined_call_operand.vmem [shape: f32[1,32], index: 15, kind: input, shape index: {}]
  %s16 = inlined_call_operand.hbm [shape: f32[8,32], index: 16, kind: output, shape index: {}]
  %s17 = sld [smem:[#allocation0]]
  $region74: #{tpu_custom_call.1} parent=0
    _
  %s19 = ssub.s32 1, %s17
  %s20 = scalar_select 0, %s19, %s17
  $region1: #{tpu_custom_call.1} parent=0
    #allocation2 [shape = 'u8[4096]{0}', space=vmem, size = 0x1000, scoped, tag = 'output window, operand 0, single buffered']
    #allocation3 [shape = 's32[1]{0}', space=sflag, size = 0x4, scoped, tag = 'scoped memory for tpu_custom_call.1']
    %21 = vsyncpa [#allocation3], 0
    // Predicated region
    $region2: #{tpu_custom_call.1} parent=1 // pred_check
      _
    $region3: #{tpu_custom_call.1} parent=1 // pred_check_branch
      %23 = sbr.rel (0) target = $region5
    $region4: #{tpu_custom_call.1} parent=1 // pred_region
      _
    $region5: #{tpu_custom_call.1} parent=1 // pred_fallthru
      _
    // Predicated region
    $region6: #{tpu_custom_call.1} parent=1 // pred_check
      _
    $region7: #{tpu_custom_call.1} parent=1 // pred_check_branch
      %25 = sbr.rel (0) target = $region9
    $region8: #{tpu_custom_call.1} parent=1 // pred_region
      _
    $region9: #{tpu_custom_call.1} parent=1 // pred_fallthru
      _
    // Predicated region
    $region10: #{tpu_custom_call.1} parent=1 // pred_check
      _
    $region11: #{tpu_custom_call.1} parent=1 // pred_check_branch
      %27 = sbr.rel (0) target = $region13
    $region12: #{tpu_custom_call.1} parent=1 // pred_region
      _
    $region13: #{tpu_custom_call.1} parent=1 // pred_fallthru
      _
    // Predicated region
    $region14: #{tpu_custom_call.1} parent=1 // pred_check
      _
    $region15: #{tpu_custom_call.1} parent=1 // pred_check_branch
      %29 = sbr.rel (0) target = $region17
    $region16: #{tpu_custom_call.1} parent=1 // pred_region
      _
    $region17: #{tpu_custom_call.1} parent=1 // pred_fallthru
      _
    // Predicated region
    $region18: #{tpu_custom_call.1} parent=1 // pred_check
      _
    $region19: #{tpu_custom_call.1} parent=1 // pred_check_branch
      %31 = sbr.rel (0) target = $region21
    $region20: #{tpu_custom_call.1} parent=1 // pred_region
      _
    $region21: #{tpu_custom_call.1} parent=1 // pred_fallthru
      _
    // Predicated region
    $region22: #{tpu_custom_call.1} parent=1 // pred_check
      _
    $region23: #{tpu_custom_call.1} parent=1 // pred_check_branch
      %33 = sbr.rel (0) target = $region25
    $region24: #{tpu_custom_call.1} parent=1 // pred_region
      _
    $region25: #{tpu_custom_call.1} parent=1 // pred_fallthru
      _
    // Predicated region
    $region26: #{tpu_custom_call.1} parent=1 // pred_check
      _
    $region27: #{tpu_custom_call.1} parent=1 // pred_check_branch
      %35 = sbr.rel (0) target = $region29
    $region28: #{tpu_custom_call.1} parent=1 // pred_region
      _
    $region29: #{tpu_custom_call.1} parent=1 // pred_fallthru
      _
    // Predicated region
    $region30: #{tpu_custom_call.1} parent=1 // pred_check
      _
    $region31: #{tpu_custom_call.1} parent=1 // pred_check_branch
      %37 = sbr.rel (0) target = $region33
    $region32: #{tpu_custom_call.1} parent=1 // pred_region
      _
    $region33: #{tpu_custom_call.1} parent=1 // pred_fallthru
      _
    // Predicated region
    $region34: #{tpu_custom_call.1} parent=1 // pred_check
      _
    $region35: #{tpu_custom_call.1} parent=1 // pred_check_branch
      %39 = sbr.rel (0) target = $region37
    $region36: #{tpu_custom_call.1} parent=1 // pred_region
      _
    $region37: #{tpu_custom_call.1} parent=1 // pred_fallthru
      _
    // Predicated region
    $region38: #{tpu_custom_call.1} parent=1 // pred_check
      _
    $region39: #{tpu_custom_call.1} parent=1 // pred_check_branch
      %41 = sbr.rel (0) target = $region41
    $region40: #{tpu_custom_call.1} parent=1 // pred_region
      _
    $region41: #{tpu_custom_call.1} parent=1 // pred_fallthru
      _
    // Predicated region
    $region42: #{tpu_custom_call.1} parent=1 // pred_check
      _
    $region43: #{tpu_custom_call.1} parent=1 // pred_check_branch
      %43 = sbr.rel (0) target = $region45
    $region44: #{tpu_custom_call.1} parent=1 // pred_region
      _
    $region45: #{tpu_custom_call.1} parent=1 // pred_fallthru
      _
    // Predicated region
    $region46: #{tpu_custom_call.1} parent=1 // pred_check
      _
    $region47: #{tpu_custom_call.1} parent=1 // pred_check_branch
      %45 = sbr.rel (0) target = $region49
    $region48: #{tpu_custom_call.1} parent=1 // pred_region
      _
    $region49: #{tpu_custom_call.1} parent=1 // pred_fallthru
      _
    // Predicated region
    $region50: #{tpu_custom_call.1} parent=1 // pred_check
      _
    $region51: #{tpu_custom_call.1} parent=1 // pred_check_branch
      %47 = sbr.rel (0) target = $region53
    $region52: #{tpu_custom_call.1} parent=1 // pred_region
      _
    $region53: #{tpu_custom_call.1} parent=1 // pred_fallthru
      _
    // Predicated region
    $region54: #{tpu_custom_call.1} parent=1 // pred_check
      _
    $region55: #{tpu_custom_call.1} parent=1 // pred_check_branch
      %49 = sbr.rel (0) target = $region57
    $region56: #{tpu_custom_call.1} parent=1 // pred_region
      _
    $region57: #{tpu_custom_call.1} parent=1 // pred_fallthru
      _
    // Predicated region
    $region58: #{tpu_custom_call.1} parent=1 // pred_check
      _
    $region59: #{tpu_custom_call.1} parent=1 // pred_check_branch
      %51 = sbr.rel (0) target = $region61
    $region60: #{tpu_custom_call.1} parent=1 // pred_region
      _
    $region61: #{tpu_custom_call.1} parent=1 // pred_fallthru
      _
    // Predicated region
    $region62: #{tpu_custom_call.1} parent=1 // pred_check
      _
    $region63: #{tpu_custom_call.1} parent=1 // pred_check_branch
      %53 = sbr.rel (0) target = $region65
    $region64: #{tpu_custom_call.1} parent=1 // pred_region
      _
    $region65: #{tpu_custom_call.1} parent=1 // pred_fallthru
      _
    %v54 = vld [vmem:[%s0] sm:$0xff]
    %v55 = vld [vmem:[%s1] sm:$0xff]
    %v56 = vld [vmem:[%s1 + $0x8] sm:$0xff]
    %v57 = vld [vmem:[%s12] sm:$0x1]
    %v58 = vld [vmem:[%s13] sm:$0x1]
    %v59 = vlaneseq
    %v60 = vshrl.u32 %v59, 7
    %v61 = vlaneseq
    %v62 = vand.u32 %v61, 127
    %vm63 = vcmp.ge.s32.totalorder %v60, %v62
    %v64 = vsel %vm63, 0.0, -1e+30
    %v65 = vld [vmem:[%s2] sm:$0xff]
    %v66 = vld [vmem:[%s2 + $0x8] sm:$0xff]
    %v67 = vld [vmem:[%s2 + $0x10] sm:$0xff]
    %v68 = vld [vmem:[%s2 + $0x18] sm:$0xff]
    %v69 = vld [vmem:[%s2 + $0x20] sm:$0xff]
    %v70 = vld [vmem:[%s2 + $0x28] sm:$0xff]
    %v71 = vld [vmem:[%s2 + $0x30] sm:$0xff]
    %v72 = vld [vmem:[%s2 + $0x38] sm:$0xff]
    %v73 = vld [vmem:[%s2 + $0x40] sm:$0xff]
    %v74 = vld [vmem:[%s2 + $0x48] sm:$0xff]
    %v75 = vld [vmem:[%s2 + $0x50] sm:$0xff]
    %v76 = vld [vmem:[%s2 + $0x58] sm:$0xff]
    %v77 = vld [vmem:[%s3] sm:$0x7]
    %v79 = vlaneseq
    %v80 = vshrl.u32 %v79, 7
    %v81 = vsub.s32 0, %v80
    %v82 = vrot.slane %v77, %v81
    %v83 = vlaneseq
    %v84 = vshrl.u32 %v83, 7
    %v85 = vsub.s32 1, %v84
    %v86 = vrot.slane %v77, %v85
    %v87 = vlaneseq
    %v88 = vshrl.u32 %v87, 7
    %v89 = vsub.s32 2, %v88
    %v90 = vrot.slane %v77, %v89
    %vm94 = vcmask 261120
    %v96 = vsel %vm94, %v54, 0
    %98 = vmatprep.subr.mxu0 %v66
    %99 = vmatpush1.msra.mxu0 %v65
    %100 = vmatprep.subr.mxu0 %v69
    %101 = vmatpush1.msra.mxu0 %v68
    %102 = vmatprep.subr.mxu0 %v72
    %103 = vmatpush1.msra.mxu0 %v71
    %104 = vmatprep.subr.mxu0 %v75
    %105 = vmatpush1.msra.mxu0 %v74
    %106 = vmatprep.subr.mxu0 0.0
    %107 = vmatpush1.msra.mxu0 0.0
    %108 = vmatprep.subr.mxu0 0.0
    %109 = vmatpush1.msra.mxu0 0.0
    %110 = vmatprep.subr.mxu0 0.0
    %111 = vmatpush1.msra.mxu0 0.0
    %112 = vmatprep.subr.mxu0 0.0
    %113 = vmatpush1.msra.mxu0 0.0
    %114 = vmatprep.subr.mxu0 0.0
    %115 = vmatpush1.msra.mxu0 0.0
    %116 = vmatprep.subr.mxu0 0.0
    %117 = vmatpush1.msra.mxu0 0.0
    %118 = vmatprep.subr.mxu0 0.0
    %119 = vmatpush1.msra.mxu0 0.0
    %120 = vmatprep.subr.mxu0 0.0
    %121 = vmatpush1.msra.mxu0 0.0
    %122 = vmatprep.subr.mxu0 0.0
    %123 = vmatpush1.msra.mxu0 0.0
    %124 = vmatprep.subr.mxu0 0.0
    %125 = vmatpush1.msra.mxu0 0.0
    %126 = vmatprep.subr.mxu0 0.0
    %127 = vmatpush1.msra.mxu0 0.0
    %128 = vmatprep.subr.mxu0 0.0
    %129 = vmatpush1.msra.mxu0 0.0
    %130 = vmatprep.subr.mxu0 0.0
    %131 = vmatpush1.msra.mxu0 0.0
    %132 = vmatprep.subr.mxu0 0.0
    %133 = vmatpush1.msra.mxu0 0.0
    %134 = vmatprep.subr.mxu0 0.0
    %135 = vmatpush1.msra.mxu0 0.0
    %136 = vmatprep.subr.mxu0 0.0
    %137 = vmatpush1.msra.mxu0 0.0
    %138 = vmatprep.subr.mxu0 0.0
    %139 = vmatpush1.msra.mxu0 0.0
    %140 = vmatprep.subr.mxu0 0.0
    %141 = vmatpush1.msra.mxu0 0.0
    %142 = vmatprep.subr.mxu0 0.0
    %143 = vmatpush1.msra.mxu0 0.0
    %144 = vmatprep.subr.mxu0 0.0
    %145 = vmatpush1.msra.mxu0 0.0
    %146 = vmatprep.subr.mxu0 0.0
    %147 = vmatpush1.msra.mxu0 0.0
    %148 = vmatprep.subr.mxu0 0.0
    %149 = vmatpush1.msra.mxu0 0.0
    %150 = vmatprep.subr.mxu0 0.0
    %151 = vmatpush1.msra.mxu0 0.0
    %152 = vmatprep.subr.mxu0 0.0
    %153 = vmatpush1.msra.mxu0 0.0
    %154 = vmatprep.subr.mxu0 0.0
    %155 = vmatpush1.msra.mxu0 0.0
    %156 = vmatprep.subr.mxu0 0.0
    %157 = vmatpush1.msra.mxu0 0.0
    %158 = vmatprep.subr.mxu0 0.0
    %159 = vmatpush1.msra.mxu0 0.0
    %160 = vmatprep.subr.mxu0 0.0
    %161 = vmatpush1.msra.mxu0 0.0
    %162 = vmatprep.mubr.f32.mxu0 0.0
    %163 = vmatmul.mubr.f32.gmra.mrb[0].mxu0 %v96
    %v164 = vpop.f32.mrb[0].mxu0
    %v165 = vadd.f32 %v82, %v164
    %v166 = vpop.f32.mrb[0].mxu0
    %v167 = vadd.f32 %v86, %v166
    %168 = vdwg.mxu0
    %169 = vmatprep.subr.mxu0 0.0
    %170 = vmatpush1.msra.mxu0 %v67
    %171 = vmatprep.subr.mxu0 0.0
    %172 = vmatpush1.msra.mxu0 %v70
    %173 = vmatprep.subr.mxu0 0.0
    %174 = vmatpush1.msra.mxu0 %v73
    %175 = vmatprep.subr.mxu0 0.0
    %176 = vmatpush1.msra.mxu0 %v76
    %177 = vmatprep.subr.mxu0 0.0
    %178 = vmatpush1.msra.mxu0 0.0
    %179 = vmatprep.subr.mxu0 0.0
    %180 = vmatpush1.msra.mxu0 0.0
    %181 = vmatprep.subr.mxu0 0.0
    %182 = vmatpush1.msra.mxu0 0.0
    %183 = vmatprep.subr.mxu0 0.0
    %184 = vmatpush1.msra.mxu0 0.0
    %185 = vmatprep.subr.mxu0 0.0
    %186 = vmatpush1.msra.mxu0 0.0
    %187 = vmatprep.subr.mxu0 0.0
    %188 = vmatpush1.msra.mxu0 0.0
    %189 = vmatprep.subr.mxu0 0.0
    %190 = vmatpush1.msra.mxu0 0.0
    %191 = vmatprep.subr.mxu0 0.0
    %192 = vmatpush1.msra.mxu0 0.0
    %193 = vmatprep.subr.mxu0 0.0
    %194 = vmatpush1.msra.mxu0 0.0
    %195 = vmatprep.subr.mxu0 0.0
    %196 = vmatpush1.msra.mxu0 0.0
    %197 = vmatprep.subr.mxu0 0.0
    %198 = vmatpush1.msra.mxu0 0.0
    %199 = vmatprep.subr.mxu0 0.0
    %200 = vmatpush1.msra.mxu0 0.0
    %201 = vmatprep.subr.mxu0 0.0
    %202 = vmatpush1.msra.mxu0 0.0
    %203 = vmatprep.subr.mxu0 0.0
    %204 = vmatpush1.msra.mxu0 0.0
    %205 = vmatprep.subr.mxu0 0.0
    %206 = vmatpush1.msra.mxu0 0.0
    %207 = vmatprep.subr.mxu0 0.0
    %208 = vmatpush1.msra.mxu0 0.0
    %209 = vmatprep.subr.mxu0 0.0
    %210 = vmatpush1.msra.mxu0 0.0
    %211 = vmatprep.subr.mxu0 0.0
    %212 = vmatpush1.msra.mxu0 0.0
    %213 = vmatprep.subr.mxu0 0.0
    %214 = vmatpush1.msra.mxu0 0.0
    %215 = vmatprep.subr.mxu0 0.0
    %216 = vmatpush1.msra.mxu0 0.0
    %217 = vmatprep.subr.mxu0 0.0
    %218 = vmatpush1.msra.mxu0 0.0
    %219 = vmatprep.subr.mxu0 0.0
    %220 = vmatpush1.msra.mxu0 0.0
    %221 = vmatprep.subr.mxu0 0.0
    %222 = vmatpush1.msra.mxu0 0.0
    %223 = vmatprep.subr.mxu0 0.0
    %224 = vmatpush1.msra.mxu0 0.0
    %225 = vmatprep.subr.mxu0 0.0
    %226 = vmatpush1.msra.mxu0 0.0
    %227 = vmatprep.subr.mxu0 0.0
    %228 = vmatpush1.msra.mxu0 0.0
    %229 = vmatprep.subr.mxu0 0.0
    %230 = vmatpush1.msra.mxu0 0.0
    %231 = vmatprep.subr.mxu0 0.0
    %232 = vmatpush1.msra.mxu0 0.0
    %233 = vmatprep.mubr.f32.mxu0 0.0
    %234 = vmatmul.mubr.f32.gmra.mrb[0].mxu0 %v96
    %v235 = vpop.f32.mrb[0].mxu0
    %v236 = vadd.f32 %v90, %v235
    %v237 = vpop.f32.mrb[0].mxu0
    %238 = vdwg.mxu0
    %v239 = vld [vmem:[%s4] sm:$0xff]
    %v240 = vld [vmem:[%s4 + $0x8] sm:$0xff]
    %v241 = vld [vmem:[%s4 + $0x10] sm:$0xff]
    %v242 = vld [vmem:[%s4 + $0x18] sm:$0xff]
    %v243 = vld [vmem:[%s4 + $0x20] sm:$0xff]
    %v244 = vld [vmem:[%s4 + $0x28] sm:$0xff]
    %v245 = vld [vmem:[%s4 + $0x30] sm:$0xff]
    %v246 = vld [vmem:[%s4 + $0x38] sm:$0xff]
    %v247 = vld [vmem:[%s4 + $0x40] sm:$0xff]
    %v248 = vld [vmem:[%s4 + $0x48] sm:$0xff]
    %v249 = vld [vmem:[%s4 + $0x50] sm:$0xff]
    %v250 = vld [vmem:[%s4 + $0x58] sm:$0xff]
    %v251 = vld [vmem:[%s4 + $0x60] sm:$0xff]
    %v252 = vld [vmem:[%s4 + $0x68] sm:$0xff]
    %v253 = vld [vmem:[%s4 + $0x70] sm:$0xff]
    %v254 = vld [vmem:[%s4 + $0x78] sm:$0xff]
    %v255 = vld [vmem:[%s5] sm:$0x1]
    %vm256 = vcmask 130048
    %v258 = vsel %vm256, %v165, 0
    %v261 = vsel %vm256, %v167, 0
    %263 = vmatprep.subr.mxu0 0.0
    %264 = vmatpush1.xpose.msra.mxu0 %v261
    %265 = vmatprep.subr.mxu0 0.0
    %266 = vmatpush1.xpose.msra.mxu0 0.0
    %267 = vmatprep.subr.mxu0 0.0
    %268 = vmatpush1.xpose.msra.mxu0 0.0
    %269 = vmatprep.subr.mxu0 0.0
    %270 = vmatpush1.xpose.msra.mxu0 0.0
    %271 = vmatprep.subr.mxu0 0.0
    %272 = vmatpush1.xpose.msra.mxu0 0.0
    %273 = vmatprep.subr.mxu0 0.0
    %274 = vmatpush1.xpose.msra.mxu0 0.0
    %275 = vmatprep.subr.mxu0 0.0
    %276 = vmatpush1.xpose.msra.mxu0 0.0
    %277 = vmatprep.subr.mxu0 0.0
    %278 = vmatpush1.xpose.msra.mxu0 0.0
    %279 = vmatprep.subr.mxu0 0.0
    %280 = vmatpush1.xpose.msra.mxu0 0.0
    %281 = vmatprep.subr.mxu0 0.0
    %282 = vmatpush1.xpose.msra.mxu0 0.0
    %283 = vmatprep.subr.mxu0 0.0
    %284 = vmatpush1.xpose.msra.mxu0 0.0
    %285 = vmatprep.subr.mxu0 0.0
    %286 = vmatpush1.xpose.msra.mxu0 0.0
    %287 = vmatprep.subr.mxu0 0.0
    %288 = vmatpush1.xpose.msra.mxu0 0.0
    %289 = vmatprep.subr.mxu0 0.0
    %290 = vmatpush1.xpose.msra.mxu0 0.0
    %291 = vmatprep.subr.mxu0 0.0
    %292 = vmatpush1.xpose.msra.mxu0 0.0
    %293 = vmatprep.subr.mxu0 0.0
    %294 = vmatpush1.xpose.msra.mxu0 0.0
    %295 = vmatprep.subr.mxu0 0.0
    %296 = vmatpush1.xpose.msra.mxu0 0.0
    %297 = vmatprep.subr.mxu0 0.0
    %298 = vmatpush1.xpose.msra.mxu0 0.0
    %299 = vmatprep.subr.mxu0 0.0
    %300 = vmatpush1.xpose.msra.mxu0 0.0
    %301 = vmatprep.subr.mxu0 0.0
    %302 = vmatpush1.xpose.msra.mxu0 0.0
    %303 = vmatprep.subr.mxu0 0.0
    %304 = vmatpush1.xpose.msra.mxu0 0.0
    %305 = vmatprep.subr.mxu0 0.0
    %306 = vmatpush1.xpose.msra.mxu0 0.0
    %307 = vmatprep.subr.mxu0 0.0
    %308 = vmatpush1.xpose.msra.mxu0 0.0
    %309 = vmatprep.subr.mxu0 0.0
    %310 = vmatpush1.xpose.msra.mxu0 0.0
    %311 = vmatprep.subr.mxu0 0.0
    %312 = vmatpush1.xpose.msra.mxu0 0.0
    %313 = vmatprep.subr.mxu0 0.0
    %314 = vmatpush1.xpose.msra.mxu0 0.0
    %315 = vmatprep.subr.mxu0 0.0
    %316 = vmatpush1.xpose.msra.mxu0 0.0
    %317 = vmatprep.subr.mxu0 0.0
    %318 = vmatpush1.xpose.msra.mxu0 0.0
    %319 = vmatprep.subr.mxu0 0.0
    %320 = vmatpush1.xpose.msra.mxu0 0.0
    %321 = vmatprep.subr.mxu0 0.0
    %322 = vmatpush1.xpose.msra.mxu0 0.0
    %323 = vmatprep.subr.mxu0 0.0
    %324 = vmatpush1.xpose.msra.mxu0 0.0
    %325 = vmatprep.subr.mxu0 0.0
    %326 = vmatpush1.xpose.msra.mxu0 0.0
    %327 = vmatprep.mubr.f32.mxu0 0.0
    %328 = vmatmul.mubr.f32.gmra.mrb[0].mxu0 %v258
    %v329 = vpop.f32.mrb[0].mxu0
    %v330 = vadd.f32 %v64, %v329
    %v331 = vpop.f32.mrb[0].mxu0
    %332 = vdwg.mxu0
    %vm333 = vcmask 64512
    %v334 = vsel %vm333, %v330, -inf
    %335 = vmax.xlane.f32.xlu0 %v334
    %v336 = vpop.xlane.xlu0 %335
    %v337 = vsub.f32 %v330, %v336
    %v338 = vmul.f32 %v337, 1.442695
    %v339 = vpow.pop %v338
    %v340 = vsel %vm333, %v339, 0.0
    %341 = vadd.xlane.f32.xlu0 %v340
    %v342 = vpop.xlane.xlu0 %341
    %v343 = vrcp.pop %v342
    %v344 = vmul.f32 %v339, %v343
    %v346 = vsel %vm333, %v344, 0
    %348 = vmatprep.subr.mxu0 0.0
    %349 = vmatpush1.msra.mxu0 %v236
    %350 = vmatprep.subr.mxu0 0.0
    %351 = vmatpush1.msra.mxu0 0.0
    %352 = vmatprep.subr.mxu0 0.0
    %353 = vmatpush1.msra.mxu0 0.0
    %354 = vmatprep.subr.mxu0 0.0
    %355 = vmatpush1.msra.mxu0 0.0
    %356 = vmatprep.subr.mxu0 0.0
    %357 = vmatpush1.msra.mxu0 0.0
    %358 = vmatprep.subr.mxu0 0.0
    %359 = vmatpush1.msra.mxu0 0.0
    %360 = vmatprep.subr.mxu0 0.0
    %361 = vmatpush1.msra.mxu0 0.0
    %362 = vmatprep.subr.mxu0 0.0
    %363 = vmatpush1.msra.mxu0 0.0
    %364 = vmatprep.subr.mxu0 0.0
    %365 = vmatpush1.msra.mxu0 0.0
    %366 = vmatprep.subr.mxu0 0.0
    %367 = vmatpush1.msra.mxu0 0.0
    %368 = vmatprep.subr.mxu0 0.0
    %369 = vmatpush1.msra.mxu0 0.0
    %370 = vmatprep.subr.mxu0 0.0
    %371 = vmatpush1.msra.mxu0 0.0
    %372 = vmatprep.subr.mxu0 0.0
    %373 = vmatpush1.msra.mxu0 0.0
    %374 = vmatprep.subr.mxu0 0.0
    %375 = vmatpush1.msra.mxu0 0.0
    %376 = vmatprep.subr.mxu0 0.0
    %377 = vmatpush1.msra.mxu0 0.0
    %378 = vmatprep.subr.mxu0 0.0
    %379 = vmatpush1.msra.mxu0 0.0
    %380 = vmatprep.subr.mxu0 0.0
    %381 = vmatpush1.msra.mxu0 0.0
    %382 = vmatprep.subr.mxu0 0.0
    %383 = vmatpush1.msra.mxu0 0.0
    %384 = vmatprep.subr.mxu0 0.0
    %385 = vmatpush1.msra.mxu0 0.0
    %386 = vmatprep.subr.mxu0 0.0
    %387 = vmatpush1.msra.mxu0 0.0
    %388 = vmatprep.subr.mxu0 0.0
    %389 = vmatpush1.msra.mxu0 0.0
    %390 = vmatprep.subr.mxu0 0.0
    %391 = vmatpush1.msra.mxu0 0.0
    %392 = vmatprep.subr.mxu0 0.0
    %393 = vmatpush1.msra.mxu0 0.0
    %394 = vmatprep.subr.mxu0 0.0
    %395 = vmatpush1.msra.mxu0 0.0
    %396 = vmatprep.subr.mxu0 0.0
    %397 = vmatpush1.msra.mxu0 0.0
    %398 = vmatprep.subr.mxu0 0.0
    %399 = vmatpush1.msra.mxu0 0.0
    %400 = vmatprep.subr.mxu0 0.0
    %401 = vmatpush1.msra.mxu0 0.0
    %402 = vmatprep.subr.mxu0 0.0
    %403 = vmatpush1.msra.mxu0 0.0
    %404 = vmatprep.subr.mxu0 0.0
    %405 = vmatpush1.msra.mxu0 0.0
    %406 = vmatprep.subr.mxu0 0.0
    %407 = vmatpush1.msra.mxu0 0.0
    %408 = vmatprep.subr.mxu0 0.0
    %409 = vmatpush1.msra.mxu0 0.0
    %410 = vmatprep.subr.mxu0 0.0
    %411 = vmatpush1.msra.mxu0 0.0
    %412 = vmatprep.mubr.f32.mxu0 0.0
    %413 = vmatmul.mubr.f32.gmra.mrb[0].mxu0 %v346
    %v414 = vpop.f32.mrb[0].mxu0
    %v415 = vadd.f32 0.0, %v414
    %v416 = vpop.f32.mrb[0].mxu0
    %417 = vdwg.mxu0
    %418 = vrot.lane.b32.xlu0 %v165, 112
    %v419 = vpop.permute.xlu0 %418
    %420 = vrot.lane.b32.xlu0 %v167, 112
    %v421 = vpop.permute.xlu0 %420
    %v422 = vsel %vm256, %v419, 0
    %v424 = vsel %vm256, %v421, 0
    %426 = vmatprep.subr.mxu0 0.0
    %427 = vmatpush1.xpose.msra.mxu0 %v424
    %428 = vmatprep.subr.mxu0 0.0
    %429 = vmatpush1.xpose.msra.mxu0 0.0
    %430 = vmatprep.subr.mxu0 0.0
    %431 = vmatpush1.xpose.msra.mxu0 0.0
    %432 = vmatprep.subr.mxu0 0.0
    %433 = vmatpush1.xpose.msra.mxu0 0.0
    %434 = vmatprep.subr.mxu0 0.0
    %435 = vmatpush1.xpose.msra.mxu0 0.0
    %436 = vmatprep.subr.mxu0 0.0
    %437 = vmatpush1.xpose.msra.mxu0 0.0
    %438 = vmatprep.subr.mxu0 0.0
    %439 = vmatpush1.xpose.msra.mxu0 0.0
    %440 = vmatprep.subr.mxu0 0.0
    %441 = vmatpush1.xpose.msra.mxu0 0.0
    %442 = vmatprep.subr.mxu0 0.0
    %443 = vmatpush1.xpose.msra.mxu0 0.0
    %444 = vmatprep.subr.mxu0 0.0
    %445 = vmatpush1.xpose.msra.mxu0 0.0
    %446 = vmatprep.subr.mxu0 0.0
    %447 = vmatpush1.xpose.msra.mxu0 0.0
    %448 = vmatprep.subr.mxu0 0.0
    %449 = vmatpush1.xpose.msra.mxu0 0.0
    %450 = vmatprep.subr.mxu0 0.0
    %451 = vmatpush1.xpose.msra.mxu0 0.0
    %452 = vmatprep.subr.mxu0 0.0
    %453 = vmatpush1.xpose.msra.mxu0 0.0
    %454 = vmatprep.subr.mxu0 0.0
    %455 = vmatpush1.xpose.msra.mxu0 0.0
    %456 = vmatprep.subr.mxu0 0.0
    %457 = vmatpush1.xpose.msra.mxu0 0.0
    %458 = vmatprep.subr.mxu0 0.0
    %459 = vmatpush1.xpose.msra.mxu0 0.0
    %460 = vmatprep.subr.mxu0 0.0
    %461 = vmatpush1.xpose.msra.mxu0 0.0
    %462 = vmatprep.subr.mxu0 0.0
    %463 = vmatpush1.xpose.msra.mxu0 0.0
    %464 = vmatprep.subr.mxu0 0.0
    %465 = vmatpush1.xpose.msra.mxu0 0.0
    %466 = vmatprep.subr.mxu0 0.0
    %467 = vmatpush1.xpose.msra.mxu0 0.0
    %468 = vmatprep.subr.mxu0 0.0
    %469 = vmatpush1.xpose.msra.mxu0 0.0
    %470 = vmatprep.subr.mxu0 0.0
    %471 = vmatpush1.xpose.msra.mxu0 0.0
    %472 = vmatprep.subr.mxu0 0.0
    %473 = vmatpush1.xpose.msra.mxu0 0.0
    %474 = vmatprep.subr.mxu0 0.0
    %475 = vmatpush1.xpose.msra.mxu0 0.0
    %476 = vmatprep.subr.mxu0 0.0
    %477 = vmatpush1.xpose.msra.mxu0 0.0
    %478 = vmatprep.subr.mxu0 0.0
    %479 = vmatpush1.xpose.msra.mxu0 0.0
    %480 = vmatprep.subr.mxu0 0.0
    %481 = vmatpush1.xpose.msra.mxu0 0.0
    %482 = vmatprep.subr.mxu0 0.0
    %483 = vmatpush1.xpose.msra.mxu0 0.0
    %484 = vmatprep.subr.mxu0 0.0
    %485 = vmatpush1.xpose.msra.mxu0 0.0
    %486 = vmatprep.subr.mxu0 0.0
    %487 = vmatpush1.xpose.msra.mxu0 0.0
    %488 = vmatprep.subr.mxu0 0.0
    %489 = vmatpush1.xpose.msra.mxu0 0.0
    %490 = vmatprep.mubr.f32.mxu0 0.0
    %491 = vmatmul.mubr.f32.gmra.mrb[0].mxu0 %v422
    %v492 = vpop.f32.mrb[0].mxu0
    %v493 = vadd.f32 %v64, %v492
    %v494 = vpop.f32.mrb[0].mxu0
    %495 = vdwg.mxu0
    %v496 = vsel %vm333, %v493, -inf
    %497 = vmax.xlane.f32.xlu0 %v496
    %v498 = vpop.xlane.xlu0 %497
    %v499 = vsub.f32 %v493, %v498
    %v500 = vmul.f32 %v499, 1.442695
    %v501 = vpow.pop %v500
    %v502 = vsel %vm333, %v501, 0.0
    %503 = vadd.xlane.f32.xlu0 %v502
    %v504 = vpop.xlane.xlu0 %503
    %v505 = vrcp.pop %v504
    %v506 = vmul.f32 %v501, %v505
    %508 = vrot.lane.b32.xlu0 %v236, 112
    %v509 = vpop.permute.xlu0 %508
    %v512 = vsel %vm333, %v506, 0
    %514 = vmatprep.subr.mxu0 0.0
    %515 = vmatpush1.msra.mxu0 %v509
    %516 = vmatprep.subr.mxu0 0.0
    %517 = vmatpush1.msra.mxu0 0.0
    %518 = vmatprep.subr.mxu0 0.0
    %519 = vmatpush1.msra.mxu0 0.0
    %520 = vmatprep.subr.mxu0 0.0
    %521 = vmatpush1.msra.mxu0 0.0
    %522 = vmatprep.subr.mxu0 0.0
    %523 = vmatpush1.msra.mxu0 0.0
    %524 = vmatprep.subr.mxu0 0.0
    %525 = vmatpush1.msra.mxu0 0.0
    %526 = vmatprep.subr.mxu0 0.0
    %527 = vmatpush1.msra.mxu0 0.0
    %528 = vmatprep.subr.mxu0 0.0
    %529 = vmatpush1.msra.mxu0 0.0
    %530 = vmatprep.subr.mxu0 0.0
    %531 = vmatpush1.msra.mxu0 0.0
    %532 = vmatprep.subr.mxu0 0.0
    %533 = vmatpush1.msra.mxu0 0.0
    %534 = vmatprep.subr.mxu0 0.0
    %535 = vmatpush1.msra.mxu0 0.0
    %536 = vmatprep.subr.mxu0 0.0
    %537 = vmatpush1.msra.mxu0 0.0
    %538 = vmatprep.subr.mxu0 0.0
    %539 = vmatpush1.msra.mxu0 0.0
    %540 = vmatprep.subr.mxu0 0.0
    %541 = vmatpush1.msra.mxu0 0.0
    %542 = vmatprep.subr.mxu0 0.0
    %543 = vmatpush1.msra.mxu0 0.0
    %544 = vmatprep.subr.mxu0 0.0
    %545 = vmatpush1.msra.mxu0 0.0
    %546 = vmatprep.subr.mxu0 0.0
    %547 = vmatpush1.msra.mxu0 0.0
    %548 = vmatprep.subr.mxu0 0.0
    %549 = vmatpush1.msra.mxu0 0.0
    %550 = vmatprep.subr.mxu0 0.0
    %551 = vmatpush1.msra.mxu0 0.0
    %552 = vmatprep.subr.mxu0 0.0
    %553 = vmatpush1.msra.mxu0 0.0
    %554 = vmatprep.subr.mxu0 0.0
    %555 = vmatpush1.msra.mxu0 0.0
    %556 = vmatprep.subr.mxu0 0.0
    %557 = vmatpush1.msra.mxu0 0.0
    %558 = vmatprep.subr.mxu0 0.0
    %559 = vmatpush1.msra.mxu0 0.0
    %560 = vmatprep.subr.mxu0 0.0
    %561 = vmatpush1.msra.mxu0 0.0
    %562 = vmatprep.subr.mxu0 0.0
    %563 = vmatpush1.msra.mxu0 0.0
    %564 = vmatprep.subr.mxu0 0.0
    %565 = vmatpush1.msra.mxu0 0.0
    %566 = vmatprep.subr.mxu0 0.0
    %567 = vmatpush1.msra.mxu0 0.0
    %568 = vmatprep.subr.mxu0 0.0
    %569 = vmatpush1.msra.mxu0 0.0
    %570 = vmatprep.subr.mxu0 0.0
    %571 = vmatpush1.msra.mxu0 0.0
    %572 = vmatprep.subr.mxu0 0.0
    %573 = vmatpush1.msra.mxu0 0.0
    %574 = vmatprep.subr.mxu0 0.0
    %575 = vmatpush1.msra.mxu0 0.0
    %576 = vmatprep.subr.mxu0 0.0
    %577 = vmatpush1.msra.mxu0 0.0
    %578 = vmatprep.mubr.f32.mxu0 0.0
    %579 = vmatmul.mubr.f32.gmra.mrb[0].mxu0 %v512
    %v580 = vpop.f32.mrb[0].mxu0
    %v581 = vadd.f32 0.0, %v580
    %v582 = vpop.f32.mrb[0].mxu0
    %583 = vdwg.mxu0
    %584 = vrot.lane.b32.xlu0 %v165, 96
    %v585 = vpop.permute.xlu0 %584
    %586 = vrot.lane.b32.xlu0 %v167, 96
    %v587 = vpop.permute.xlu0 %586
    %v588 = vsel %vm256, %v585, 0
    %v590 = vsel %vm256, %v587, 0
    %592 = vmatprep.subr.mxu0 0.0
    %593 = vmatpush1.xpose.msra.mxu0 %v590
    %594 = vmatprep.subr.mxu0 0.0
    %595 = vmatpush1.xpose.msra.mxu0 0.0
    %596 = vmatprep.subr.mxu0 0.0
    %597 = vmatpush1.xpose.msra.mxu0 0.0
    %598 = vmatprep.subr.mxu0 0.0
    %599 = vmatpush1.xpose.msra.mxu0 0.0
    %600 = vmatprep.subr.mxu0 0.0
    %601 = vmatpush1.xpose.msra.mxu0 0.0
    %602 = vmatprep.subr.mxu0 0.0
    %603 = vmatpush1.xpose.msra.mxu0 0.0
    %604 = vmatprep.subr.mxu0 0.0
    %605 = vmatpush1.xpose.msra.mxu0 0.0
    %606 = vmatprep.subr.mxu0 0.0
    %607 = vmatpush1.xpose.msra.mxu0 0.0
    %608 = vmatprep.subr.mxu0 0.0
    %609 = vmatpush1.xpose.msra.mxu0 0.0
    %610 = vmatprep.subr.mxu0 0.0
    %611 = vmatpush1.xpose.msra.mxu0 0.0
    %612 = vmatprep.subr.mxu0 0.0
    %613 = vmatpush1.xpose.msra.mxu0 0.0
    %614 = vmatprep.subr.mxu0 0.0
    %615 = vmatpush1.xpose.msra.mxu0 0.0
    %616 = vmatprep.subr.mxu0 0.0
    %617 = vmatpush1.xpose.msra.mxu0 0.0
    %618 = vmatprep.subr.mxu0 0.0
    %619 = vmatpush1.xpose.msra.mxu0 0.0
    %620 = vmatprep.subr.mxu0 0.0
    %621 = vmatpush1.xpose.msra.mxu0 0.0
    %622 = vmatprep.subr.mxu0 0.0
    %623 = vmatpush1.xpose.msra.mxu0 0.0
    %624 = vmatprep.subr.mxu0 0.0
    %625 = vmatpush1.xpose.msra.mxu0 0.0
    %626 = vmatprep.subr.mxu0 0.0
    %627 = vmatpush1.xpose.msra.mxu0 0.0
    %628 = vmatprep.subr.mxu0 0.0
    %629 = vmatpush1.xpose.msra.mxu0 0.0
    %630 = vmatprep.subr.mxu0 0.0
    %631 = vmatpush1.xpose.msra.mxu0 0.0
    %632 = vmatprep.subr.mxu0 0.0
    %633 = vmatpush1.xpose.msra.mxu0 0.0
    %634 = vmatprep.subr.mxu0 0.0
    %635 = vmatpush1.xpose.msra.mxu0 0.0
    %636 = vmatprep.subr.mxu0 0.0
    %637 = vmatpush1.xpose.msra.mxu0 0.0
    %638 = vmatprep.subr.mxu0 0.0
    %639 = vmatpush1.xpose.msra.mxu0 0.0
    %640 = vmatprep.subr.mxu0 0.0
    %641 = vmatpush1.xpose.msra.mxu0 0.0
    %642 = vmatprep.subr.mxu0 0.0
    %643 = vmatpush1.xpose.msra.mxu0 0.0
    %644 = vmatprep.subr.mxu0 0.0
    %645 = vmatpush1.xpose.msra.mxu0 0.0
    %646 = vmatprep.subr.mxu0 0.0
    %647 = vmatpush1.xpose.msra.mxu0 0.0
    %648 = vmatprep.subr.mxu0 0.0
    %649 = vmatpush1.xpose.msra.mxu0 0.0
    %650 = vmatprep.subr.mxu0 0.0
    %651 = vmatpush1.xpose.msra.mxu0 0.0
    %652 = vmatprep.subr.mxu0 0.0
    %653 = vmatpush1.xpose.msra.mxu0 0.0
    %654 = vmatprep.subr.mxu0 0.0
    %655 = vmatpush1.xpose.msra.mxu0 0.0
    %656 = vmatprep.mubr.f32.mxu0 0.0
    %657 = vmatmul.mubr.f32.gmra.mrb[0].mxu0 %v588
    %v658 = vpop.f32.mrb[0].mxu0
    %v659 = vadd.f32 %v64, %v658
    %v660 = vpop.f32.mrb[0].mxu0
    %661 = vdwg.mxu0
    %v662 = vsel %vm333, %v659, -inf
    %663 = vmax.xlane.f32.xlu0 %v662
    %v664 = vpop.xlane.xlu0 %663
    %v665 = vsub.f32 %v659, %v664
    %v666 = vmul.f32 %v665, 1.442695
    %v667 = vpow.pop %v666
    %v668 = vsel %vm333, %v667, 0.0
    %669 = vadd.xlane.f32.xlu0 %v668
    %v670 = vpop.xlane.xlu0 %669
    %v671 = vrcp.pop %v670
    %v672 = vmul.f32 %v667, %v671
    %673 = vrot.lane.b32.xlu0 %v236, 96
    %v674 = vpop.permute.xlu0 %673
    %v677 = vsel %vm333, %v672, 0
    %679 = vmatprep.subr.mxu0 0.0
    %680 = vmatpush1.msra.mxu0 %v674
    %681 = vmatprep.subr.mxu0 0.0
    %682 = vmatpush1.msra.mxu0 0.0
    %683 = vmatprep.subr.mxu0 0.0
    %684 = vmatpush1.msra.mxu0 0.0
    %685 = vmatprep.subr.mxu0 0.0
    %686 = vmatpush1.msra.mxu0 0.0
    %687 = vmatprep.subr.mxu0 0.0
    %688 = vmatpush1.msra.mxu0 0.0
    %689 = vmatprep.subr.mxu0 0.0
    %690 = vmatpush1.msra.mxu0 0.0
    %691 = vmatprep.subr.mxu0 0.0
    %692 = vmatpush1.msra.mxu0 0.0
    %693 = vmatprep.subr.mxu0 0.0
    %694 = vmatpush1.msra.mxu0 0.0
    %695 = vmatprep.subr.mxu0 0.0
    %696 = vmatpush1.msra.mxu0 0.0
    %697 = vmatprep.subr.mxu0 0.0
    %698 = vmatpush1.msra.mxu0 0.0
    %699 = vmatprep.subr.mxu0 0.0
    %700 = vmatpush1.msra.mxu0 0.0
    %701 = vmatprep.subr.mxu0 0.0
    %702 = vmatpush1.msra.mxu0 0.0
    %703 = vmatprep.subr.mxu0 0.0
    %704 = vmatpush1.msra.mxu0 0.0
    %705 = vmatprep.subr.mxu0 0.0
    %706 = vmatpush1.msra.mxu0 0.0
    %707 = vmatprep.subr.mxu0 0.0
    %708 = vmatpush1.msra.mxu0 0.0
    %709 = vmatprep.subr.mxu0 0.0
    %710 = vmatpush1.msra.mxu0 0.0
    %711 = vmatprep.subr.mxu0 0.0
    %712 = vmatpush1.msra.mxu0 0.0
    %713 = vmatprep.subr.mxu0 0.0
    %714 = vmatpush1.msra.mxu0 0.0
    %715 = vmatprep.subr.mxu0 0.0
    %716 = vmatpush1.msra.mxu0 0.0
    %717 = vmatprep.subr.mxu0 0.0
    %718 = vmatpush1.msra.mxu0 0.0
    %719 = vmatprep.subr.mxu0 0.0
    %720 = vmatpush1.msra.mxu0 0.0
    %721 = vmatprep.subr.mxu0 0.0
    %722 = vmatpush1.msra.mxu0 0.0
    %723 = vmatprep.subr.mxu0 0.0
    %724 = vmatpush1.msra.mxu0 0.0
    %725 = vmatprep.subr.mxu0 0.0
    %726 = vmatpush1.msra.mxu0 0.0
    %727 = vmatprep.subr.mxu0 0.0
    %728 = vmatpush1.msra.mxu0 0.0
    %729 = vmatprep.subr.mxu0 0.0
    %730 = vmatpush1.msra.mxu0 0.0
    %731 = vmatprep.subr.mxu0 0.0
    %732 = vmatpush1.msra.mxu0 0.0
    %733 = vmatprep.subr.mxu0 0.0
    %734 = vmatpush1.msra.mxu0 0.0
    %735 = vmatprep.subr.mxu0 0.0
    %736 = vmatpush1.msra.mxu0 0.0
    %737 = vmatprep.subr.mxu0 0.0
    %738 = vmatpush1.msra.mxu0 0.0
    %739 = vmatprep.subr.mxu0 0.0
    %740 = vmatpush1.msra.mxu0 0.0
    %741 = vmatprep.subr.mxu0 0.0
    %742 = vmatpush1.msra.mxu0 0.0
    %743 = vmatprep.mubr.f32.mxu0 0.0
    %744 = vmatmul.mubr.f32.gmra.mrb[0].mxu0 %v677
    %v745 = vpop.f32.mrb[0].mxu0
    %v746 = vadd.f32 0.0, %v745
    %v747 = vpop.f32.mrb[0].mxu0
    %748 = vdwg.mxu0
    %749 = vrot.lane.b32.xlu0 %v165, 80
    %v750 = vpop.permute.xlu0 %749
    %751 = vrot.lane.b32.xlu0 %v167, 80
    %v752 = vpop.permute.xlu0 %751
    %v753 = vsel %vm256, %v750, 0
    %v755 = vsel %vm256, %v752, 0
    %757 = vmatprep.subr.mxu0 0.0
    %758 = vmatpush1.xpose.msra.mxu0 %v755
    %759 = vmatprep.subr.mxu0 0.0
    %760 = vmatpush1.xpose.msra.mxu0 0.0
    %761 = vmatprep.subr.mxu0 0.0
    %762 = vmatpush1.xpose.msra.mxu0 0.0
    %763 = vmatprep.subr.mxu0 0.0
    %764 = vmatpush1.xpose.msra.mxu0 0.0
    %765 = vmatprep.subr.mxu0 0.0
    %766 = vmatpush1.xpose.msra.mxu0 0.0
    %767 = vmatprep.subr.mxu0 0.0
    %768 = vmatpush1.xpose.msra.mxu0 0.0
    %769 = vmatprep.subr.mxu0 0.0
    %770 = vmatpush1.xpose.msra.mxu0 0.0
    %771 = vmatprep.subr.mxu0 0.0
    %772 = vmatpush1.xpose.msra.mxu0 0.0
    %773 = vmatprep.subr.mxu0 0.0
    %774 = vmatpush1.xpose.msra.mxu0 0.0
    %775 = vmatprep.subr.mxu0 0.0
    %776 = vmatpush1.xpose.msra.mxu0 0.0
    %777 = vmatprep.subr.mxu0 0.0
    %778 = vmatpush1.xpose.msra.mxu0 0.0
    %779 = vmatprep.subr.mxu0 0.0
    %780 = vmatpush1.xpose.msra.mxu0 0.0
    %781 = vmatprep.subr.mxu0 0.0
    %782 = vmatpush1.xpose.msra.mxu0 0.0
    %783 = vmatprep.subr.mxu0 0.0
    %784 = vmatpush1.xpose.msra.mxu0 0.0
    %785 = vmatprep.subr.mxu0 0.0
    %786 = vmatpush1.xpose.msra.mxu0 0.0
    %787 = vmatprep.subr.mxu0 0.0
    %788 = vmatpush1.xpose.msra.mxu0 0.0
    %789 = vmatprep.subr.mxu0 0.0
    %790 = vmatpush1.xpose.msra.mxu0 0.0
    %791 = vmatprep.subr.mxu0 0.0
    %792 = vmatpush1.xpose.msra.mxu0 0.0
    %793 = vmatprep.subr.mxu0 0.0
    %794 = vmatpush1.xpose.msra.mxu0 0.0
    %795 = vmatprep.subr.mxu0 0.0
    %796 = vmatpush1.xpose.msra.mxu0 0.0
    %797 = vmatprep.subr.mxu0 0.0
    %798 = vmatpush1.xpose.msra.mxu0 0.0
    %799 = vmatprep.subr.mxu0 0.0
    %800 = vmatpush1.xpose.msra.mxu0 0.0
    %801 = vmatprep.subr.mxu0 0.0
    %802 = vmatpush1.xpose.msra.mxu0 0.0
    %803 = vmatprep.subr.mxu0 0.0
    %804 = vmatpush1.xpose.msra.mxu0 0.0
    %805 = vmatprep.subr.mxu0 0.0
    %806 = vmatpush1.xpose.msra.mxu0 0.0
    %807 = vmatprep.subr.mxu0 0.0
    %808 = vmatpush1.xpose.msra.mxu0 0.0
    %809 = vmatprep.subr.mxu0 0.0
    %810 = vmatpush1.xpose.msra.mxu0 0.0
    %811 = vmatprep.subr.mxu0 0.0
    %812 = vmatpush1.xpose.msra.mxu0 0.0
    %813 = vmatprep.subr.mxu0 0.0
    %814 = vmatpush1.xpose.msra.mxu0 0.0
    %815 = vmatprep.subr.mxu0 0.0
    %816 = vmatpush1.xpose.msra.mxu0 0.0
    %817 = vmatprep.subr.mxu0 0.0
    %818 = vmatpush1.xpose.msra.mxu0 0.0
    %819 = vmatprep.subr.mxu0 0.0
    %820 = vmatpush1.xpose.msra.mxu0 0.0
    %821 = vmatprep.mubr.f32.mxu0 0.0
    %822 = vmatmul.mubr.f32.gmra.mrb[0].mxu0 %v753
    %v823 = vpop.f32.mrb[0].mxu0
    %v824 = vadd.f32 %v64, %v823
    %v825 = vpop.f32.mrb[0].mxu0
    %826 = vdwg.mxu0
    %v827 = vsel %vm333, %v824, -inf
    %828 = vmax.xlane.f32.xlu0 %v827
    %v829 = vpop.xlane.xlu0 %828
    %v830 = vsub.f32 %v824, %v829
    %v831 = vmul.f32 %v830, 1.442695
    %v832 = vpow.pop %v831
    %v833 = vsel %vm333, %v832, 0.0
    %834 = vadd.xlane.f32.xlu0 %v833
    %v835 = vpop.xlane.xlu0 %834
    %v836 = vrcp.pop %v835
    %v837 = vmul.f32 %v832, %v836
    %838 = vrot.lane.b32.xlu0 %v236, 80
    %v839 = vpop.permute.xlu0 %838
    %v842 = vsel %vm333, %v837, 0
    %844 = vmatprep.subr.mxu0 0.0
    %845 = vmatpush1.msra.mxu0 %v839
    %846 = vmatprep.subr.mxu0 0.0
    %847 = vmatpush1.msra.mxu0 0.0
    %848 = vmatprep.subr.mxu0 0.0
    %849 = vmatpush1.msra.mxu0 0.0
    %850 = vmatprep.subr.mxu0 0.0
    %851 = vmatpush1.msra.mxu0 0.0
    %852 = vmatprep.subr.mxu0 0.0
    %853 = vmatpush1.msra.mxu0 0.0
    %854 = vmatprep.subr.mxu0 0.0
    %855 = vmatpush1.msra.mxu0 0.0
    %856 = vmatprep.subr.mxu0 0.0
    %857 = vmatpush1.msra.mxu0 0.0
    %858 = vmatprep.subr.mxu0 0.0
    %859 = vmatpush1.msra.mxu0 0.0
    %860 = vmatprep.subr.mxu0 0.0
    %861 = vmatpush1.msra.mxu0 0.0
    %862 = vmatprep.subr.mxu0 0.0
    %863 = vmatpush1.msra.mxu0 0.0
    %864 = vmatprep.subr.mxu0 0.0
    %865 = vmatpush1.msra.mxu0 0.0
    %866 = vmatprep.subr.mxu0 0.0
    %867 = vmatpush1.msra.mxu0 0.0
    %868 = vmatprep.subr.mxu0 0.0
    %869 = vmatpush1.msra.mxu0 0.0
    %870 = vmatprep.subr.mxu0 0.0
    %871 = vmatpush1.msra.mxu0 0.0
    %872 = vmatprep.subr.mxu0 0.0
    %873 = vmatpush1.msra.mxu0 0.0
    %874 = vmatprep.subr.mxu0 0.0
    %875 = vmatpush1.msra.mxu0 0.0
    %876 = vmatprep.subr.mxu0 0.0
    %877 = vmatpush1.msra.mxu0 0.0
    %878 = vmatprep.subr.mxu0 0.0
    %879 = vmatpush1.msra.mxu0 0.0
    %880 = vmatprep.subr.mxu0 0.0
    %881 = vmatpush1.msra.mxu0 0.0
    %882 = vmatprep.subr.mxu0 0.0
    %883 = vmatpush1.msra.mxu0 0.0
    %884 = vmatprep.subr.mxu0 0.0
    %885 = vmatpush1.msra.mxu0 0.0
    %886 = vmatprep.subr.mxu0 0.0
    %887 = vmatpush1.msra.mxu0 0.0
    %888 = vmatprep.subr.mxu0 0.0
    %889 = vmatpush1.msra.mxu0 0.0
    %890 = vmatprep.subr.mxu0 0.0
    %891 = vmatpush1.msra.mxu0 0.0
    %892 = vmatprep.subr.mxu0 0.0
    %893 = vmatpush1.msra.mxu0 0.0
    %894 = vmatprep.subr.mxu0 0.0
    %895 = vmatpush1.msra.mxu0 0.0
    %896 = vmatprep.subr.mxu0 0.0
    %897 = vmatpush1.msra.mxu0 0.0
    %898 = vmatprep.subr.mxu0 0.0
    %899 = vmatpush1.msra.mxu0 0.0
    %900 = vmatprep.subr.mxu0 0.0
    %901 = vmatpush1.msra.mxu0 0.0
    %902 = vmatprep.subr.mxu0 0.0
    %903 = vmatpush1.msra.mxu0 0.0
    %904 = vmatprep.subr.mxu0 0.0
    %905 = vmatpush1.msra.mxu0 0.0
    %906 = vmatprep.subr.mxu0 0.0
    %907 = vmatpush1.msra.mxu0 0.0
    %908 = vmatprep.mubr.f32.mxu0 0.0
    %909 = vmatmul.mubr.f32.gmra.mrb[0].mxu0 %v842
    %v910 = vpop.f32.mrb[0].mxu0
    %v911 = vadd.f32 0.0, %v910
    %v912 = vpop.f32.mrb[0].mxu0
    %913 = vdwg.mxu0
    %914 = vrot.lane.b32.xlu0 %v165, 64
    %v915 = vpop.permute.xlu0 %914
    %916 = vrot.lane.b32.xlu0 %v167, 64
    %v917 = vpop.permute.xlu0 %916
    %v918 = vsel %vm256, %v915, 0
    %v920 = vsel %vm256, %v917, 0
    %922 = vmatprep.subr.mxu0 0.0
    %923 = vmatpush1.xpose.msra.mxu0 %v920
    %924 = vmatprep.subr.mxu0 0.0
    %925 = vmatpush1.xpose.msra.mxu0 0.0
    %926 = vmatprep.subr.mxu0 0.0
    %927 = vmatpush1.xpose.msra.mxu0 0.0
    %928 = vmatprep.subr.mxu0 0.0
    %929 = vmatpush1.xpose.msra.mxu0 0.0
    %930 = vmatprep.subr.mxu0 0.0
    %931 = vmatpush1.xpose.msra.mxu0 0.0
    %932 = vmatprep.subr.mxu0 0.0
    %933 = vmatpush1.xpose.msra.mxu0 0.0
    %934 = vmatprep.subr.mxu0 0.0
    %935 = vmatpush1.xpose.msra.mxu0 0.0
    %936 = vmatprep.subr.mxu0 0.0
    %937 = vmatpush1.xpose.msra.mxu0 0.0
    %938 = vmatprep.subr.mxu0 0.0
    %939 = vmatpush1.xpose.msra.mxu0 0.0
    %940 = vmatprep.subr.mxu0 0.0
    %941 = vmatpush1.xpose.msra.mxu0 0.0
    %942 = vmatprep.subr.mxu0 0.0
    %943 = vmatpush1.xpose.msra.mxu0 0.0
    %944 = vmatprep.subr.mxu0 0.0
    %945 = vmatpush1.xpose.msra.mxu0 0.0
    %946 = vmatprep.subr.mxu0 0.0
    %947 = vmatpush1.xpose.msra.mxu0 0.0
    %948 = vmatprep.subr.mxu0 0.0
    %949 = vmatpush1.xpose.msra.mxu0 0.0
    %950 = vmatprep.subr.mxu0 0.0
    %951 = vmatpush1.xpose.msra.mxu0 0.0
    %952 = vmatprep.subr.mxu0 0.0
    %953 = vmatpush1.xpose.msra.mxu0 0.0
    %954 = vmatprep.subr.mxu0 0.0
    %955 = vmatpush1.xpose.msra.mxu0 0.0
    %956 = vmatprep.subr.mxu0 0.0
    %957 = vmatpush1.xpose.msra.mxu0 0.0
    %958 = vmatprep.subr.mxu0 0.0
    %959 = vmatpush1.xpose.msra.mxu0 0.0
    %960 = vmatprep.subr.mxu0 0.0
    %961 = vmatpush1.xpose.msra.mxu0 0.0
    %962 = vmatprep.subr.mxu0 0.0
    %963 = vmatpush1.xpose.msra.mxu0 0.0
    %964 = vmatprep.subr.mxu0 0.0
    %965 = vmatpush1.xpose.msra.mxu0 0.0
    %966 = vmatprep.subr.mxu0 0.0
    %967 = vmatpush1.xpose.msra.mxu0 0.0
    %968 = vmatprep.subr.mxu0 0.0
    %969 = vmatpush1.xpose.msra.mxu0 0.0
    %970 = vmatprep.subr.mxu0 0.0
    %971 = vmatpush1.xpose.msra.mxu0 0.0
    %972 = vmatprep.subr.mxu0 0.0
    %973 = vmatpush1.xpose.msra.mxu0 0.0
    %974 = vmatprep.subr.mxu0 0.0
    %975 = vmatpush1.xpose.msra.mxu0 0.0
    %976 = vmatprep.subr.mxu0 0.0
    %977 = vmatpush1.xpose.msra.mxu0 0.0
    %978 = vmatprep.subr.mxu0 0.0
    %979 = vmatpush1.xpose.msra.mxu0 0.0
    %980 = vmatprep.subr.mxu0 0.0
    %981 = vmatpush1.xpose.msra.mxu0 0.0
    %982 = vmatprep.subr.mxu0 0.0
    %983 = vmatpush1.xpose.msra.mxu0 0.0
    %984 = vmatprep.subr.mxu0 0.0
    %985 = vmatpush1.xpose.msra.mxu0 0.0
    %986 = vmatprep.mubr.f32.mxu0 0.0
    %987 = vmatmul.mubr.f32.gmra.mrb[0].mxu0 %v918
    %v988 = vpop.f32.mrb[0].mxu0
    %v989 = vadd.f32 %v64, %v988
    %v990 = vpop.f32.mrb[0].mxu0
    %991 = vdwg.mxu0
    %v992 = vsel %vm333, %v989, -inf
    %993 = vmax.xlane.f32.xlu0 %v992
    %v994 = vpop.xlane.xlu0 %993
    %v995 = vsub.f32 %v989, %v994
    %v996 = vmul.f32 %v995, 1.442695
    %v997 = vpow.pop %v996
    %v998 = vsel %vm333, %v997, 0.0
    %999 = vadd.xlane.f32.xlu0 %v998
    %v1000 = vpop.xlane.xlu0 %999
    %v1001 = vrcp.pop %v1000
    %v1002 = vmul.f32 %v997, %v1001
    %1003 = vrot.lane.b32.xlu0 %v236, 64
    %v1004 = vpop.permute.xlu0 %1003
    %v1007 = vsel %vm333, %v1002, 0
    %1009 = vmatprep.subr.mxu0 0.0
    %1010 = vmatpush1.msra.mxu0 %v1004
    %1011 = vmatprep.subr.mxu0 0.0
    %1012 = vmatpush1.msra.mxu0 0.0
    %1013 = vmatprep.subr.mxu0 0.0
    %1014 = vmatpush1.msra.mxu0 0.0
    %1015 = vmatprep.subr.mxu0 0.0
    %1016 = vmatpush1.msra.mxu0 0.0
    %1017 = vmatprep.subr.mxu0 0.0
    %1018 = vmatpush1.msra.mxu0 0.0
    %1019 = vmatprep.subr.mxu0 0.0
    %1020 = vmatpush1.msra.mxu0 0.0
    %1021 = vmatprep.subr.mxu0 0.0
    %1022 = vmatpush1.msra.mxu0 0.0
    %1023 = vmatprep.subr.mxu0 0.0
    %1024 = vmatpush1.msra.mxu0 0.0
    %1025 = vmatprep.subr.mxu0 0.0
    %1026 = vmatpush1.msra.mxu0 0.0
    %1027 = vmatprep.subr.mxu0 0.0
    %1028 = vmatpush1.msra.mxu0 0.0
    %1029 = vmatprep.subr.mxu0 0.0
    %1030 = vmatpush1.msra.mxu0 0.0
    %1031 = vmatprep.subr.mxu0 0.0
    %1032 = vmatpush1.msra.mxu0 0.0
    %1033 = vmatprep.subr.mxu0 0.0
    %1034 = vmatpush1.msra.mxu0 0.0
    %1035 = vmatprep.subr.mxu0 0.0
    %1036 = vmatpush1.msra.mxu0 0.0
    %1037 = vmatprep.subr.mxu0 0.0
    %1038 = vmatpush1.msra.mxu0 0.0
    %1039 = vmatprep.subr.mxu0 0.0
    %1040 = vmatpush1.msra.mxu0 0.0
    %1041 = vmatprep.subr.mxu0 0.0
    %1042 = vmatpush1.msra.mxu0 0.0
    %1043 = vmatprep.subr.mxu0 0.0
    %1044 = vmatpush1.msra.mxu0 0.0
    %1045 = vmatprep.subr.mxu0 0.0
    %1046 = vmatpush1.msra.mxu0 0.0
    %1047 = vmatprep.subr.mxu0 0.0
    %1048 = vmatpush1.msra.mxu0 0.0
    %1049 = vmatprep.subr.mxu0 0.0
    %1050 = vmatpush1.msra.mxu0 0.0
    %1051 = vmatprep.subr.mxu0 0.0
    %1052 = vmatpush1.msra.mxu0 0.0
    %1053 = vmatprep.subr.mxu0 0.0
    %1054 = vmatpush1.msra.mxu0 0.0
    %1055 = vmatprep.subr.mxu0 0.0
    %1056 = vmatpush1.msra.mxu0 0.0
    %1057 = vmatprep.subr.mxu0 0.0
    %1058 = vmatpush1.msra.mxu0 0.0
    %1059 = vmatprep.subr.mxu0 0.0
    %1060 = vmatpush1.msra.mxu0 0.0
    %1061 = vmatprep.subr.mxu0 0.0
    %1062 = vmatpush1.msra.mxu0 0.0
    %1063 = vmatprep.subr.mxu0 0.0
    %1064 = vmatpush1.msra.mxu0 0.0
    %1065 = vmatprep.subr.mxu0 0.0
    %1066 = vmatpush1.msra.mxu0 0.0
    %1067 = vmatprep.subr.mxu0 0.0
    %1068 = vmatpush1.msra.mxu0 0.0
    %1069 = vmatprep.subr.mxu0 0.0
    %1070 = vmatpush1.msra.mxu0 0.0
    %1071 = vmatprep.subr.mxu0 0.0
    %1072 = vmatpush1.msra.mxu0 0.0
    %1073 = vmatprep.mubr.f32.mxu0 0.0
    %1074 = vmatmul.mubr.f32.gmra.mrb[0].mxu0 %v1007
    %v1075 = vpop.f32.mrb[0].mxu0
    %v1076 = vadd.f32 0.0, %v1075
    %v1077 = vpop.f32.mrb[0].mxu0
    %1078 = vdwg.mxu0
    %1079 = vrot.lane.b32.xlu0 %v165, 48
    %v1080 = vpop.permute.xlu0 %1079
    %1081 = vrot.lane.b32.xlu0 %v167, 48
    %v1082 = vpop.permute.xlu0 %1081
    %v1083 = vsel %vm256, %v1080, 0
    %v1085 = vsel %vm256, %v1082, 0
    %1087 = vmatprep.subr.mxu0 0.0
    %1088 = vmatpush1.xpose.msra.mxu0 %v1085
    %1089 = vmatprep.subr.mxu0 0.0
    %1090 = vmatpush1.xpose.msra.mxu0 0.0
    %1091 = vmatprep.subr.mxu0 0.0
    %1092 = vmatpush1.xpose.msra.mxu0 0.0
    %1093 = vmatprep.subr.mxu0 0.0
    %1094 = vmatpush1.xpose.msra.mxu0 0.0
    %1095 = vmatprep.subr.mxu0 0.0
    %1096 = vmatpush1.xpose.msra.mxu0 0.0
    %1097 = vmatprep.subr.mxu0 0.0
    %1098 = vmatpush1.xpose.msra.mxu0 0.0
    %1099 = vmatprep.subr.mxu0 0.0
    %1100 = vmatpush1.xpose.msra.mxu0 0.0
    %1101 = vmatprep.subr.mxu0 0.0
    %1102 = vmatpush1.xpose.msra.mxu0 0.0
    %1103 = vmatprep.subr.mxu0 0.0
    %1104 = vmatpush1.xpose.msra.mxu0 0.0
    %1105 = vmatprep.subr.mxu0 0.0
    %1106 = vmatpush1.xpose.msra.mxu0 0.0
    %1107 = vmatprep.subr.mxu0 0.0
    %1108 = vmatpush1.xpose.msra.mxu0 0.0
    %1109 = vmatprep.subr.mxu0 0.0
    %1110 = vmatpush1.xpose.msra.mxu0 0.0
    %1111 = vmatprep.subr.mxu0 0.0
    %1112 = vmatpush1.xpose.msra.mxu0 0.0
    %1113 = vmatprep.subr.mxu0 0.0
    %1114 = vmatpush1.xpose.msra.mxu0 0.0
    %1115 = vmatprep.subr.mxu0 0.0
    %1116 = vmatpush1.xpose.msra.mxu0 0.0
    %1117 = vmatprep.subr.mxu0 0.0
    %1118 = vmatpush1.xpose.msra.mxu0 0.0
    %1119 = vmatprep.subr.mxu0 0.0
    %1120 = vmatpush1.xpose.msra.mxu0 0.0
    %1121 = vmatprep.subr.mxu0 0.0
    %1122 = vmatpush1.xpose.msra.mxu0 0.0
    %1123 = vmatprep.subr.mxu0 0.0
    %1124 = vmatpush1.xpose.msra.mxu0 0.0
    %1125 = vmatprep.subr.mxu0 0.0
    %1126 = vmatpush1.xpose.msra.mxu0 0.0
    %1127 = vmatprep.subr.mxu0 0.0
    %1128 = vmatpush1.xpose.msra.mxu0 0.0
    %1129 = vmatprep.subr.mxu0 0.0
    %1130 = vmatpush1.xpose.msra.mxu0 0.0
    %1131 = vmatprep.subr.mxu0 0.0
    %1132 = vmatpush1.xpose.msra.mxu0 0.0
    %1133 = vmatprep.subr.mxu0 0.0
    %1134 = vmatpush1.xpose.msra.mxu0 0.0
    %1135 = vmatprep.subr.mxu0 0.0
    %1136 = vmatpush1.xpose.msra.mxu0 0.0
    %1137 = vmatprep.subr.mxu0 0.0
    %1138 = vmatpush1.xpose.msra.mxu0 0.0
    %1139 = vmatprep.subr.mxu0 0.0
    %1140 = vmatpush1.xpose.msra.mxu0 0.0
    %1141 = vmatprep.subr.mxu0 0.0
    %1142 = vmatpush1.xpose.msra.mxu0 0.0
    %1143 = vmatprep.subr.mxu0 0.0
    %1144 = vmatpush1.xpose.msra.mxu0 0.0
    %1145 = vmatprep.subr.mxu0 0.0
    %1146 = vmatpush1.xpose.msra.mxu0 0.0
    %1147 = vmatprep.subr.mxu0 0.0
    %1148 = vmatpush1.xpose.msra.mxu0 0.0
    %1149 = vmatprep.subr.mxu0 0.0
    %1150 = vmatpush1.xpose.msra.mxu0 0.0
    %1151 = vmatprep.mubr.f32.mxu0 0.0
    %1152 = vmatmul.mubr.f32.gmra.mrb[0].mxu0 %v1083
    %v1153 = vpop.f32.mrb[0].mxu0
    %v1154 = vadd.f32 %v64, %v1153
    %v1155 = vpop.f32.mrb[0].mxu0
    %1156 = vdwg.mxu0
    %v1157 = vsel %vm333, %v1154, -inf
    %1158 = vmax.xlane.f32.xlu0 %v1157
    %v1159 = vpop.xlane.xlu0 %1158
    %v1160 = vsub.f32 %v1154, %v1159
    %v1161 = vmul.f32 %v1160, 1.442695
    %v1162 = vpow.pop %v1161
    %v1163 = vsel %vm333, %v1162, 0.0
    %1164 = vadd.xlane.f32.xlu0 %v1163
    %v1165 = vpop.xlane.xlu0 %1164
    %v1166 = vrcp.pop %v1165
    %v1167 = vmul.f32 %v1162, %v1166
    %1168 = vrot.lane.b32.xlu0 %v236, 48
    %v1169 = vpop.permute.xlu0 %1168
    %v1172 = vsel %vm333, %v1167, 0
    %1174 = vmatprep.subr.mxu0 0.0
    %1175 = vmatpush1.msra.mxu0 %v1169
    %1176 = vmatprep.subr.mxu0 0.0
    %1177 = vmatpush1.msra.mxu0 0.0
    %1178 = vmatprep.subr.mxu0 0.0
    %1179 = vmatpush1.msra.mxu0 0.0
    %1180 = vmatprep.subr.mxu0 0.0
    %1181 = vmatpush1.msra.mxu0 0.0
    %1182 = vmatprep.subr.mxu0 0.0
    %1183 = vmatpush1.msra.mxu0 0.0
    %1184 = vmatprep.subr.mxu0 0.0
    %1185 = vmatpush1.msra.mxu0 0.0
    %1186 = vmatprep.subr.mxu0 0.0
    %1187 = vmatpush1.msra.mxu0 0.0
    %1188 = vmatprep.subr.mxu0 0.0
    %1189 = vmatpush1.msra.mxu0 0.0
    %1190 = vmatprep.subr.mxu0 0.0
    %1191 = vmatpush1.msra.mxu0 0.0
    %1192 = vmatprep.subr.mxu0 0.0
    %1193 = vmatpush1.msra.mxu0 0.0
    %1194 = vmatprep.subr.mxu0 0.0
    %1195 = vmatpush1.msra.mxu0 0.0
    %1196 = vmatprep.subr.mxu0 0.0
    %1197 = vmatpush1.msra.mxu0 0.0
    %1198 = vmatprep.subr.mxu0 0.0
    %1199 = vmatpush1.msra.mxu0 0.0
    %1200 = vmatprep.subr.mxu0 0.0
    %1201 = vmatpush1.msra.mxu0 0.0
    %1202 = vmatprep.subr.mxu0 0.0
    %1203 = vmatpush1.msra.mxu0 0.0
    %1204 = vmatprep.subr.mxu0 0.0
    %1205 = vmatpush1.msra.mxu0 0.0
    %1206 = vmatprep.subr.mxu0 0.0
    %1207 = vmatpush1.msra.mxu0 0.0
    %1208 = vmatprep.subr.mxu0 0.0
    %1209 = vmatpush1.msra.mxu0 0.0
    %1210 = vmatprep.subr.mxu0 0.0
    %1211 = vmatpush1.msra.mxu0 0.0
    %1212 = vmatprep.subr.mxu0 0.0
    %1213 = vmatpush1.msra.mxu0 0.0
    %1214 = vmatprep.subr.mxu0 0.0
    %1215 = vmatpush1.msra.mxu0 0.0
    %1216 = vmatprep.subr.mxu0 0.0
    %1217 = vmatpush1.msra.mxu0 0.0
    %1218 = vmatprep.subr.mxu0 0.0
    %1219 = vmatpush1.msra.mxu0 0.0
    %1220 = vmatprep.subr.mxu0 0.0
    %1221 = vmatpush1.msra.mxu0 0.0
    %1222 = vmatprep.subr.mxu0 0.0
    %1223 = vmatpush1.msra.mxu0 0.0
    %1224 = vmatprep.subr.mxu0 0.0
    %1225 = vmatpush1.msra.mxu0 0.0
    %1226 = vmatprep.subr.mxu0 0.0
    %1227 = vmatpush1.msra.mxu0 0.0
    %1228 = vmatprep.subr.mxu0 0.0
    %1229 = vmatpush1.msra.mxu0 0.0
    %1230 = vmatprep.subr.mxu0 0.0
    %1231 = vmatpush1.msra.mxu0 0.0
    %1232 = vmatprep.subr.mxu0 0.0
    %1233 = vmatpush1.msra.mxu0 0.0
    %1234 = vmatprep.subr.mxu0 0.0
    %1235 = vmatpush1.msra.mxu0 0.0
    %1236 = vmatprep.subr.mxu0 0.0
    %1237 = vmatpush1.msra.mxu0 0.0
    %1238 = vmatprep.mubr.f32.mxu0 0.0
    %1239 = vmatmul.mubr.f32.gmra.mrb[0].mxu0 %v1172
    %v1240 = vpop.f32.mrb[0].mxu0
    %v1241 = vadd.f32 0.0, %v1240
    %v1242 = vpop.f32.mrb[0].mxu0
    %1243 = vdwg.mxu0
    %1244 = vrot.lane.b32.xlu0 %v165, 32
    %v1245 = vpop.permute.xlu0 %1244
    %1246 = vrot.lane.b32.xlu0 %v167, 32
    %v1247 = vpop.permute.xlu0 %1246
    %v1248 = vsel %vm256, %v1245, 0
    %v1250 = vsel %vm256, %v1247, 0
    %1252 = vmatprep.subr.mxu0 0.0
    %1253 = vmatpush1.xpose.msra.mxu0 %v1250
    %1254 = vmatprep.subr.mxu0 0.0
    %1255 = vmatpush1.xpose.msra.mxu0 0.0
    %1256 = vmatprep.subr.mxu0 0.0
    %1257 = vmatpush1.xpose.msra.mxu0 0.0
    %1258 = vmatprep.subr.mxu0 0.0
    %1259 = vmatpush1.xpose.msra.mxu0 0.0
    %1260 = vmatprep.subr.mxu0 0.0
    %1261 = vmatpush1.xpose.msra.mxu0 0.0
    %1262 = vmatprep.subr.mxu0 0.0
    %1263 = vmatpush1.xpose.msra.mxu0 0.0
    %1264 = vmatprep.subr.mxu0 0.0
    %1265 = vmatpush1.xpose.msra.mxu0 0.0
    %1266 = vmatprep.subr.mxu0 0.0
    %1267 = vmatpush1.xpose.msra.mxu0 0.0
    %1268 = vmatprep.subr.mxu0 0.0
    %1269 = vmatpush1.xpose.msra.mxu0 0.0
    %1270 = vmatprep.subr.mxu0 0.0
    %1271 = vmatpush1.xpose.msra.mxu0 0.0
    %1272 = vmatprep.subr.mxu0 0.0
    %1273 = vmatpush1.xpose.msra.mxu0 0.0
    %1274 = vmatprep.subr.mxu0 0.0
    %1275 = vmatpush1.xpose.msra.mxu0 0.0
    %1276 = vmatprep.subr.mxu0 0.0
    %1277 = vmatpush1.xpose.msra.mxu0 0.0
    %1278 = vmatprep.subr.mxu0 0.0
    %1279 = vmatpush1.xpose.msra.mxu0 0.0
    %1280 = vmatprep.subr.mxu0 0.0
    %1281 = vmatpush1.xpose.msra.mxu0 0.0
    %1282 = vmatprep.subr.mxu0 0.0
    %1283 = vmatpush1.xpose.msra.mxu0 0.0
    %1284 = vmatprep.subr.mxu0 0.0
    %1285 = vmatpush1.xpose.msra.mxu0 0.0
    %1286 = vmatprep.subr.mxu0 0.0
    %1287 = vmatpush1.xpose.msra.mxu0 0.0
    %1288 = vmatprep.subr.mxu0 0.0
    %1289 = vmatpush1.xpose.msra.mxu0 0.0
    %1290 = vmatprep.subr.mxu0 0.0
    %1291 = vmatpush1.xpose.msra.mxu0 0.0
    %1292 = vmatprep.subr.mxu0 0.0
    %1293 = vmatpush1.xpose.msra.mxu0 0.0
    %1294 = vmatprep.subr.mxu0 0.0
    %1295 = vmatpush1.xpose.msra.mxu0 0.0
    %1296 = vmatprep.subr.mxu0 0.0
    %1297 = vmatpush1.xpose.msra.mxu0 0.0
    %1298 = vmatprep.subr.mxu0 0.0
    %1299 = vmatpush1.xpose.msra.mxu0 0.0
    %1300 = vmatprep.subr.mxu0 0.0
    %1301 = vmatpush1.xpose.msra.mxu0 0.0
    %1302 = vmatprep.subr.mxu0 0.0
    %1303 = vmatpush1.xpose.msra.mxu0 0.0
    %1304 = vmatprep.subr.mxu0 0.0
    %1305 = vmatpush1.xpose.msra.mxu0 0.0
    %1306 = vmatprep.subr.mxu0 0.0
    %1307 = vmatpush1.xpose.msra.mxu0 0.0
    %1308 = vmatprep.subr.mxu0 0.0
    %1309 = vmatpush1.xpose.msra.mxu0 0.0
    %1310 = vmatprep.subr.mxu0 0.0
    %1311 = vmatpush1.xpose.msra.mxu0 0.0
    %1312 = vmatprep.subr.mxu0 0.0
    %1313 = vmatpush1.xpose.msra.mxu0 0.0
    %1314 = vmatprep.subr.mxu0 0.0
    %1315 = vmatpush1.xpose.msra.mxu0 0.0
    %1316 = vmatprep.mubr.f32.mxu0 0.0
    %1317 = vmatmul.mubr.f32.gmra.mrb[0].mxu0 %v1248
    %v1318 = vpop.f32.mrb[0].mxu0
    %v1319 = vadd.f32 %v64, %v1318
    %v1320 = vpop.f32.mrb[0].mxu0
    %1321 = vdwg.mxu0
    %v1322 = vsel %vm333, %v1319, -inf
    %1323 = vmax.xlane.f32.xlu0 %v1322
    %v1324 = vpop.xlane.xlu0 %1323
    %v1325 = vsub.f32 %v1319, %v1324
    %v1326 = vmul.f32 %v1325, 1.442695
    %v1327 = vpow.pop %v1326
    %v1328 = vsel %vm333, %v1327, 0.0
    %1329 = vadd.xlane.f32.xlu0 %v1328
    %v1330 = vpop.xlane.xlu0 %1329
    %v1331 = vrcp.pop %v1330
    %v1332 = vmul.f32 %v1327, %v1331
    %1333 = vrot.lane.b32.xlu0 %v236, 32
    %v1334 = vpop.permute.xlu0 %1333
    %v1337 = vsel %vm333, %v1332, 0
    %1339 = vmatprep.subr.mxu0 0.0
    %1340 = vmatpush1.msra.mxu0 %v1334
    %1341 = vmatprep.subr.mxu0 0.0
    %1342 = vmatpush1.msra.mxu0 0.0
    %1343 = vmatprep.subr.mxu0 0.0
    %1344 = vmatpush1.msra.mxu0 0.0
    %1345 = vmatprep.subr.mxu0 0.0
    %1346 = vmatpush1.msra.mxu0 0.0
    %1347 = vmatprep.subr.mxu0 0.0
    %1348 = vmatpush1.msra.mxu0 0.0
    %1349 = vmatprep.subr.mxu0 0.0
    %1350 = vmatpush1.msra.mxu0 0.0
    %1351 = vmatprep.subr.mxu0 0.0
    %1352 = vmatpush1.msra.mxu0 0.0
    %1353 = vmatprep.subr.mxu0 0.0
    %1354 = vmatpush1.msra.mxu0 0.0
    %1355 = vmatprep.subr.mxu0 0.0
    %1356 = vmatpush1.msra.mxu0 0.0
    %1357 = vmatprep.subr.mxu0 0.0
    %1358 = vmatpush1.msra.mxu0 0.0
    %1359 = vmatprep.subr.mxu0 0.0
    %1360 = vmatpush1.msra.mxu0 0.0
    %1361 = vmatprep.subr.mxu0 0.0
    %1362 = vmatpush1.msra.mxu0 0.0
    %1363 = vmatprep.subr.mxu0 0.0
    %1364 = vmatpush1.msra.mxu0 0.0
    %1365 = vmatprep.subr.mxu0 0.0
    %1366 = vmatpush1.msra.mxu0 0.0
    %1367 = vmatprep.subr.mxu0 0.0
    %1368 = vmatpush1.msra.mxu0 0.0
    %1369 = vmatprep.subr.mxu0 0.0
    %1370 = vmatpush1.msra.mxu0 0.0
    %1371 = vmatprep.subr.mxu0 0.0
    %1372 = vmatpush1.msra.mxu0 0.0
    %1373 = vmatprep.subr.mxu0 0.0
    %1374 = vmatpush1.msra.mxu0 0.0
    %1375 = vmatprep.subr.mxu0 0.0
    %1376 = vmatpush1.msra.mxu0 0.0
    %1377 = vmatprep.subr.mxu0 0.0
    %1378 = vmatpush1.msra.mxu0 0.0
    %1379 = vmatprep.subr.mxu0 0.0
    %1380 = vmatpush1.msra.mxu0 0.0
    %1381 = vmatprep.subr.mxu0 0.0
    %1382 = vmatpush1.msra.mxu0 0.0
    %1383 = vmatprep.subr.mxu0 0.0
    %1384 = vmatpush1.msra.mxu0 0.0
    %1385 = vmatprep.subr.mxu0 0.0
    %1386 = vmatpush1.msra.mxu0 0.0
    %1387 = vmatprep.subr.mxu0 0.0
    %1388 = vmatpush1.msra.mxu0 0.0
    %1389 = vmatprep.subr.mxu0 0.0
    %1390 = vmatpush1.msra.mxu0 0.0
    %1391 = vmatprep.subr.mxu0 0.0
    %1392 = vmatpush1.msra.mxu0 0.0
    %1393 = vmatprep.subr.mxu0 0.0
    %1394 = vmatpush1.msra.mxu0 0.0
    %1395 = vmatprep.subr.mxu0 0.0
    %1396 = vmatpush1.msra.mxu0 0.0
    %1397 = vmatprep.subr.mxu0 0.0
    %1398 = vmatpush1.msra.mxu0 0.0
    %1399 = vmatprep.subr.mxu0 0.0
    %1400 = vmatpush1.msra.mxu0 0.0
    %1401 = vmatprep.subr.mxu0 0.0
    %1402 = vmatpush1.msra.mxu0 0.0
    %1403 = vmatprep.mubr.f32.mxu0 0.0
    %1404 = vmatmul.mubr.f32.gmra.mrb[0].mxu0 %v1337
    %v1405 = vpop.f32.mrb[0].mxu0
    %v1406 = vadd.f32 0.0, %v1405
    %v1407 = vpop.f32.mrb[0].mxu0
    %1408 = vdwg.mxu0
    %1409 = vrot.lane.b32.xlu0 %v165, 16
    %v1410 = vpop.permute.xlu0 %1409
    %1411 = vrot.lane.b32.xlu0 %v167, 16
    %v1412 = vpop.permute.xlu0 %1411
    %v1413 = vsel %vm256, %v1410, 0
    %v1415 = vsel %vm256, %v1412, 0
    %1417 = vmatprep.subr.mxu0 0.0
    %1418 = vmatpush1.xpose.msra.mxu0 %v1415
    %1419 = vmatprep.subr.mxu0 0.0
    %1420 = vmatpush1.xpose.msra.mxu0 0.0
    %1421 = vmatprep.subr.mxu0 0.0
    %1422 = vmatpush1.xpose.msra.mxu0 0.0
    %1423 = vmatprep.subr.mxu0 0.0
    %1424 = vmatpush1.xpose.msra.mxu0 0.0
    %1425 = vmatprep.subr.mxu0 0.0
    %1426 = vmatpush1.xpose.msra.mxu0 0.0
    %1427 = vmatprep.subr.mxu0 0.0
    %1428 = vmatpush1.xpose.msra.mxu0 0.0
    %1429 = vmatprep.subr.mxu0 0.0
    %1430 = vmatpush1.xpose.msra.mxu0 0.0
    %1431 = vmatprep.subr.mxu0 0.0
    %1432 = vmatpush1.xpose.msra.mxu0 0.0
    %1433 = vmatprep.subr.mxu0 0.0
    %1434 = vmatpush1.xpose.msra.mxu0 0.0
    %1435 = vmatprep.subr.mxu0 0.0
    %1436 = vmatpush1.xpose.msra.mxu0 0.0
    %1437 = vmatprep.subr.mxu0 0.0
    %1438 = vmatpush1.xpose.msra.mxu0 0.0
    %1439 = vmatprep.subr.mxu0 0.0
    %1440 = vmatpush1.xpose.msra.mxu0 0.0
    %1441 = vmatprep.subr.mxu0 0.0
    %1442 = vmatpush1.xpose.msra.mxu0 0.0
    %1443 = vmatprep.subr.mxu0 0.0
    %1444 = vmatpush1.xpose.msra.mxu0 0.0
    %1445 = vmatprep.subr.mxu0 0.0
    %1446 = vmatpush1.xpose.msra.mxu0 0.0
    %1447 = vmatprep.subr.mxu0 0.0
    %1448 = vmatpush1.xpose.msra.mxu0 0.0
    %1449 = vmatprep.subr.mxu0 0.0
    %1450 = vmatpush1.xpose.msra.mxu0 0.0
    %1451 = vmatprep.subr.mxu0 0.0
    %1452 = vmatpush1.xpose.msra.mxu0 0.0
    %1453 = vmatprep.subr.mxu0 0.0
    %1454 = vmatpush1.xpose.msra.mxu0 0.0
    %1455 = vmatprep.subr.mxu0 0.0
    %1456 = vmatpush1.xpose.msra.mxu0 0.0
    %1457 = vmatprep.subr.mxu0 0.0
    %1458 = vmatpush1.xpose.msra.mxu0 0.0
    %1459 = vmatprep.subr.mxu0 0.0
    %1460 = vmatpush1.xpose.msra.mxu0 0.0
    %1461 = vmatprep.subr.mxu0 0.0
    %1462 = vmatpush1.xpose.msra.mxu0 0.0
    %1463 = vmatprep.subr.mxu0 0.0
    %1464 = vmatpush1.xpose.msra.mxu0 0.0
    %1465 = vmatprep.subr.mxu0 0.0
    %1466 = vmatpush1.xpose.msra.mxu0 0.0
    %1467 = vmatprep.subr.mxu0 0.0
    %1468 = vmatpush1.xpose.msra.mxu0 0.0
    %1469 = vmatprep.subr.mxu0 0.0
    %1470 = vmatpush1.xpose.msra.mxu0 0.0
    %1471 = vmatprep.subr.mxu0 0.0
    %1472 = vmatpush1.xpose.msra.mxu0 0.0
    %1473 = vmatprep.subr.mxu0 0.0
    %1474 = vmatpush1.xpose.msra.mxu0 0.0
    %1475 = vmatprep.subr.mxu0 0.0
    %1476 = vmatpush1.xpose.msra.mxu0 0.0
    %1477 = vmatprep.subr.mxu0 0.0
    %1478 = vmatpush1.xpose.msra.mxu0 0.0
    %1479 = vmatprep.subr.mxu0 0.0
    %1480 = vmatpush1.xpose.msra.mxu0 0.0
    %1481 = vmatprep.mubr.f32.mxu0 0.0
    %1482 = vmatmul.mubr.f32.gmra.mrb[0].mxu0 %v1413
    %v1483 = vpop.f32.mrb[0].mxu0
    %v1484 = vadd.f32 %v64, %v1483
    %v1485 = vpop.f32.mrb[0].mxu0
    %1486 = vdwg.mxu0
    %v1487 = vsel %vm333, %v1484, -inf
    %1488 = vmax.xlane.f32.xlu0 %v1487
    %v1489 = vpop.xlane.xlu0 %1488
    %v1490 = vsub.f32 %v1484, %v1489
    %v1491 = vmul.f32 %v1490, 1.442695
    %v1492 = vpow.pop %v1491
    %v1493 = vsel %vm333, %v1492, 0.0
    %1494 = vadd.xlane.f32.xlu0 %v1493
    %v1495 = vpop.xlane.xlu0 %1494
    %v1496 = vrcp.pop %v1495
    %v1497 = vmul.f32 %v1492, %v1496
    %1498 = vrot.lane.b32.xlu0 %v236, 16
    %v1499 = vpop.permute.xlu0 %1498
    %v1502 = vsel %vm333, %v1497, 0
    %1504 = vmatprep.subr.mxu0 0.0
    %1505 = vmatpush1.msra.mxu0 %v1499
    %1506 = vmatprep.subr.mxu0 0.0
    %1507 = vmatpush1.msra.mxu0 0.0
    %1508 = vmatprep.subr.mxu0 0.0
    %1509 = vmatpush1.msra.mxu0 0.0
    %1510 = vmatprep.subr.mxu0 0.0
    %1511 = vmatpush1.msra.mxu0 0.0
    %1512 = vmatprep.subr.mxu0 0.0
    %1513 = vmatpush1.msra.mxu0 0.0
    %1514 = vmatprep.subr.mxu0 0.0
    %1515 = vmatpush1.msra.mxu0 0.0
    %1516 = vmatprep.subr.mxu0 0.0
    %1517 = vmatpush1.msra.mxu0 0.0
    %1518 = vmatprep.subr.mxu0 0.0
    %1519 = vmatpush1.msra.mxu0 0.0
    %1520 = vmatprep.subr.mxu0 0.0
    %1521 = vmatpush1.msra.mxu0 0.0
    %1522 = vmatprep.subr.mxu0 0.0
    %1523 = vmatpush1.msra.mxu0 0.0
    %1524 = vmatprep.subr.mxu0 0.0
    %1525 = vmatpush1.msra.mxu0 0.0
    %1526 = vmatprep.subr.mxu0 0.0
    %1527 = vmatpush1.msra.mxu0 0.0
    %1528 = vmatprep.subr.mxu0 0.0
    %1529 = vmatpush1.msra.mxu0 0.0
    %1530 = vmatprep.subr.mxu0 0.0
    %1531 = vmatpush1.msra.mxu0 0.0
    %1532 = vmatprep.subr.mxu0 0.0
    %1533 = vmatpush1.msra.mxu0 0.0
    %1534 = vmatprep.subr.mxu0 0.0
    %1535 = vmatpush1.msra.mxu0 0.0
    %1536 = vmatprep.subr.mxu0 0.0
    %1537 = vmatpush1.msra.mxu0 0.0
    %1538 = vmatprep.subr.mxu0 0.0
    %1539 = vmatpush1.msra.mxu0 0.0
    %1540 = vmatprep.subr.mxu0 0.0
    %1541 = vmatpush1.msra.mxu0 0.0
    %1542 = vmatprep.subr.mxu0 0.0
    %1543 = vmatpush1.msra.mxu0 0.0
    %1544 = vmatprep.subr.mxu0 0.0
    %1545 = vmatpush1.msra.mxu0 0.0
    %1546 = vmatprep.subr.mxu0 0.0
    %1547 = vmatpush1.msra.mxu0 0.0
    %1548 = vmatprep.subr.mxu0 0.0
    %1549 = vmatpush1.msra.mxu0 0.0
    %1550 = vmatprep.subr.mxu0 0.0
    %1551 = vmatpush1.msra.mxu0 0.0
    %1552 = vmatprep.subr.mxu0 0.0
    %1553 = vmatpush1.msra.mxu0 0.0
    %1554 = vmatprep.subr.mxu0 0.0
    %1555 = vmatpush1.msra.mxu0 0.0
    %1556 = vmatprep.subr.mxu0 0.0
    %1557 = vmatpush1.msra.mxu0 0.0
    %1558 = vmatprep.subr.mxu0 0.0
    %1559 = vmatpush1.msra.mxu0 0.0
    %1560 = vmatprep.subr.mxu0 0.0
    %1561 = vmatpush1.msra.mxu0 0.0
    %1562 = vmatprep.subr.mxu0 0.0
    %1563 = vmatpush1.msra.mxu0 0.0
    %1564 = vmatprep.subr.mxu0 0.0
    %1565 = vmatpush1.msra.mxu0 0.0
    %1566 = vmatprep.subr.mxu0 0.0
    %1567 = vmatpush1.msra.mxu0 0.0
    %1568 = vmatprep.mubr.f32.mxu0 0.0
    %1569 = vmatmul.mubr.f32.gmra.mrb[0].mxu0 %v1502
    %v1570 = vpop.f32.mrb[0].mxu0
    %v1571 = vadd.f32 0.0, %v1570
    %v1572 = vpop.f32.mrb[0].mxu0
    %1573 = vdwg.mxu0
    %1575 = vrot.lane.b32.xlu0 %v581, 16
    %v1576 = vpop.permute.xlu0 %1575
    %1579 = vrot.lane.b32.xlu0 %v746, 32
    %v1580 = vpop.permute.xlu0 %1579
    %1583 = vrot.lane.b32.xlu0 %v911, 48
    %v1584 = vpop.permute.xlu0 %1583
    %1587 = vrot.lane.b32.xlu0 %v1076, 64
    %v1588 = vpop.permute.xlu0 %1587
    %1591 = vrot.lane.b32.xlu0 %v1241, 80
    %v1592 = vpop.permute.xlu0 %1591
    %1595 = vrot.lane.b32.xlu0 %v1406, 96
    %v1596 = vpop.permute.xlu0 %1595
    %1599 = vrot.lane.b32.xlu0 %v1571, 112
    %v1600 = vpop.permute.xlu0 %1599
    %v1602 = vsel %vm256, %v415, %v1576
    %v1603 = vsel %vm94, %v1602, %v1580
    %vm1604 = vcmask 392192
    %v1605 = vsel %vm1604, %v1603, %v1584
    %vm1606 = vcmask 523264
    %v1607 = vsel %vm1606, %v1605, %v1588
    %vm1608 = vcmask 654336
    %v1609 = vsel %vm1608, %v1607, %v1592
    %vm1610 = vcmask 785408
    %v1611 = vsel %vm1610, %v1609, %v1596
    %vm1612 = vcmask 916480
    %v1613 = vsel %vm1612, %v1611, %v1600
    %v1615 = vlaneseq
    %v1616 = vshrl.u32 %v1615, 7
    %v1617 = vsub.s32 0, %v1616
    %v1618 = vrot.slane %v255, %v1617
    %1620 = vmatprep.subr.mxu0 0.0
    %1621 = vmatpush1.msra.mxu0 %v239
    %1622 = vmatprep.subr.mxu0 0.0
    %1623 = vmatpush1.msra.mxu0 %v240
    %1624 = vmatprep.subr.mxu0 0.0
    %1625 = vmatpush1.msra.mxu0 %v241
    %1626 = vmatprep.subr.mxu0 0.0
    %1627 = vmatpush1.msra.mxu0 %v242
    %1628 = vmatprep.subr.mxu0 0.0
    %1629 = vmatpush1.msra.mxu0 %v243
    %1630 = vmatprep.subr.mxu0 0.0
    %1631 = vmatpush1.msra.mxu0 %v244
    %1632 = vmatprep.subr.mxu0 0.0
    %1633 = vmatpush1.msra.mxu0 %v245
    %1634 = vmatprep.subr.mxu0 0.0
    %1635 = vmatpush1.msra.mxu0 %v246
    %1636 = vmatprep.subr.mxu0 0.0
    %1637 = vmatpush1.msra.mxu0 %v247
    %1638 = vmatprep.subr.mxu0 0.0
    %1639 = vmatpush1.msra.mxu0 %v248
    %1640 = vmatprep.subr.mxu0 0.0
    %1641 = vmatpush1.msra.mxu0 %v249
    %1642 = vmatprep.subr.mxu0 0.0
    %1643 = vmatpush1.msra.mxu0 %v250
    %1644 = vmatprep.subr.mxu0 0.0
    %1645 = vmatpush1.msra.mxu0 %v251
    %1646 = vmatprep.subr.mxu0 0.0
    %1647 = vmatpush1.msra.mxu0 %v252
    %1648 = vmatprep.subr.mxu0 0.0
    %1649 = vmatpush1.msra.mxu0 %v253
    %1650 = vmatprep.subr.mxu0 0.0
    %1651 = vmatpush1.msra.mxu0 %v254
    %1652 = vmatprep.subr.mxu0 0.0
    %1653 = vmatpush1.msra.mxu0 0.0
    %1654 = vmatprep.subr.mxu0 0.0
    %1655 = vmatpush1.msra.mxu0 0.0
    %1656 = vmatprep.subr.mxu0 0.0
    %1657 = vmatpush1.msra.mxu0 0.0
    %1658 = vmatprep.subr.mxu0 0.0
    %1659 = vmatpush1.msra.mxu0 0.0
    %1660 = vmatprep.subr.mxu0 0.0
    %1661 = vmatpush1.msra.mxu0 0.0
    %1662 = vmatprep.subr.mxu0 0.0
    %1663 = vmatpush1.msra.mxu0 0.0
    %1664 = vmatprep.subr.mxu0 0.0
    %1665 = vmatpush1.msra.mxu0 0.0
    %1666 = vmatprep.subr.mxu0 0.0
    %1667 = vmatpush1.msra.mxu0 0.0
    %1668 = vmatprep.subr.mxu0 0.0
    %1669 = vmatpush1.msra.mxu0 0.0
    %1670 = vmatprep.subr.mxu0 0.0
    %1671 = vmatpush1.msra.mxu0 0.0
    %1672 = vmatprep.subr.mxu0 0.0
    %1673 = vmatpush1.msra.mxu0 0.0
    %1674 = vmatprep.subr.mxu0 0.0
    %1675 = vmatpush1.msra.mxu0 0.0
    %1676 = vmatprep.subr.mxu0 0.0
    %1677 = vmatpush1.msra.mxu0 0.0
    %1678 = vmatprep.subr.mxu0 0.0
    %1679 = vmatpush1.msra.mxu0 0.0
    %1680 = vmatprep.subr.mxu0 0.0
    %1681 = vmatpush1.msra.mxu0 0.0
    %1682 = vmatprep.subr.mxu0 0.0
    %1683 = vmatpush1.msra.mxu0 0.0
    %1684 = vmatprep.mubr.f32.mxu0 0.0
    %1685 = vmatmul.mubr.f32.gmra.mrb[0].mxu0 %v1613
    %v1686 = vpop.f32.mrb[0].mxu0
    %v1687 = vadd.f32 %v1618, %v1686
    %v1688 = vpop.f32.mrb[0].mxu0
    %1689 = vdwg.mxu0
    %v1690 = vadd.f32 %v1687, %v54
    %v1691 = vsel %vm94, %v1690, 0.0
    %1692 = vadd.xlane.f32.xlu0 %v1691
    %v1693 = vpop.xlane.xlu0 %1692
    %v1694 = vmul.f32 %v1693, 0.03125
    %v1695 = vsub.f32 %v1690, %v1694
    %v1696 = vmul.f32 %v1695, %v1695
    %v1697 = vsel %vm94, %v1696, 0.0
    %1698 = vadd.xlane.f32.xlu0 %v1697
    %v1699 = vpop.xlane.xlu0 %1698
    %v1700 = vmul.f32 %v1699, 0.03125
    %v1701 = vadd.f32 %v1700, 1e-05
    %v1702 = vrsqrt.pop %v1701
    %v1703 = vmul.f32 %v1695, %v1702
    %v1705 = vlaneseq
    %v1706 = vshrl.u32 %v1705, 7
    %v1707 = vsub.s32 0, %v1706
    %v1708 = vrot.slane %v57, %v1707
    %v1710 = vmul.f32 %v1703, %v1708
    %v1712 = vlaneseq
    %v1713 = vshrl.u32 %v1712, 7
    %v1714 = vsub.s32 0, %v1713
    %v1715 = vrot.slane %v58, %v1714
    %v1717 = vadd.f32 %v1710, %v1715
    %v1718 = vld [vmem:[%s6] sm:$0xff]
    %v1719 = vld [vmem:[%s6 + $0x8] sm:$0xff]
    %v1720 = vld [vmem:[%s6 + $0x10] sm:$0xff]
    %v1721 = vld [vmem:[%s6 + $0x18] sm:$0xff]
    %v1722 = vld [vmem:[%s7] sm:$0x1]
    %v1724 = vlaneseq
    %v1725 = vshrl.u32 %v1724, 7
    %v1726 = vsub.s32 0, %v1725
    %v1727 = vrot.slane %v1722, %v1726
    %v1730 = vsel %vm94, %v1717, 0
    %1732 = vmatprep.subr.mxu0 0.0
    %1733 = vmatpush1.msra.mxu0 %v1718
    %1734 = vmatprep.subr.mxu0 0.0
    %1735 = vmatpush1.msra.mxu0 %v1719
    %1736 = vmatprep.subr.mxu0 0.0
    %1737 = vmatpush1.msra.mxu0 %v1720
    %1738 = vmatprep.subr.mxu0 0.0
    %1739 = vmatpush1.msra.mxu0 %v1721
    %1740 = vmatprep.subr.mxu0 0.0
    %1741 = vmatpush1.msra.mxu0 0.0
    %1742 = vmatprep.subr.mxu0 0.0
    %1743 = vmatpush1.msra.mxu0 0.0
    %1744 = vmatprep.subr.mxu0 0.0
    %1745 = vmatpush1.msra.mxu0 0.0
    %1746 = vmatprep.subr.mxu0 0.0
    %1747 = vmatpush1.msra.mxu0 0.0
    %1748 = vmatprep.subr.mxu0 0.0
    %1749 = vmatpush1.msra.mxu0 0.0
    %1750 = vmatprep.subr.mxu0 0.0
    %1751 = vmatpush1.msra.mxu0 0.0
    %1752 = vmatprep.subr.mxu0 0.0
    %1753 = vmatpush1.msra.mxu0 0.0
    %1754 = vmatprep.subr.mxu0 0.0
    %1755 = vmatpush1.msra.mxu0 0.0
    %1756 = vmatprep.subr.mxu0 0.0
    %1757 = vmatpush1.msra.mxu0 0.0
    %1758 = vmatprep.subr.mxu0 0.0
    %1759 = vmatpush1.msra.mxu0 0.0
    %1760 = vmatprep.subr.mxu0 0.0
    %1761 = vmatpush1.msra.mxu0 0.0
    %1762 = vmatprep.subr.mxu0 0.0
    %1763 = vmatpush1.msra.mxu0 0.0
    %1764 = vmatprep.subr.mxu0 0.0
    %1765 = vmatpush1.msra.mxu0 0.0
    %1766 = vmatprep.subr.mxu0 0.0
    %1767 = vmatpush1.msra.mxu0 0.0
    %1768 = vmatprep.subr.mxu0 0.0
    %1769 = vmatpush1.msra.mxu0 0.0
    %1770 = vmatprep.subr.mxu0 0.0
    %1771 = vmatpush1.msra.mxu0 0.0
    %1772 = vmatprep.subr.mxu0 0.0
    %1773 = vmatpush1.msra.mxu0 0.0
    %1774 = vmatprep.subr.mxu0 0.0
    %1775 = vmatpush1.msra.mxu0 0.0
    %1776 = vmatprep.subr.mxu0 0.0
    %1777 = vmatpush1.msra.mxu0 0.0
    %1778 = vmatprep.subr.mxu0 0.0
    %1779 = vmatpush1.msra.mxu0 0.0
    %1780 = vmatprep.subr.mxu0 0.0
    %1781 = vmatpush1.msra.mxu0 0.0
    %1782 = vmatprep.subr.mxu0 0.0
    %1783 = vmatpush1.msra.mxu0 0.0
    %1784 = vmatprep.subr.mxu0 0.0
    %1785 = vmatpush1.msra.mxu0 0.0
    %1786 = vmatprep.subr.mxu0 0.0
    %1787 = vmatpush1.msra.mxu0 0.0
    %1788 = vmatprep.subr.mxu0 0.0
    %1789 = vmatpush1.msra.mxu0 0.0
    %1790 = vmatprep.subr.mxu0 0.0
    %1791 = vmatpush1.msra.mxu0 0.0
    %1792 = vmatprep.subr.mxu0 0.0
    %1793 = vmatpush1.msra.mxu0 0.0
    %1794 = vmatprep.subr.mxu0 0.0
    %1795 = vmatpush1.msra.mxu0 0.0
    %1796 = vmatprep.mubr.f32.mxu0 0.0
    %1797 = vmatmul.mubr.f32.gmra.mrb[0].mxu0 %v1730
    %v1798 = vpop.f32.mrb[0].mxu0
    %v1799 = vadd.f32 %v1727, %v1798
    %v1800 = vpop.f32.mrb[0].mxu0
    %1801 = vdwg.mxu0
    %v1802 = vld [vmem:[%s8] sm:$0xff]
    %v1803 = vld [vmem:[%s8 + $0x8] sm:$0xff]
    %v1804 = vld [vmem:[%s8 + $0x10] sm:$0xff]
    %v1805 = vld [vmem:[%s8 + $0x18] sm:$0xff]
    %v1806 = vld [vmem:[%s8 + $0x20] sm:$0xff]
    %v1807 = vld [vmem:[%s8 + $0x28] sm:$0xff]
    %v1808 = vld [vmem:[%s8 + $0x30] sm:$0xff]
    %v1809 = vld [vmem:[%s8 + $0x38] sm:$0xff]
    %v1810 = vld [vmem:[%s9] sm:$0x3]
    %v1812 = vlaneseq
    %v1813 = vshrl.u32 %v1812, 7
    %v1814 = vsub.s32 0, %v1813
    %v1815 = vrot.slane %v1810, %v1814
    %v1816 = vlaneseq
    %v1817 = vshrl.u32 %v1816, 7
    %v1818 = vsub.s32 1, %v1817
    %v1819 = vrot.slane %v1810, %v1818
    %v1823 = vsel %vm94, %v55, 0
    %v1826 = vsel %vm94, %v56, 0
    %1828 = vmatprep.subr.mxu0 %v1803
    %1829 = vmatpush1.msra.mxu0 %v1802
    %1830 = vmatprep.subr.mxu0 %v1805
    %1831 = vmatpush1.msra.mxu0 %v1804
    %1832 = vmatprep.subr.mxu0 %v1807
    %1833 = vmatpush1.msra.mxu0 %v1806
    %1834 = vmatprep.subr.mxu0 %v1809
    %1835 = vmatpush1.msra.mxu0 %v1808
    %1836 = vmatprep.subr.mxu0 0.0
    %1837 = vmatpush1.msra.mxu0 0.0
    %1838 = vmatprep.subr.mxu0 0.0
    %1839 = vmatpush1.msra.mxu0 0.0
    %1840 = vmatprep.subr.mxu0 0.0
    %1841 = vmatpush1.msra.mxu0 0.0
    %1842 = vmatprep.subr.mxu0 0.0
    %1843 = vmatpush1.msra.mxu0 0.0
    %1844 = vmatprep.subr.mxu0 0.0
    %1845 = vmatpush1.msra.mxu0 0.0
    %1846 = vmatprep.subr.mxu0 0.0
    %1847 = vmatpush1.msra.mxu0 0.0
    %1848 = vmatprep.subr.mxu0 0.0
    %1849 = vmatpush1.msra.mxu0 0.0
    %1850 = vmatprep.subr.mxu0 0.0
    %1851 = vmatpush1.msra.mxu0 0.0
    %1852 = vmatprep.subr.mxu0 0.0
    %1853 = vmatpush1.msra.mxu0 0.0
    %1854 = vmatprep.subr.mxu0 0.0
    %1855 = vmatpush1.msra.mxu0 0.0
    %1856 = vmatprep.subr.mxu0 0.0
    %1857 = vmatpush1.msra.mxu0 0.0
    %1858 = vmatprep.subr.mxu0 0.0
    %1859 = vmatpush1.msra.mxu0 0.0
    %1860 = vmatprep.subr.mxu0 0.0
    %1861 = vmatpush1.msra.mxu0 0.0
    %1862 = vmatprep.subr.mxu0 0.0
    %1863 = vmatpush1.msra.mxu0 0.0
    %1864 = vmatprep.subr.mxu0 0.0
    %1865 = vmatpush1.msra.mxu0 0.0
    %1866 = vmatprep.subr.mxu0 0.0
    %1867 = vmatpush1.msra.mxu0 0.0
    %1868 = vmatprep.subr.mxu0 0.0
    %1869 = vmatpush1.msra.mxu0 0.0
    %1870 = vmatprep.subr.mxu0 0.0
    %1871 = vmatpush1.msra.mxu0 0.0
    %1872 = vmatprep.subr.mxu0 0.0
    %1873 = vmatpush1.msra.mxu0 0.0
    %1874 = vmatprep.subr.mxu0 0.0
    %1875 = vmatpush1.msra.mxu0 0.0
    %1876 = vmatprep.subr.mxu0 0.0
    %1877 = vmatpush1.msra.mxu0 0.0
    %1878 = vmatprep.subr.mxu0 0.0
    %1879 = vmatpush1.msra.mxu0 0.0
    %1880 = vmatprep.subr.mxu0 0.0
    %1881 = vmatpush1.msra.mxu0 0.0
    %1882 = vmatprep.subr.mxu0 0.0
    %1883 = vmatpush1.msra.mxu0 0.0
    %1884 = vmatprep.subr.mxu0 0.0
    %1885 = vmatpush1.msra.mxu0 0.0
    %1886 = vmatprep.subr.mxu0 0.0
    %1887 = vmatpush1.msra.mxu0 0.0
    %1888 = vmatprep.subr.mxu0 0.0
    %1889 = vmatpush1.msra.mxu0 0.0
    %1890 = vmatprep.subr.mxu0 0.0
    %1891 = vmatpush1.msra.mxu0 0.0
    %1892 = vmatprep.mubr.f32.mxu0 0.0
    %1893 = vmatmul.mubr.f32.gmra.mrb[0].mxu0 %v1823
    %v1894 = vpop.f32.mrb[0].mxu0
    %v1895 = vadd.f32 %v1815, %v1894
    %v1896 = vpop.f32.mrb[0].mxu0
    %v1897 = vadd.f32 %v1819, %v1896
    %1898 = vmatprep.mubr.f32.mxu0 0.0
    %1899 = vmatmul.mubr.f32.gmra.mrb[0].mxu0 %v1826
    %v1900 = vpop.f32.mrb[0].mxu0
    %v1901 = vadd.f32 %v1815, %v1900
    %v1902 = vpop.f32.mrb[0].mxu0
    %v1903 = vadd.f32 %v1819, %v1902
    %1904 = vdwg.mxu0
    %v1905 = vld [vmem:[%s10] sm:$0xff]
    %v1906 = vld [vmem:[%s10 + $0x8] sm:$0xff]
    %v1907 = vld [vmem:[%s10 + $0x10] sm:$0xff]
    %v1908 = vld [vmem:[%s10 + $0x18] sm:$0xff]
    %v1909 = vld [vmem:[%s10 + $0x20] sm:$0xff]
    %v1910 = vld [vmem:[%s10 + $0x28] sm:$0xff]
    %v1911 = vld [vmem:[%s10 + $0x30] sm:$0xff]
    %v1912 = vld [vmem:[%s10 + $0x38] sm:$0xff]
    %v1913 = vld [vmem:[%s10 + $0x40] sm:$0xff]
    %v1914 = vld [vmem:[%s10 + $0x48] sm:$0xff]
    %v1915 = vld [vmem:[%s10 + $0x50] sm:$0xff]
    %v1916 = vld [vmem:[%s10 + $0x58] sm:$0xff]
    %v1917 = vld [vmem:[%s10 + $0x60] sm:$0xff]
    %v1918 = vld [vmem:[%s10 + $0x68] sm:$0xff]
    %v1919 = vld [vmem:[%s10 + $0x70] sm:$0xff]
    %v1920 = vld [vmem:[%s10 + $0x78] sm:$0xff]
    %v1921 = vld [vmem:[%s11] sm:$0x1]
    %v1923 = vsel %vm256, %v1799, 0
    %v1926 = vsel %vm256, %v1895, 0
    %v1929 = vsel %vm256, %v1901, 0
    %1931 = vmatprep.subr.mxu0 0.0
    %1932 = vmatpush1.xpose.msra.mxu0 %v1926
    %1933 = vmatprep.subr.mxu0 0.0
    %1934 = vmatpush1.xpose.msra.mxu0 %v1929
    %1935 = vmatprep.subr.mxu0 0.0
    %1936 = vmatpush1.xpose.msra.mxu0 0.0
    %1937 = vmatprep.subr.mxu0 0.0
    %1938 = vmatpush1.xpose.msra.mxu0 0.0
    %1939 = vmatprep.subr.mxu0 0.0
    %1940 = vmatpush1.xpose.msra.mxu0 0.0
    %1941 = vmatprep.subr.mxu0 0.0
    %1942 = vmatpush1.xpose.msra.mxu0 0.0
    %1943 = vmatprep.subr.mxu0 0.0
    %1944 = vmatpush1.xpose.msra.mxu0 0.0
    %1945 = vmatprep.subr.mxu0 0.0
    %1946 = vmatpush1.xpose.msra.mxu0 0.0
    %1947 = vmatprep.subr.mxu0 0.0
    %1948 = vmatpush1.xpose.msra.mxu0 0.0
    %1949 = vmatprep.subr.mxu0 0.0
    %1950 = vmatpush1.xpose.msra.mxu0 0.0
    %1951 = vmatprep.subr.mxu0 0.0
    %1952 = vmatpush1.xpose.msra.mxu0 0.0
    %1953 = vmatprep.subr.mxu0 0.0
    %1954 = vmatpush1.xpose.msra.mxu0 0.0
    %1955 = vmatprep.subr.mxu0 0.0
    %1956 = vmatpush1.xpose.msra.mxu0 0.0
    %1957 = vmatprep.subr.mxu0 0.0
    %1958 = vmatpush1.xpose.msra.mxu0 0.0
    %1959 = vmatprep.subr.mxu0 0.0
    %1960 = vmatpush1.xpose.msra.mxu0 0.0
    %1961 = vmatprep.subr.mxu0 0.0
    %1962 = vmatpush1.xpose.msra.mxu0 0.0
    %1963 = vmatprep.subr.mxu0 0.0
    %1964 = vmatpush1.xpose.msra.mxu0 0.0
    %1965 = vmatprep.subr.mxu0 0.0
    %1966 = vmatpush1.xpose.msra.mxu0 0.0
    %1967 = vmatprep.subr.mxu0 0.0
    %1968 = vmatpush1.xpose.msra.mxu0 0.0
    %1969 = vmatprep.subr.mxu0 0.0
    %1970 = vmatpush1.xpose.msra.mxu0 0.0
    %1971 = vmatprep.subr.mxu0 0.0
    %1972 = vmatpush1.xpose.msra.mxu0 0.0
    %1973 = vmatprep.subr.mxu0 0.0
    %1974 = vmatpush1.xpose.msra.mxu0 0.0
    %1975 = vmatprep.subr.mxu0 0.0
    %1976 = vmatpush1.xpose.msra.mxu0 0.0
    %1977 = vmatprep.subr.mxu0 0.0
    %1978 = vmatpush1.xpose.msra.mxu0 0.0
    %1979 = vmatprep.subr.mxu0 0.0
    %1980 = vmatpush1.xpose.msra.mxu0 0.0
    %1981 = vmatprep.subr.mxu0 0.0
    %1982 = vmatpush1.xpose.msra.mxu0 0.0
    %1983 = vmatprep.subr.mxu0 0.0
    %1984 = vmatpush1.xpose.msra.mxu0 0.0
    %1985 = vmatprep.subr.mxu0 0.0
    %1986 = vmatpush1.xpose.msra.mxu0 0.0
    %1987 = vmatprep.subr.mxu0 0.0
    %1988 = vmatpush1.xpose.msra.mxu0 0.0
    %1989 = vmatprep.subr.mxu0 0.0
    %1990 = vmatpush1.xpose.msra.mxu0 0.0
    %1991 = vmatprep.subr.mxu0 0.0
    %1992 = vmatpush1.xpose.msra.mxu0 0.0
    %1993 = vmatprep.subr.mxu0 0.0
    %1994 = vmatpush1.xpose.msra.mxu0 0.0
    %1995 = vmatprep.mubr.f32.mxu0 0.0
    %1996 = vmatmul.mubr.f32.gmra.mrb[0].mxu0 %v1923
    %v1997 = vpop.f32.mrb[0].mxu0
    %v1998 = vadd.f32 0.0, %v1997
    %v1999 = vpop.f32.mrb[0].mxu0
    %2000 = vdwg.mxu0
    %v2001 = vsel %vm256, %v1998, -inf
    %2002 = vmax.xlane.f32.xlu0 %v2001
    %v2003 = vpop.xlane.xlu0 %2002
    %v2004 = vsub.f32 %v1998, %v2003
    %v2005 = vmul.f32 %v2004, 1.442695
    %v2006 = vpow.pop %v2005
    %v2007 = vsel %vm256, %v2006, 0.0
    %2008 = vadd.xlane.f32.xlu0 %v2007
    %v2009 = vpop.xlane.xlu0 %2008
    %v2010 = vrcp.pop %v2009
    %v2011 = vmul.f32 %v2006, %v2010
    %v2013 = vsel %vm256, %v2011, 0
    %2015 = vmatprep.subr.mxu0 0.0
    %2016 = vmatpush1.msra.mxu0 %v1897
    %2017 = vmatprep.subr.mxu0 0.0
    %2018 = vmatpush1.msra.mxu0 %v1903
    %2019 = vmatprep.subr.mxu0 0.0
    %2020 = vmatpush1.msra.mxu0 0.0
    %2021 = vmatprep.subr.mxu0 0.0
    %2022 = vmatpush1.msra.mxu0 0.0
    %2023 = vmatprep.subr.mxu0 0.0
    %2024 = vmatpush1.msra.mxu0 0.0
    %2025 = vmatprep.subr.mxu0 0.0
    %2026 = vmatpush1.msra.mxu0 0.0
    %2027 = vmatprep.subr.mxu0 0.0
    %2028 = vmatpush1.msra.mxu0 0.0
    %2029 = vmatprep.subr.mxu0 0.0
    %2030 = vmatpush1.msra.mxu0 0.0
    %2031 = vmatprep.subr.mxu0 0.0
    %2032 = vmatpush1.msra.mxu0 0.0
    %2033 = vmatprep.subr.mxu0 0.0
    %2034 = vmatpush1.msra.mxu0 0.0
    %2035 = vmatprep.subr.mxu0 0.0
    %2036 = vmatpush1.msra.mxu0 0.0
    %2037 = vmatprep.subr.mxu0 0.0
    %2038 = vmatpush1.msra.mxu0 0.0
    %2039 = vmatprep.subr.mxu0 0.0
    %2040 = vmatpush1.msra.mxu0 0.0
    %2041 = vmatprep.subr.mxu0 0.0
    %2042 = vmatpush1.msra.mxu0 0.0
    %2043 = vmatprep.subr.mxu0 0.0
    %2044 = vmatpush1.msra.mxu0 0.0
    %2045 = vmatprep.subr.mxu0 0.0
    %2046 = vmatpush1.msra.mxu0 0.0
    %2047 = vmatprep.subr.mxu0 0.0
    %2048 = vmatpush1.msra.mxu0 0.0
    %2049 = vmatprep.subr.mxu0 0.0
    %2050 = vmatpush1.msra.mxu0 0.0
    %2051 = vmatprep.subr.mxu0 0.0
    %2052 = vmatpush1.msra.mxu0 0.0
    %2053 = vmatprep.subr.mxu0 0.0
    %2054 = vmatpush1.msra.mxu0 0.0
    %2055 = vmatprep.subr.mxu0 0.0
    %2056 = vmatpush1.msra.mxu0 0.0
    %2057 = vmatprep.subr.mxu0 0.0
    %2058 = vmatpush1.msra.mxu0 0.0
    %2059 = vmatprep.subr.mxu0 0.0
    %2060 = vmatpush1.msra.mxu0 0.0
    %2061 = vmatprep.subr.mxu0 0.0
    %2062 = vmatpush1.msra.mxu0 0.0
    %2063 = vmatprep.subr.mxu0 0.0
    %2064 = vmatpush1.msra.mxu0 0.0
    %2065 = vmatprep.subr.mxu0 0.0
    %2066 = vmatpush1.msra.mxu0 0.0
    %2067 = vmatprep.subr.mxu0 0.0
    %2068 = vmatpush1.msra.mxu0 0.0
    %2069 = vmatprep.subr.mxu0 0.0
    %2070 = vmatpush1.msra.mxu0 0.0
    %2071 = vmatprep.subr.mxu0 0.0
    %2072 = vmatpush1.msra.mxu0 0.0
    %2073 = vmatprep.subr.mxu0 0.0
    %2074 = vmatpush1.msra.mxu0 0.0
    %2075 = vmatprep.subr.mxu0 0.0
    %2076 = vmatpush1.msra.mxu0 0.0
    %2077 = vmatprep.subr.mxu0 0.0
    %2078 = vmatpush1.msra.mxu0 0.0
    %2079 = vmatprep.mubr.f32.mxu0 0.0
    %2080 = vmatmul.mubr.f32.gmra.mrb[0].mxu0 %v2013
    %v2081 = vpop.f32.mrb[0].mxu0
    %v2082 = vadd.f32 0.0, %v2081
    %v2083 = vpop.f32.mrb[0].mxu0
    %2084 = vdwg.mxu0
    %2085 = vrot.lane.b32.xlu0 %v1799, 112
    %v2086 = vpop.permute.xlu0 %2085
    %2087 = vrot.lane.b32.xlu0 %v1895, 112
    %v2088 = vpop.permute.xlu0 %2087
    %2089 = vrot.lane.b32.xlu0 %v1901, 112
    %v2090 = vpop.permute.xlu0 %2089
    %v2091 = vsel %vm256, %v2086, 0
    %v2093 = vsel %vm256, %v2088, 0
    %v2095 = vsel %vm256, %v2090, 0
    %2097 = vmatprep.subr.mxu0 0.0
    %2098 = vmatpush1.xpose.msra.mxu0 %v2093
    %2099 = vmatprep.subr.mxu0 0.0
    %2100 = vmatpush1.xpose.msra.mxu0 %v2095
    %2101 = vmatprep.subr.mxu0 0.0
    %2102 = vmatpush1.xpose.msra.mxu0 0.0
    %2103 = vmatprep.subr.mxu0 0.0
    %2104 = vmatpush1.xpose.msra.mxu0 0.0
    %2105 = vmatprep.subr.mxu0 0.0
    %2106 = vmatpush1.xpose.msra.mxu0 0.0
    %2107 = vmatprep.subr.mxu0 0.0
    %2108 = vmatpush1.xpose.msra.mxu0 0.0
    %2109 = vmatprep.subr.mxu0 0.0
    %2110 = vmatpush1.xpose.msra.mxu0 0.0
    %2111 = vmatprep.subr.mxu0 0.0
    %2112 = vmatpush1.xpose.msra.mxu0 0.0
    %2113 = vmatprep.subr.mxu0 0.0
    %2114 = vmatpush1.xpose.msra.mxu0 0.0
    %2115 = vmatprep.subr.mxu0 0.0
    %2116 = vmatpush1.xpose.msra.mxu0 0.0
    %2117 = vmatprep.subr.mxu0 0.0
    %2118 = vmatpush1.xpose.msra.mxu0 0.0
    %2119 = vmatprep.subr.mxu0 0.0
    %2120 = vmatpush1.xpose.msra.mxu0 0.0
    %2121 = vmatprep.subr.mxu0 0.0
    %2122 = vmatpush1.xpose.msra.mxu0 0.0
    %2123 = vmatprep.subr.mxu0 0.0
    %2124 = vmatpush1.xpose.msra.mxu0 0.0
    %2125 = vmatprep.subr.mxu0 0.0
    %2126 = vmatpush1.xpose.msra.mxu0 0.0
    %2127 = vmatprep.subr.mxu0 0.0
    %2128 = vmatpush1.xpose.msra.mxu0 0.0
    %2129 = vmatprep.subr.mxu0 0.0
    %2130 = vmatpush1.xpose.msra.mxu0 0.0
    %2131 = vmatprep.subr.mxu0 0.0
    %2132 = vmatpush1.xpose.msra.mxu0 0.0
    %2133 = vmatprep.subr.mxu0 0.0
    %2134 = vmatpush1.xpose.msra.mxu0 0.0
    %2135 = vmatprep.subr.mxu0 0.0
    %2136 = vmatpush1.xpose.msra.mxu0 0.0
    %2137 = vmatprep.subr.mxu0 0.0
    %2138 = vmatpush1.xpose.msra.mxu0 0.0
    %2139 = vmatprep.subr.mxu0 0.0
    %2140 = vmatpush1.xpose.msra.mxu0 0.0
    %2141 = vmatprep.subr.mxu0 0.0
    %2142 = vmatpush1.xpose.msra.mxu0 0.0
    %2143 = vmatprep.subr.mxu0 0.0
    %2144 = vmatpush1.xpose.msra.mxu0 0.0
    %2145 = vmatprep.subr.mxu0 0.0
    %2146 = vmatpush1.xpose.msra.mxu0 0.0
    %2147 = vmatprep.subr.mxu0 0.0
    %2148 = vmatpush1.xpose.msra.mxu0 0.0
    %2149 = vmatprep.subr.mxu0 0.0
    %2150 = vmatpush1.xpose.msra.mxu0 0.0
    %2151 = vmatprep.subr.mxu0 0.0
    %2152 = vmatpush1.xpose.msra.mxu0 0.0
    %2153 = vmatprep.subr.mxu0 0.0
    %2154 = vmatpush1.xpose.msra.mxu0 0.0
    %2155 = vmatprep.subr.mxu0 0.0
    %2156 = vmatpush1.xpose.msra.mxu0 0.0
    %2157 = vmatprep.subr.mxu0 0.0
    %2158 = vmatpush1.xpose.msra.mxu0 0.0
    %2159 = vmatprep.subr.mxu0 0.0
    %2160 = vmatpush1.xpose.msra.mxu0 0.0
    %2161 = vmatprep.mubr.f32.mxu0 0.0
    %2162 = vmatmul.mubr.f32.gmra.mrb[0].mxu0 %v2091
    %v2163 = vpop.f32.mrb[0].mxu0
    %v2164 = vadd.f32 0.0, %v2163
    %v2165 = vpop.f32.mrb[0].mxu0
    %2166 = vdwg.mxu0
    %v2167 = vsel %vm256, %v2164, -inf
    %2168 = vmax.xlane.f32.xlu0 %v2167
    %v2169 = vpop.xlane.xlu0 %2168
    %v2170 = vsub.f32 %v2164, %v2169
    %v2171 = vmul.f32 %v2170, 1.442695
    %v2172 = vpow.pop %v2171
    %v2173 = vsel %vm256, %v2172, 0.0
    %2174 = vadd.xlane.f32.xlu0 %v2173
    %v2175 = vpop.xlane.xlu0 %2174
    %v2176 = vrcp.pop %v2175
    %v2177 = vmul.f32 %v2172, %v2176
    %2180 = vrot.lane.b32.xlu0 %v1897, 112
    %v2181 = vpop.permute.xlu0 %2180
    %2182 = vrot.lane.b32.xlu0 %v1903, 112
    %v2183 = vpop.permute.xlu0 %2182
    %v2187 = vsel %vm256, %v2177, 0
    %2189 = vmatprep.subr.mxu0 0.0
    %2190 = vmatpush1.msra.mxu0 %v2181
    %2191 = vmatprep.subr.mxu0 0.0
    %2192 = vmatpush1.msra.mxu0 %v2183
    %2193 = vmatprep.subr.mxu0 0.0
    %2194 = vmatpush1.msra.mxu0 0.0
    %2195 = vmatprep.subr.mxu0 0.0
    %2196 = vmatpush1.msra.mxu0 0.0
    %2197 = vmatprep.subr.mxu0 0.0
    %2198 = vmatpush1.msra.mxu0 0.0
    %2199 = vmatprep.subr.mxu0 0.0
    %2200 = vmatpush1.msra.mxu0 0.0
    %2201 = vmatprep.subr.mxu0 0.0
    %2202 = vmatpush1.msra.mxu0 0.0
    %2203 = vmatprep.subr.mxu0 0.0
    %2204 = vmatpush1.msra.mxu0 0.0
    %2205 = vmatprep.subr.mxu0 0.0
    %2206 = vmatpush1.msra.mxu0 0.0
    %2207 = vmatprep.subr.mxu0 0.0
    %2208 = vmatpush1.msra.mxu0 0.0
    %2209 = vmatprep.subr.mxu0 0.0
    %2210 = vmatpush1.msra.mxu0 0.0
    %2211 = vmatprep.subr.mxu0 0.0
    %2212 = vmatpush1.msra.mxu0 0.0
    %2213 = vmatprep.subr.mxu0 0.0
    %2214 = vmatpush1.msra.mxu0 0.0
    %2215 = vmatprep.subr.mxu0 0.0
    %2216 = vmatpush1.msra.mxu0 0.0
    %2217 = vmatprep.subr.mxu0 0.0
    %2218 = vmatpush1.msra.mxu0 0.0
    %2219 = vmatprep.subr.mxu0 0.0
    %2220 = vmatpush1.msra.mxu0 0.0
    %2221 = vmatprep.subr.mxu0 0.0
    %2222 = vmatpush1.msra.mxu0 0.0
    %2223 = vmatprep.subr.mxu0 0.0
    %2224 = vmatpush1.msra.mxu0 0.0
    %2225 = vmatprep.subr.mxu0 0.0
    %2226 = vmatpush1.msra.mxu0 0.0
    %2227 = vmatprep.subr.mxu0 0.0
    %2228 = vmatpush1.msra.mxu0 0.0
    %2229 = vmatprep.subr.mxu0 0.0
    %2230 = vmatpush1.msra.mxu0 0.0
    %2231 = vmatprep.subr.mxu0 0.0
    %2232 = vmatpush1.msra.mxu0 0.0
    %2233 = vmatprep.subr.mxu0 0.0
    %2234 = vmatpush1.msra.mxu0 0.0
    %2235 = vmatprep.subr.mxu0 0.0
    %2236 = vmatpush1.msra.mxu0 0.0
    %2237 = vmatprep.subr.mxu0 0.0
    %2238 = vmatpush1.msra.mxu0 0.0
    %2239 = vmatprep.subr.mxu0 0.0
    %2240 = vmatpush1.msra.mxu0 0.0
    %2241 = vmatprep.subr.mxu0 0.0
    %2242 = vmatpush1.msra.mxu0 0.0
    %2243 = vmatprep.subr.mxu0 0.0
    %2244 = vmatpush1.msra.mxu0 0.0
    %2245 = vmatprep.subr.mxu0 0.0
    %2246 = vmatpush1.msra.mxu0 0.0
    %2247 = vmatprep.subr.mxu0 0.0
    %2248 = vmatpush1.msra.mxu0 0.0
    %2249 = vmatprep.subr.mxu0 0.0
    %2250 = vmatpush1.msra.mxu0 0.0
    %2251 = vmatprep.subr.mxu0 0.0
    %2252 = vmatpush1.msra.mxu0 0.0
    %2253 = vmatprep.mubr.f32.mxu0 0.0
    %2254 = vmatmul.mubr.f32.gmra.mrb[0].mxu0 %v2187
    %v2255 = vpop.f32.mrb[0].mxu0
    %v2256 = vadd.f32 0.0, %v2255
    %v2257 = vpop.f32.mrb[0].mxu0
    %2258 = vdwg.mxu0
    %2259 = vrot.lane.b32.xlu0 %v1799, 96
    %v2260 = vpop.permute.xlu0 %2259
    %2261 = vrot.lane.b32.xlu0 %v1895, 96
    %v2262 = vpop.permute.xlu0 %2261
    %2263 = vrot.lane.b32.xlu0 %v1901, 96
    %v2264 = vpop.permute.xlu0 %2263
    %v2265 = vsel %vm256, %v2260, 0
    %v2267 = vsel %vm256, %v2262, 0
    %v2269 = vsel %vm256, %v2264, 0
    %2271 = vmatprep.subr.mxu0 0.0
    %2272 = vmatpush1.xpose.msra.mxu0 %v2267
    %2273 = vmatprep.subr.mxu0 0.0
    %2274 = vmatpush1.xpose.msra.mxu0 %v2269
    %2275 = vmatprep.subr.mxu0 0.0
    %2276 = vmatpush1.xpose.msra.mxu0 0.0
    %2277 = vmatprep.subr.mxu0 0.0
    %2278 = vmatpush1.xpose.msra.mxu0 0.0
    %2279 = vmatprep.subr.mxu0 0.0
    %2280 = vmatpush1.xpose.msra.mxu0 0.0
    %2281 = vmatprep.subr.mxu0 0.0
    %2282 = vmatpush1.xpose.msra.mxu0 0.0
    %2283 = vmatprep.subr.mxu0 0.0
    %2284 = vmatpush1.xpose.msra.mxu0 0.0
    %2285 = vmatprep.subr.mxu0 0.0
    %2286 = vmatpush1.xpose.msra.mxu0 0.0
    %2287 = vmatprep.subr.mxu0 0.0
    %2288 = vmatpush1.xpose.msra.mxu0 0.0
    %2289 = vmatprep.subr.mxu0 0.0
    %2290 = vmatpush1.xpose.msra.mxu0 0.0
    %2291 = vmatprep.subr.mxu0 0.0
    %2292 = vmatpush1.xpose.msra.mxu0 0.0
    %2293 = vmatprep.subr.mxu0 0.0
    %2294 = vmatpush1.xpose.msra.mxu0 0.0
    %2295 = vmatprep.subr.mxu0 0.0
    %2296 = vmatpush1.xpose.msra.mxu0 0.0
    %2297 = vmatprep.subr.mxu0 0.0
    %2298 = vmatpush1.xpose.msra.mxu0 0.0
    %2299 = vmatprep.subr.mxu0 0.0
    %2300 = vmatpush1.xpose.msra.mxu0 0.0
    %2301 = vmatprep.subr.mxu0 0.0
    %2302 = vmatpush1.xpose.msra.mxu0 0.0
    %2303 = vmatprep.subr.mxu0 0.0
    %2304 = vmatpush1.xpose.msra.mxu0 0.0
    %2305 = vmatprep.subr.mxu0 0.0
    %2306 = vmatpush1.xpose.msra.mxu0 0.0
    %2307 = vmatprep.subr.mxu0 0.0
    %2308 = vmatpush1.xpose.msra.mxu0 0.0
    %2309 = vmatprep.subr.mxu0 0.0
    %2310 = vmatpush1.xpose.msra.mxu0 0.0
    %2311 = vmatprep.subr.mxu0 0.0
    %2312 = vmatpush1.xpose.msra.mxu0 0.0
    %2313 = vmatprep.subr.mxu0 0.0
    %2314 = vmatpush1.xpose.msra.mxu0 0.0
    %2315 = vmatprep.subr.mxu0 0.0
    %2316 = vmatpush1.xpose.msra.mxu0 0.0
    %2317 = vmatprep.subr.mxu0 0.0
    %2318 = vmatpush1.xpose.msra.mxu0 0.0
    %2319 = vmatprep.subr.mxu0 0.0
    %2320 = vmatpush1.xpose.msra.mxu0 0.0
    %2321 = vmatprep.subr.mxu0 0.0
    %2322 = vmatpush1.xpose.msra.mxu0 0.0
    %2323 = vmatprep.subr.mxu0 0.0
    %2324 = vmatpush1.xpose.msra.mxu0 0.0
    %2325 = vmatprep.subr.mxu0 0.0
    %2326 = vmatpush1.xpose.msra.mxu0 0.0
    %2327 = vmatprep.subr.mxu0 0.0
    %2328 = vmatpush1.xpose.msra.mxu0 0.0
    %2329 = vmatprep.subr.mxu0 0.0
    %2330 = vmatpush1.xpose.msra.mxu0 0.0
    %2331 = vmatprep.subr.mxu0 0.0
    %2332 = vmatpush1.xpose.msra.mxu0 0.0
    %2333 = vmatprep.subr.mxu0 0.0
    %2334 = vmatpush1.xpose.msra.mxu0 0.0
    %2335 = vmatprep.mubr.f32.mxu0 0.0
    %2336 = vmatmul.mubr.f32.gmra.mrb[0].mxu0 %v2265
    %v2337 = vpop.f32.mrb[0].mxu0
    %v2338 = vadd.f32 0.0, %v2337
    %v2339 = vpop.f32.mrb[0].mxu0
    %2340 = vdwg.mxu0
    %v2341 = vsel %vm256, %v2338, -inf
    %2342 = vmax.xlane.f32.xlu0 %v2341
    %v2343 = vpop.xlane.xlu0 %2342
    %v2344 = vsub.f32 %v2338, %v2343
    %v2345 = vmul.f32 %v2344, 1.442695
    %v2346 = vpow.pop %v2345
    %v2347 = vsel %vm256, %v2346, 0.0
    %2348 = vadd.xlane.f32.xlu0 %v2347
    %v2349 = vpop.xlane.xlu0 %2348
    %v2350 = vrcp.pop %v2349
    %v2351 = vmul.f32 %v2346, %v2350
    %2352 = vrot.lane.b32.xlu0 %v1897, 96
    %v2353 = vpop.permute.xlu0 %2352
    %2354 = vrot.lane.b32.xlu0 %v1903, 96
    %v2355 = vpop.permute.xlu0 %2354
    %v2359 = vsel %vm256, %v2351, 0
    %2361 = vmatprep.subr.mxu0 0.0
    %2362 = vmatpush1.msra.mxu0 %v2353
    %2363 = vmatprep.subr.mxu0 0.0
    %2364 = vmatpush1.msra.mxu0 %v2355
    %2365 = vmatprep.subr.mxu0 0.0
    %2366 = vmatpush1.msra.mxu0 0.0
    %2367 = vmatprep.subr.mxu0 0.0
    %2368 = vmatpush1.msra.mxu0 0.0
    %2369 = vmatprep.subr.mxu0 0.0
    %2370 = vmatpush1.msra.mxu0 0.0
    %2371 = vmatprep.subr.mxu0 0.0
    %2372 = vmatpush1.msra.mxu0 0.0
    %2373 = vmatprep.subr.mxu0 0.0
    %2374 = vmatpush1.msra.mxu0 0.0
    %2375 = vmatprep.subr.mxu0 0.0
    %2376 = vmatpush1.msra.mxu0 0.0
    %2377 = vmatprep.subr.mxu0 0.0
    %2378 = vmatpush1.msra.mxu0 0.0
    %2379 = vmatprep.subr.mxu0 0.0
    %2380 = vmatpush1.msra.mxu0 0.0
    %2381 = vmatprep.subr.mxu0 0.0
    %2382 = vmatpush1.msra.mxu0 0.0
    %2383 = vmatprep.subr.mxu0 0.0
    %2384 = vmatpush1.msra.mxu0 0.0
    %2385 = vmatprep.subr.mxu0 0.0
    %2386 = vmatpush1.msra.mxu0 0.0
    %2387 = vmatprep.subr.mxu0 0.0
    %2388 = vmatpush1.msra.mxu0 0.0
    %2389 = vmatprep.subr.mxu0 0.0
    %2390 = vmatpush1.msra.mxu0 0.0
    %2391 = vmatprep.subr.mxu0 0.0
    %2392 = vmatpush1.msra.mxu0 0.0
    %2393 = vmatprep.subr.mxu0 0.0
    %2394 = vmatpush1.msra.mxu0 0.0
    %2395 = vmatprep.subr.mxu0 0.0
    %2396 = vmatpush1.msra.mxu0 0.0
    %2397 = vmatprep.subr.mxu0 0.0
    %2398 = vmatpush1.msra.mxu0 0.0
    %2399 = vmatprep.subr.mxu0 0.0
    %2400 = vmatpush1.msra.mxu0 0.0
    %2401 = vmatprep.subr.mxu0 0.0
    %2402 = vmatpush1.msra.mxu0 0.0
    %2403 = vmatprep.subr.mxu0 0.0
    %2404 = vmatpush1.msra.mxu0 0.0
    %2405 = vmatprep.subr.mxu0 0.0
    %2406 = vmatpush1.msra.mxu0 0.0
    %2407 = vmatprep.subr.mxu0 0.0
    %2408 = vmatpush1.msra.mxu0 0.0
    %2409 = vmatprep.subr.mxu0 0.0
    %2410 = vmatpush1.msra.mxu0 0.0
    %2411 = vmatprep.subr.mxu0 0.0
    %2412 = vmatpush1.msra.mxu0 0.0
    %2413 = vmatprep.subr.mxu0 0.0
    %2414 = vmatpush1.msra.mxu0 0.0
    %2415 = vmatprep.subr.mxu0 0.0
    %2416 = vmatpush1.msra.mxu0 0.0
    %2417 = vmatprep.subr.mxu0 0.0
    %2418 = vmatpush1.msra.mxu0 0.0
    %2419 = vmatprep.subr.mxu0 0.0
    %2420 = vmatpush1.msra.mxu0 0.0
    %2421 = vmatprep.subr.mxu0 0.0
    %2422 = vmatpush1.msra.mxu0 0.0
    %2423 = vmatprep.subr.mxu0 0.0
    %2424 = vmatpush1.msra.mxu0 0.0
    %2425 = vmatprep.mubr.f32.mxu0 0.0
    %2426 = vmatmul.mubr.f32.gmra.mrb[0].mxu0 %v2359
    %v2427 = vpop.f32.mrb[0].mxu0
    %v2428 = vadd.f32 0.0, %v2427
    %v2429 = vpop.f32.mrb[0].mxu0
    %2430 = vdwg.mxu0
    %2431 = vrot.lane.b32.xlu0 %v1799, 80
    %v2432 = vpop.permute.xlu0 %2431
    %2433 = vrot.lane.b32.xlu0 %v1895, 80
    %v2434 = vpop.permute.xlu0 %2433
    %2435 = vrot.lane.b32.xlu0 %v1901, 80
    %v2436 = vpop.permute.xlu0 %2435
    %v2437 = vsel %vm256, %v2432, 0
    %v2439 = vsel %vm256, %v2434, 0
    %v2441 = vsel %vm256, %v2436, 0
    %2443 = vmatprep.subr.mxu0 0.0
    %2444 = vmatpush1.xpose.msra.mxu0 %v2439
    %2445 = vmatprep.subr.mxu0 0.0
    %2446 = vmatpush1.xpose.msra.mxu0 %v2441
    %2447 = vmatprep.subr.mxu0 0.0
    %2448 = vmatpush1.xpose.msra.mxu0 0.0
    %2449 = vmatprep.subr.mxu0 0.0
    %2450 = vmatpush1.xpose.msra.mxu0 0.0
    %2451 = vmatprep.subr.mxu0 0.0
    %2452 = vmatpush1.xpose.msra.mxu0 0.0
    %2453 = vmatprep.subr.mxu0 0.0
    %2454 = vmatpush1.xpose.msra.mxu0 0.0
    %2455 = vmatprep.subr.mxu0 0.0
    %2456 = vmatpush1.xpose.msra.mxu0 0.0
    %2457 = vmatprep.subr.mxu0 0.0
    %2458 = vmatpush1.xpose.msra.mxu0 0.0
    %2459 = vmatprep.subr.mxu0 0.0
    %2460 = vmatpush1.xpose.msra.mxu0 0.0
    %2461 = vmatprep.subr.mxu0 0.0
    %2462 = vmatpush1.xpose.msra.mxu0 0.0
    %2463 = vmatprep.subr.mxu0 0.0
    %2464 = vmatpush1.xpose.msra.mxu0 0.0
    %2465 = vmatprep.subr.mxu0 0.0
    %2466 = vmatpush1.xpose.msra.mxu0 0.0
    %2467 = vmatprep.subr.mxu0 0.0
    %2468 = vmatpush1.xpose.msra.mxu0 0.0
    %2469 = vmatprep.subr.mxu0 0.0
    %2470 = vmatpush1.xpose.msra.mxu0 0.0
    %2471 = vmatprep.subr.mxu0 0.0
    %2472 = vmatpush1.xpose.msra.mxu0 0.0
    %2473 = vmatprep.subr.mxu0 0.0
    %2474 = vmatpush1.xpose.msra.mxu0 0.0
    %2475 = vmatprep.subr.mxu0 0.0
    %2476 = vmatpush1.xpose.msra.mxu0 0.0
    %2477 = vmatprep.subr.mxu0 0.0
    %2478 = vmatpush1.xpose.msra.mxu0 0.0
    %2479 = vmatprep.subr.mxu0 0.0
    %2480 = vmatpush1.xpose.msra.mxu0 0.0
    %2481 = vmatprep.subr.mxu0 0.0
    %2482 = vmatpush1.xpose.msra.mxu0 0.0
    %2483 = vmatprep.subr.mxu0 0.0
    %2484 = vmatpush1.xpose.msra.mxu0 0.0
    %2485 = vmatprep.subr.mxu0 0.0
    %2486 = vmatpush1.xpose.msra.mxu0 0.0
    %2487 = vmatprep.subr.mxu0 0.0
    %2488 = vmatpush1.xpose.msra.mxu0 0.0
    %2489 = vmatprep.subr.mxu0 0.0
    %2490 = vmatpush1.xpose.msra.mxu0 0.0
    %2491 = vmatprep.subr.mxu0 0.0
    %2492 = vmatpush1.xpose.msra.mxu0 0.0
    %2493 = vmatprep.subr.mxu0 0.0
    %2494 = vmatpush1.xpose.msra.mxu0 0.0
    %2495 = vmatprep.subr.mxu0 0.0
    %2496 = vmatpush1.xpose.msra.mxu0 0.0
    %2497 = vmatprep.subr.mxu0 0.0
    %2498 = vmatpush1.xpose.msra.mxu0 0.0
    %2499 = vmatprep.subr.mxu0 0.0
    %2500 = vmatpush1.xpose.msra.mxu0 0.0
    %2501 = vmatprep.subr.mxu0 0.0
    %2502 = vmatpush1.xpose.msra.mxu0 0.0
    %2503 = vmatprep.subr.mxu0 0.0
    %2504 = vmatpush1.xpose.msra.mxu0 0.0
    %2505 = vmatprep.subr.mxu0 0.0
    %2506 = vmatpush1.xpose.msra.mxu0 0.0
    %2507 = vmatprep.mubr.f32.mxu0 0.0
    %2508 = vmatmul.mubr.f32.gmra.mrb[0].mxu0 %v2437
    %v2509 = vpop.f32.mrb[0].mxu0
    %v2510 = vadd.f32 0.0, %v2509
    %v2511 = vpop.f32.mrb[0].mxu0
    %2512 = vdwg.mxu0
    %v2513 = vsel %vm256, %v2510, -inf
    %2514 = vmax.xlane.f32.xlu0 %v2513
    %v2515 = vpop.xlane.xlu0 %2514
    %v2516 = vsub.f32 %v2510, %v2515
    %v2517 = vmul.f32 %v2516, 1.442695
    %v2518 = vpow.pop %v2517
    %v2519 = vsel %vm256, %v2518, 0.0
    %2520 = vadd.xlane.f32.xlu0 %v2519
    %v2521 = vpop.xlane.xlu0 %2520
    %v2522 = vrcp.pop %v2521
    %v2523 = vmul.f32 %v2518, %v2522
    %2524 = vrot.lane.b32.xlu0 %v1897, 80
    %v2525 = vpop.permute.xlu0 %2524
    %2526 = vrot.lane.b32.xlu0 %v1903, 80
    %v2527 = vpop.permute.xlu0 %2526
    %v2531 = vsel %vm256, %v2523, 0
    %2533 = vmatprep.subr.mxu0 0.0
    %2534 = vmatpush1.msra.mxu0 %v2525
    %2535 = vmatprep.subr.mxu0 0.0
    %2536 = vmatpush1.msra.mxu0 %v2527
    %2537 = vmatprep.subr.mxu0 0.0
    %2538 = vmatpush1.msra.mxu0 0.0
    %2539 = vmatprep.subr.mxu0 0.0
    %2540 = vmatpush1.msra.mxu0 0.0
    %2541 = vmatprep.subr.mxu0 0.0
    %2542 = vmatpush1.msra.mxu0 0.0
    %2543 = vmatprep.subr.mxu0 0.0
    %2544 = vmatpush1.msra.mxu0 0.0
    %2545 = vmatprep.subr.mxu0 0.0
    %2546 = vmatpush1.msra.mxu0 0.0
    %2547 = vmatprep.subr.mxu0 0.0
    %2548 = vmatpush1.msra.mxu0 0.0
    %2549 = vmatprep.subr.mxu0 0.0
    %2550 = vmatpush1.msra.mxu0 0.0
    %2551 = vmatprep.subr.mxu0 0.0
    %2552 = vmatpush1.msra.mxu0 0.0
    %2553 = vmatprep.subr.mxu0 0.0
    %2554 = vmatpush1.msra.mxu0 0.0
    %2555 = vmatprep.subr.mxu0 0.0
    %2556 = vmatpush1.msra.mxu0 0.0
    %2557 = vmatprep.subr.mxu0 0.0
    %2558 = vmatpush1.msra.mxu0 0.0
    %2559 = vmatprep.subr.mxu0 0.0
    %2560 = vmatpush1.msra.mxu0 0.0
    %2561 = vmatprep.subr.mxu0 0.0
    %2562 = vmatpush1.msra.mxu0 0.0
    %2563 = vmatprep.subr.mxu0 0.0
    %2564 = vmatpush1.msra.mxu0 0.0
    %2565 = vmatprep.subr.mxu0 0.0
    %2566 = vmatpush1.msra.mxu0 0.0
    %2567 = vmatprep.subr.mxu0 0.0
    %2568 = vmatpush1.msra.mxu0 0.0
    %2569 = vmatprep.subr.mxu0 0.0
    %2570 = vmatpush1.msra.mxu0 0.0
    %2571 = vmatprep.subr.mxu0 0.0
    %2572 = vmatpush1.msra.mxu0 0.0
    %2573 = vmatprep.subr.mxu0 0.0
    %2574 = vmatpush1.msra.mxu0 0.0
    %2575 = vmatprep.subr.mxu0 0.0
    %2576 = vmatpush1.msra.mxu0 0.0
    %2577 = vmatprep.subr.mxu0 0.0
    %2578 = vmatpush1.msra.mxu0 0.0
    %2579 = vmatprep.subr.mxu0 0.0
    %2580 = vmatpush1.msra.mxu0 0.0
    %2581 = vmatprep.subr.mxu0 0.0
    %2582 = vmatpush1.msra.mxu0 0.0
    %2583 = vmatprep.subr.mxu0 0.0
    %2584 = vmatpush1.msra.mxu0 0.0
    %2585 = vmatprep.subr.mxu0 0.0
    %2586 = vmatpush1.msra.mxu0 0.0
    %2587 = vmatprep.subr.mxu0 0.0
    %2588 = vmatpush1.msra.mxu0 0.0
    %2589 = vmatprep.subr.mxu0 0.0
    %2590 = vmatpush1.msra.mxu0 0.0
    %2591 = vmatprep.subr.mxu0 0.0
    %2592 = vmatpush1.msra.mxu0 0.0
    %2593 = vmatprep.subr.mxu0 0.0
    %2594 = vmatpush1.msra.mxu0 0.0
    %2595 = vmatprep.subr.mxu0 0.0
    %2596 = vmatpush1.msra.mxu0 0.0
    %2597 = vmatprep.mubr.f32.mxu0 0.0
    %2598 = vmatmul.mubr.f32.gmra.mrb[0].mxu0 %v2531
    %v2599 = vpop.f32.mrb[0].mxu0
    %v2600 = vadd.f32 0.0, %v2599
    %v2601 = vpop.f32.mrb[0].mxu0
    %2602 = vdwg.mxu0
    %2603 = vrot.lane.b32.xlu0 %v1799, 64
    %v2604 = vpop.permute.xlu0 %2603
    %2605 = vrot.lane.b32.xlu0 %v1895, 64
    %v2606 = vpop.permute.xlu0 %2605
    %2607 = vrot.lane.b32.xlu0 %v1901, 64
    %v2608 = vpop.permute.xlu0 %2607
    %v2609 = vsel %vm256, %v2604, 0
    %v2611 = vsel %vm256, %v2606, 0
    %v2613 = vsel %vm256, %v2608, 0
    %2615 = vmatprep.subr.mxu0 0.0
    %2616 = vmatpush1.xpose.msra.mxu0 %v2611
    %2617 = vmatprep.subr.mxu0 0.0
    %2618 = vmatpush1.xpose.msra.mxu0 %v2613
    %2619 = vmatprep.subr.mxu0 0.0
    %2620 = vmatpush1.xpose.msra.mxu0 0.0
    %2621 = vmatprep.subr.mxu0 0.0
    %2622 = vmatpush1.xpose.msra.mxu0 0.0
    %2623 = vmatprep.subr.mxu0 0.0
    %2624 = vmatpush1.xpose.msra.mxu0 0.0
    %2625 = vmatprep.subr.mxu0 0.0
    %2626 = vmatpush1.xpose.msra.mxu0 0.0
    %2627 = vmatprep.subr.mxu0 0.0
    %2628 = vmatpush1.xpose.msra.mxu0 0.0
    %2629 = vmatprep.subr.mxu0 0.0
    %2630 = vmatpush1.xpose.msra.mxu0 0.0
    %2631 = vmatprep.subr.mxu0 0.0
    %2632 = vmatpush1.xpose.msra.mxu0 0.0
    %2633 = vmatprep.subr.mxu0 0.0
    %2634 = vmatpush1.xpose.msra.mxu0 0.0
    %2635 = vmatprep.subr.mxu0 0.0
    %2636 = vmatpush1.xpose.msra.mxu0 0.0
    %2637 = vmatprep.subr.mxu0 0.0
    %2638 = vmatpush1.xpose.msra.mxu0 0.0
    %2639 = vmatprep.subr.mxu0 0.0
    %2640 = vmatpush1.xpose.msra.mxu0 0.0
    %2641 = vmatprep.subr.mxu0 0.0
    %2642 = vmatpush1.xpose.msra.mxu0 0.0
    %2643 = vmatprep.subr.mxu0 0.0
    %2644 = vmatpush1.xpose.msra.mxu0 0.0
    %2645 = vmatprep.subr.mxu0 0.0
    %2646 = vmatpush1.xpose.msra.mxu0 0.0
    %2647 = vmatprep.subr.mxu0 0.0
    %2648 = vmatpush1.xpose.msra.mxu0 0.0
    %2649 = vmatprep.subr.mxu0 0.0
    %2650 = vmatpush1.xpose.msra.mxu0 0.0
    %2651 = vmatprep.subr.mxu0 0.0
    %2652 = vmatpush1.xpose.msra.mxu0 0.0
    %2653 = vmatprep.subr.mxu0 0.0
    %2654 = vmatpush1.xpose.msra.mxu0 0.0
    %2655 = vmatprep.subr.mxu0 0.0
    %2656 = vmatpush1.xpose.msra.mxu0 0.0
    %2657 = vmatprep.subr.mxu0 0.0
    %2658 = vmatpush1.xpose.msra.mxu0 0.0
    %2659 = vmatprep.subr.mxu0 0.0
    %2660 = vmatpush1.xpose.msra.mxu0 0.0
    %2661 = vmatprep.subr.mxu0 0.0
    %2662 = vmatpush1.xpose.msra.mxu0 0.0
    %2663 = vmatprep.subr.mxu0 0.0
    %2664 = vmatpush1.xpose.msra.mxu0 0.0
    %2665 = vmatprep.subr.mxu0 0.0
    %2666 = vmatpush1.xpose.msra.mxu0 0.0
    %2667 = vmatprep.subr.mxu0 0.0
    %2668 = vmatpush1.xpose.msra.mxu0 0.0
    %2669 = vmatprep.subr.mxu0 0.0
    %2670 = vmatpush1.xpose.msra.mxu0 0.0
    %2671 = vmatprep.subr.mxu0 0.0
    %2672 = vmatpush1.xpose.msra.mxu0 0.0
    %2673 = vmatprep.subr.mxu0 0.0
    %2674 = vmatpush1.xpose.msra.mxu0 0.0
    %2675 = vmatprep.subr.mxu0 0.0
    %2676 = vmatpush1.xpose.msra.mxu0 0.0
    %2677 = vmatprep.subr.mxu0 0.0
    %2678 = vmatpush1.xpose.msra.mxu0 0.0
    %2679 = vmatprep.mubr.f32.mxu0 0.0
    %2680 = vmatmul.mubr.f32.gmra.mrb[0].mxu0 %v2609
    %v2681 = vpop.f32.mrb[0].mxu0
    %v2682 = vadd.f32 0.0, %v2681
    %v2683 = vpop.f32.mrb[0].mxu0
    %2684 = vdwg.mxu0
    %v2685 = vsel %vm256, %v2682, -inf
    %2686 = vmax.xlane.f32.xlu0 %v2685
    %v2687 = vpop.xlane.xlu0 %2686
    %v2688 = vsub.f32 %v2682, %v2687
    %v2689 = vmul.f32 %v2688, 1.442695
    %v2690 = vpow.pop %v2689
    %v2691 = vsel %vm256, %v2690, 0.0
    %2692 = vadd.xlane.f32.xlu0 %v2691
    %v2693 = vpop.xlane.xlu0 %2692
    %v2694 = vrcp.pop %v2693
    %v2695 = vmul.f32 %v2690, %v2694
    %2696 = vrot.lane.b32.xlu0 %v1897, 64
    %v2697 = vpop.permute.xlu0 %2696
    %2698 = vrot.lane.b32.xlu0 %v1903, 64
    %v2699 = vpop.permute.xlu0 %2698
    %v2703 = vsel %vm256, %v2695, 0
    %2705 = vmatprep.subr.mxu0 0.0
    %2706 = vmatpush1.msra.mxu0 %v2697
    %2707 = vmatprep.subr.mxu0 0.0
    %2708 = vmatpush1.msra.mxu0 %v2699
    %2709 = vmatprep.subr.mxu0 0.0
    %2710 = vmatpush1.msra.mxu0 0.0
    %2711 = vmatprep.subr.mxu0 0.0
    %2712 = vmatpush1.msra.mxu0 0.0
    %2713 = vmatprep.subr.mxu0 0.0
    %2714 = vmatpush1.msra.mxu0 0.0
    %2715 = vmatprep.subr.mxu0 0.0
    %2716 = vmatpush1.msra.mxu0 0.0
    %2717 = vmatprep.subr.mxu0 0.0
    %2718 = vmatpush1.msra.mxu0 0.0
    %2719 = vmatprep.subr.mxu0 0.0
    %2720 = vmatpush1.msra.mxu0 0.0
    %2721 = vmatprep.subr.mxu0 0.0
    %2722 = vmatpush1.msra.mxu0 0.0
    %2723 = vmatprep.subr.mxu0 0.0
    %2724 = vmatpush1.msra.mxu0 0.0
    %2725 = vmatprep.subr.mxu0 0.0
    %2726 = vmatpush1.msra.mxu0 0.0
    %2727 = vmatprep.subr.mxu0 0.0
    %2728 = vmatpush1.msra.mxu0 0.0
    %2729 = vmatprep.subr.mxu0 0.0
    %2730 = vmatpush1.msra.mxu0 0.0
    %2731 = vmatprep.subr.mxu0 0.0
    %2732 = vmatpush1.msra.mxu0 0.0
    %2733 = vmatprep.subr.mxu0 0.0
    %2734 = vmatpush1.msra.mxu0 0.0
    %2735 = vmatprep.subr.mxu0 0.0
    %2736 = vmatpush1.msra.mxu0 0.0
    %2737 = vmatprep.subr.mxu0 0.0
    %2738 = vmatpush1.msra.mxu0 0.0
    %2739 = vmatprep.subr.mxu0 0.0
    %2740 = vmatpush1.msra.mxu0 0.0
    %2741 = vmatprep.subr.mxu0 0.0
    %2742 = vmatpush1.msra.mxu0 0.0
    %2743 = vmatprep.subr.mxu0 0.0
    %2744 = vmatpush1.msra.mxu0 0.0
    %2745 = vmatprep.subr.mxu0 0.0
    %2746 = vmatpush1.msra.mxu0 0.0
    %2747 = vmatprep.subr.mxu0 0.0
    %2748 = vmatpush1.msra.mxu0 0.0
    %2749 = vmatprep.subr.mxu0 0.0
    %2750 = vmatpush1.msra.mxu0 0.0
    %2751 = vmatprep.subr.mxu0 0.0
    %2752 = vmatpush1.msra.mxu0 0.0
    %2753 = vmatprep.subr.mxu0 0.0
    %2754 = vmatpush1.msra.mxu0 0.0
    %2755 = vmatprep.subr.mxu0 0.0
    %2756 = vmatpush1.msra.mxu0 0.0
    %2757 = vmatprep.subr.mxu0 0.0
    %2758 = vmatpush1.msra.mxu0 0.0
    %2759 = vmatprep.subr.mxu0 0.0
    %2760 = vmatpush1.msra.mxu0 0.0
    %2761 = vmatprep.subr.mxu0 0.0
    %2762 = vmatpush1.msra.mxu0 0.0
    %2763 = vmatprep.subr.mxu0 0.0
    %2764 = vmatpush1.msra.mxu0 0.0
    %2765 = vmatprep.subr.mxu0 0.0
    %2766 = vmatpush1.msra.mxu0 0.0
    %2767 = vmatprep.subr.mxu0 0.0
    %2768 = vmatpush1.msra.mxu0 0.0
    %2769 = vmatprep.mubr.f32.mxu0 0.0
    %2770 = vmatmul.mubr.f32.gmra.mrb[0].mxu0 %v2703
    %v2771 = vpop.f32.mrb[0].mxu0
    %v2772 = vadd.f32 0.0, %v2771
    %v2773 = vpop.f32.mrb[0].mxu0
    %2774 = vdwg.mxu0
    %2775 = vrot.lane.b32.xlu0 %v1799, 48
    %v2776 = vpop.permute.xlu0 %2775
    %2777 = vrot.lane.b32.xlu0 %v1895, 48
    %v2778 = vpop.permute.xlu0 %2777
    %2779 = vrot.lane.b32.xlu0 %v1901, 48
    %v2780 = vpop.permute.xlu0 %2779
    %v2781 = vsel %vm256, %v2776, 0
    %v2783 = vsel %vm256, %v2778, 0
    %v2785 = vsel %vm256, %v2780, 0
    %2787 = vmatprep.subr.mxu0 0.0
    %2788 = vmatpush1.xpose.msra.mxu0 %v2783
    %2789 = vmatprep.subr.mxu0 0.0
    %2790 = vmatpush1.xpose.msra.mxu0 %v2785
    %2791 = vmatprep.subr.mxu0 0.0
    %2792 = vmatpush1.xpose.msra.mxu0 0.0
    %2793 = vmatprep.subr.mxu0 0.0
    %2794 = vmatpush1.xpose.msra.mxu0 0.0
    %2795 = vmatprep.subr.mxu0 0.0
    %2796 = vmatpush1.xpose.msra.mxu0 0.0
    %2797 = vmatprep.subr.mxu0 0.0
    %2798 = vmatpush1.xpose.msra.mxu0 0.0
    %2799 = vmatprep.subr.mxu0 0.0
    %2800 = vmatpush1.xpose.msra.mxu0 0.0
    %2801 = vmatprep.subr.mxu0 0.0
    %2802 = vmatpush1.xpose.msra.mxu0 0.0
    %2803 = vmatprep.subr.mxu0 0.0
    %2804 = vmatpush1.xpose.msra.mxu0 0.0
    %2805 = vmatprep.subr.mxu0 0.0
    %2806 = vmatpush1.xpose.msra.mxu0 0.0
    %2807 = vmatprep.subr.mxu0 0.0
    %2808 = vmatpush1.xpose.msra.mxu0 0.0
    %2809 = vmatprep.subr.mxu0 0.0
    %2810 = vmatpush1.xpose.msra.mxu0 0.0
    %2811 = vmatprep.subr.mxu0 0.0
    %2812 = vmatpush1.xpose.msra.mxu0 0.0
    %2813 = vmatprep.subr.mxu0 0.0
    %2814 = vmatpush1.xpose.msra.mxu0 0.0
    %2815 = vmatprep.subr.mxu0 0.0
    %2816 = vmatpush1.xpose.msra.mxu0 0.0
    %2817 = vmatprep.subr.mxu0 0.0
    %2818 = vmatpush1.xpose.msra.mxu0 0.0
    %2819 = vmatprep.subr.mxu0 0.0
    %2820 = vmatpush1.xpose.msra.mxu0 0.0
    %2821 = vmatprep.subr.mxu0 0.0
    %2822 = vmatpush1.xpose.msra.mxu0 0.0
    %2823 = vmatprep.subr.mxu0 0.0
    %2824 = vmatpush1.xpose.msra.mxu0 0.0
    %2825 = vmatprep.subr.mxu0 0.0
    %2826 = vmatpush1.xpose.msra.mxu0 0.0
    %2827 = vmatprep.subr.mxu0 0.0
    %2828 = vmatpush1.xpose.msra.mxu0 0.0
    %2829 = vmatprep.subr.mxu0 0.0
    %2830 = vmatpush1.xpose.msra.mxu0 0.0
    %2831 = vmatprep.subr.mxu0 0.0
    %2832 = vmatpush1.xpose.msra.mxu0 0.0
    %2833 = vmatprep.subr.mxu0 0.0
    %2834 = vmatpush1.xpose.msra.mxu0 0.0
    %2835 = vmatprep.subr.mxu0 0.0
    %2836 = vmatpush1.xpose.msra.mxu0 0.0
    %2837 = vmatprep.subr.mxu0 0.0
    %2838 = vmatpush1.xpose.msra.mxu0 0.0
    %2839 = vmatprep.subr.mxu0 0.0
    %2840 = vmatpush1.xpose.msra.mxu0 0.0
    %2841 = vmatprep.subr.mxu0 0.0
    %2842 = vmatpush1.xpose.msra.mxu0 0.0
    %2843 = vmatprep.subr.mxu0 0.0
    %2844 = vmatpush1.xpose.msra.mxu0 0.0
    %2845 = vmatprep.subr.mxu0 0.0
    %2846 = vmatpush1.xpose.msra.mxu0 0.0
    %2847 = vmatprep.subr.mxu0 0.0
    %2848 = vmatpush1.xpose.msra.mxu0 0.0
    %2849 = vmatprep.subr.mxu0 0.0
    %2850 = vmatpush1.xpose.msra.mxu0 0.0
    %2851 = vmatprep.mubr.f32.mxu0 0.0
    %2852 = vmatmul.mubr.f32.gmra.mrb[0].mxu0 %v2781
    %v2853 = vpop.f32.mrb[0].mxu0
    %v2854 = vadd.f32 0.0, %v2853
    %v2855 = vpop.f32.mrb[0].mxu0
    %2856 = vdwg.mxu0
    %v2857 = vsel %vm256, %v2854, -inf
    %2858 = vmax.xlane.f32.xlu0 %v2857
    %v2859 = vpop.xlane.xlu0 %2858
    %v2860 = vsub.f32 %v2854, %v2859
    %v2861 = vmul.f32 %v2860, 1.442695
    %v2862 = vpow.pop %v2861
    %v2863 = vsel %vm256, %v2862, 0.0
    %2864 = vadd.xlane.f32.xlu0 %v2863
    %v2865 = vpop.xlane.xlu0 %2864
    %v2866 = vrcp.pop %v2865
    %v2867 = vmul.f32 %v2862, %v2866
    %2868 = vrot.lane.b32.xlu0 %v1897, 48
    %v2869 = vpop.permute.xlu0 %2868
    %2870 = vrot.lane.b32.xlu0 %v1903, 48
    %v2871 = vpop.permute.xlu0 %2870
    %v2875 = vsel %vm256, %v2867, 0
    %2877 = vmatprep.subr.mxu0 0.0
    %2878 = vmatpush1.msra.mxu0 %v2869
    %2879 = vmatprep.subr.mxu0 0.0
    %2880 = vmatpush1.msra.mxu0 %v2871
    %2881 = vmatprep.subr.mxu0 0.0
    %2882 = vmatpush1.msra.mxu0 0.0
    %2883 = vmatprep.subr.mxu0 0.0
    %2884 = vmatpush1.msra.mxu0 0.0
    %2885 = vmatprep.subr.mxu0 0.0
    %2886 = vmatpush1.msra.mxu0 0.0
    %2887 = vmatprep.subr.mxu0 0.0
    %2888 = vmatpush1.msra.mxu0 0.0
    %2889 = vmatprep.subr.mxu0 0.0
    %2890 = vmatpush1.msra.mxu0 0.0
    %2891 = vmatprep.subr.mxu0 0.0
    %2892 = vmatpush1.msra.mxu0 0.0
    %2893 = vmatprep.subr.mxu0 0.0
    %2894 = vmatpush1.msra.mxu0 0.0
    %2895 = vmatprep.subr.mxu0 0.0
    %2896 = vmatpush1.msra.mxu0 0.0
    %2897 = vmatprep.subr.mxu0 0.0
    %2898 = vmatpush1.msra.mxu0 0.0
    %2899 = vmatprep.subr.mxu0 0.0
    %2900 = vmatpush1.msra.mxu0 0.0
    %2901 = vmatprep.subr.mxu0 0.0
    %2902 = vmatpush1.msra.mxu0 0.0
    %2903 = vmatprep.subr.mxu0 0.0
    %2904 = vmatpush1.msra.mxu0 0.0
    %2905 = vmatprep.subr.mxu0 0.0
    %2906 = vmatpush1.msra.mxu0 0.0
    %2907 = vmatprep.subr.mxu0 0.0
    %2908 = vmatpush1.msra.mxu0 0.0
    %2909 = vmatprep.subr.mxu0 0.0
    %2910 = vmatpush1.msra.mxu0 0.0
    %2911 = vmatprep.subr.mxu0 0.0
    %2912 = vmatpush1.msra.mxu0 0.0
    %2913 = vmatprep.subr.mxu0 0.0
    %2914 = vmatpush1.msra.mxu0 0.0
    %2915 = vmatprep.subr.mxu0 0.0
    %2916 = vmatpush1.msra.mxu0 0.0
    %2917 = vmatprep.subr.mxu0 0.0
    %2918 = vmatpush1.msra.mxu0 0.0
    %2919 = vmatprep.subr.mxu0 0.0
    %2920 = vmatpush1.msra.mxu0 0.0
    %2921 = vmatprep.subr.mxu0 0.0
    %2922 = vmatpush1.msra.mxu0 0.0
    %2923 = vmatprep.subr.mxu0 0.0
    %2924 = vmatpush1.msra.mxu0 0.0
    %2925 = vmatprep.subr.mxu0 0.0
    %2926 = vmatpush1.msra.mxu0 0.0
    %2927 = vmatprep.subr.mxu0 0.0
    %2928 = vmatpush1.msra.mxu0 0.0
    %2929 = vmatprep.subr.mxu0 0.0
    %2930 = vmatpush1.msra.mxu0 0.0
    %2931 = vmatprep.subr.mxu0 0.0
    %2932 = vmatpush1.msra.mxu0 0.0
    %2933 = vmatprep.subr.mxu0 0.0
    %2934 = vmatpush1.msra.mxu0 0.0
    %2935 = vmatprep.subr.mxu0 0.0
    %2936 = vmatpush1.msra.mxu0 0.0
    %2937 = vmatprep.subr.mxu0 0.0
    %2938 = vmatpush1.msra.mxu0 0.0
    %2939 = vmatprep.subr.mxu0 0.0
    %2940 = vmatpush1.msra.mxu0 0.0
    %2941 = vmatprep.mubr.f32.mxu0 0.0
    %2942 = vmatmul.mubr.f32.gmra.mrb[0].mxu0 %v2875
    %v2943 = vpop.f32.mrb[0].mxu0
    %v2944 = vadd.f32 0.0, %v2943
    %v2945 = vpop.f32.mrb[0].mxu0
    %2946 = vdwg.mxu0
    %2947 = vrot.lane.b32.xlu0 %v1799, 32
    %v2948 = vpop.permute.xlu0 %2947
    %2949 = vrot.lane.b32.xlu0 %v1895, 32
    %v2950 = vpop.permute.xlu0 %2949
    %2951 = vrot.lane.b32.xlu0 %v1901, 32
    %v2952 = vpop.permute.xlu0 %2951
    %v2953 = vsel %vm256, %v2948, 0
    %v2955 = vsel %vm256, %v2950, 0
    %v2957 = vsel %vm256, %v2952, 0
    %2959 = vmatprep.subr.mxu0 0.0
    %2960 = vmatpush1.xpose.msra.mxu0 %v2955
    %2961 = vmatprep.subr.mxu0 0.0
    %2962 = vmatpush1.xpose.msra.mxu0 %v2957
    %2963 = vmatprep.subr.mxu0 0.0
    %2964 = vmatpush1.xpose.msra.mxu0 0.0
    %2965 = vmatprep.subr.mxu0 0.0
    %2966 = vmatpush1.xpose.msra.mxu0 0.0
    %2967 = vmatprep.subr.mxu0 0.0
    %2968 = vmatpush1.xpose.msra.mxu0 0.0
    %2969 = vmatprep.subr.mxu0 0.0
    %2970 = vmatpush1.xpose.msra.mxu0 0.0
    %2971 = vmatprep.subr.mxu0 0.0
    %2972 = vmatpush1.xpose.msra.mxu0 0.0
    %2973 = vmatprep.subr.mxu0 0.0
    %2974 = vmatpush1.xpose.msra.mxu0 0.0
    %2975 = vmatprep.subr.mxu0 0.0
    %2976 = vmatpush1.xpose.msra.mxu0 0.0
    %2977 = vmatprep.subr.mxu0 0.0
    %2978 = vmatpush1.xpose.msra.mxu0 0.0
    %2979 = vmatprep.subr.mxu0 0.0
    %2980 = vmatpush1.xpose.msra.mxu0 0.0
    %2981 = vmatprep.subr.mxu0 0.0
    %2982 = vmatpush1.xpose.msra.mxu0 0.0
    %2983 = vmatprep.subr.mxu0 0.0
    %2984 = vmatpush1.xpose.msra.mxu0 0.0
    %2985 = vmatprep.subr.mxu0 0.0
    %2986 = vmatpush1.xpose.msra.mxu0 0.0
    %2987 = vmatprep.subr.mxu0 0.0
    %2988 = vmatpush1.xpose.msra.mxu0 0.0
    %2989 = vmatprep.subr.mxu0 0.0
    %2990 = vmatpush1.xpose.msra.mxu0 0.0
    %2991 = vmatprep.subr.mxu0 0.0
    %2992 = vmatpush1.xpose.msra.mxu0 0.0
    %2993 = vmatprep.subr.mxu0 0.0
    %2994 = vmatpush1.xpose.msra.mxu0 0.0
    %2995 = vmatprep.subr.mxu0 0.0
    %2996 = vmatpush1.xpose.msra.mxu0 0.0
    %2997 = vmatprep.subr.mxu0 0.0
    %2998 = vmatpush1.xpose.msra.mxu0 0.0
    %2999 = vmatprep.subr.mxu0 0.0
    %3000 = vmatpush1.xpose.msra.mxu0 0.0
    %3001 = vmatprep.subr.mxu0 0.0
    %3002 = vmatpush1.xpose.msra.mxu0 0.0
    %3003 = vmatprep.subr.mxu0 0.0
    %3004 = vmatpush1.xpose.msra.mxu0 0.0
    %3005 = vmatprep.subr.mxu0 0.0
    %3006 = vmatpush1.xpose.msra.mxu0 0.0
    %3007 = vmatprep.subr.mxu0 0.0
    %3008 = vmatpush1.xpose.msra.mxu0 0.0
    %3009 = vmatprep.subr.mxu0 0.0
    %3010 = vmatpush1.xpose.msra.mxu0 0.0
    %3011 = vmatprep.subr.mxu0 0.0
    %3012 = vmatpush1.xpose.msra.mxu0 0.0
    %3013 = vmatprep.subr.mxu0 0.0
    %3014 = vmatpush1.xpose.msra.mxu0 0.0
    %3015 = vmatprep.subr.mxu0 0.0
    %3016 = vmatpush1.xpose.msra.mxu0 0.0
    %3017 = vmatprep.subr.mxu0 0.0
    %3018 = vmatpush1.xpose.msra.mxu0 0.0
    %3019 = vmatprep.subr.mxu0 0.0
    %3020 = vmatpush1.xpose.msra.mxu0 0.0
    %3021 = vmatprep.subr.mxu0 0.0
    %3022 = vmatpush1.xpose.msra.mxu0 0.0
    %3023 = vmatprep.mubr.f32.mxu0 0.0
    %3024 = vmatmul.mubr.f32.gmra.mrb[0].mxu0 %v2953
    %v3025 = vpop.f32.mrb[0].mxu0
    %v3026 = vadd.f32 0.0, %v3025
    %v3027 = vpop.f32.mrb[0].mxu0
    %3028 = vdwg.mxu0
    %v3029 = vsel %vm256, %v3026, -inf
    %3030 = vmax.xlane.f32.xlu0 %v3029
    %v3031 = vpop.xlane.xlu0 %3030
    %v3032 = vsub.f32 %v3026, %v3031
    %v3033 = vmul.f32 %v3032, 1.442695
    %v3034 = vpow.pop %v3033
    %v3035 = vsel %vm256, %v3034, 0.0
    %3036 = vadd.xlane.f32.xlu0 %v3035
    %v3037 = vpop.xlane.xlu0 %3036
    %v3038 = vrcp.pop %v3037
    %v3039 = vmul.f32 %v3034, %v3038
    %3040 = vrot.lane.b32.xlu0 %v1897, 32
    %v3041 = vpop.permute.xlu0 %3040
    %3042 = vrot.lane.b32.xlu0 %v1903, 32
    %v3043 = vpop.permute.xlu0 %3042
    %v3047 = vsel %vm256, %v3039, 0
    %3049 = vmatprep.subr.mxu0 0.0
    %3050 = vmatpush1.msra.mxu0 %v3041
    %3051 = vmatprep.subr.mxu0 0.0
    %3052 = vmatpush1.msra.mxu0 %v3043
    %3053 = vmatprep.subr.mxu0 0.0
    %3054 = vmatpush1.msra.mxu0 0.0
    %3055 = vmatprep.subr.mxu0 0.0
    %3056 = vmatpush1.msra.mxu0 0.0
    %3057 = vmatprep.subr.mxu0 0.0
    %3058 = vmatpush1.msra.mxu0 0.0
    %3059 = vmatprep.subr.mxu0 0.0
    %3060 = vmatpush1.msra.mxu0 0.0
    %3061 = vmatprep.subr.mxu0 0.0
    %3062 = vmatpush1.msra.mxu0 0.0
    %3063 = vmatprep.subr.mxu0 0.0
    %3064 = vmatpush1.msra.mxu0 0.0
    %3065 = vmatprep.subr.mxu0 0.0
    %3066 = vmatpush1.msra.mxu0 0.0
    %3067 = vmatprep.subr.mxu0 0.0
    %3068 = vmatpush1.msra.mxu0 0.0
    %3069 = vmatprep.subr.mxu0 0.0
    %3070 = vmatpush1.msra.mxu0 0.0
    %3071 = vmatprep.subr.mxu0 0.0
    %3072 = vmatpush1.msra.mxu0 0.0
    %3073 = vmatprep.subr.mxu0 0.0
    %3074 = vmatpush1.msra.mxu0 0.0
    %3075 = vmatprep.subr.mxu0 0.0
    %3076 = vmatpush1.msra.mxu0 0.0
    %3077 = vmatprep.subr.mxu0 0.0
    %3078 = vmatpush1.msra.mxu0 0.0
    %3079 = vmatprep.subr.mxu0 0.0
    %3080 = vmatpush1.msra.mxu0 0.0
    %3081 = vmatprep.subr.mxu0 0.0
    %3082 = vmatpush1.msra.mxu0 0.0
    %3083 = vmatprep.subr.mxu0 0.0
    %3084 = vmatpush1.msra.mxu0 0.0
    %3085 = vmatprep.subr.mxu0 0.0
    %3086 = vmatpush1.msra.mxu0 0.0
    %3087 = vmatprep.subr.mxu0 0.0
    %3088 = vmatpush1.msra.mxu0 0.0
    %3089 = vmatprep.subr.mxu0 0.0
    %3090 = vmatpush1.msra.mxu0 0.0
    %3091 = vmatprep.subr.mxu0 0.0
    %3092 = vmatpush1.msra.mxu0 0.0
    %3093 = vmatprep.subr.mxu0 0.0
    %3094 = vmatpush1.msra.mxu0 0.0
    %3095 = vmatprep.subr.mxu0 0.0
    %3096 = vmatpush1.msra.mxu0 0.0
    %3097 = vmatprep.subr.mxu0 0.0
    %3098 = vmatpush1.msra.mxu0 0.0
    %3099 = vmatprep.subr.mxu0 0.0
    %3100 = vmatpush1.msra.mxu0 0.0
    %3101 = vmatprep.subr.mxu0 0.0
    %3102 = vmatpush1.msra.mxu0 0.0
    %3103 = vmatprep.subr.mxu0 0.0
    %3104 = vmatpush1.msra.mxu0 0.0
    %3105 = vmatprep.subr.mxu0 0.0
    %3106 = vmatpush1.msra.mxu0 0.0
    %3107 = vmatprep.subr.mxu0 0.0
    %3108 = vmatpush1.msra.mxu0 0.0
    %3109 = vmatprep.subr.mxu0 0.0
    %3110 = vmatpush1.msra.mxu0 0.0
    %3111 = vmatprep.subr.mxu0 0.0
    %3112 = vmatpush1.msra.mxu0 0.0
    %3113 = vmatprep.mubr.f32.mxu0 0.0
    %3114 = vmatmul.mubr.f32.gmra.mrb[0].mxu0 %v3047
    %v3115 = vpop.f32.mrb[0].mxu0
    %v3116 = vadd.f32 0.0, %v3115
    %v3117 = vpop.f32.mrb[0].mxu0
    %3118 = vdwg.mxu0
    %3119 = vrot.lane.b32.xlu0 %v1799, 16
    %v3120 = vpop.permute.xlu0 %3119
    %3121 = vrot.lane.b32.xlu0 %v1895, 16
    %v3122 = vpop.permute.xlu0 %3121
    %3123 = vrot.lane.b32.xlu0 %v1901, 16
    %v3124 = vpop.permute.xlu0 %3123
    %v3125 = vsel %vm256, %v3120, 0
    %v3127 = vsel %vm256, %v3122, 0
    %v3129 = vsel %vm256, %v3124, 0
    %3131 = vmatprep.subr.mxu0 0.0
    %3132 = vmatpush1.xpose.msra.mxu0 %v3127
    %3133 = vmatprep.subr.mxu0 0.0
    %3134 = vmatpush1.xpose.msra.mxu0 %v3129
    %3135 = vmatprep.subr.mxu0 0.0
    %3136 = vmatpush1.xpose.msra.mxu0 0.0
    %3137 = vmatprep.subr.mxu0 0.0
    %3138 = vmatpush1.xpose.msra.mxu0 0.0
    %3139 = vmatprep.subr.mxu0 0.0
    %3140 = vmatpush1.xpose.msra.mxu0 0.0
    %3141 = vmatprep.subr.mxu0 0.0
    %3142 = vmatpush1.xpose.msra.mxu0 0.0
    %3143 = vmatprep.subr.mxu0 0.0
    %3144 = vmatpush1.xpose.msra.mxu0 0.0
    %3145 = vmatprep.subr.mxu0 0.0
    %3146 = vmatpush1.xpose.msra.mxu0 0.0
    %3147 = vmatprep.subr.mxu0 0.0
    %3148 = vmatpush1.xpose.msra.mxu0 0.0
    %3149 = vmatprep.subr.mxu0 0.0
    %3150 = vmatpush1.xpose.msra.mxu0 0.0
    %3151 = vmatprep.subr.mxu0 0.0
    %3152 = vmatpush1.xpose.msra.mxu0 0.0
    %3153 = vmatprep.subr.mxu0 0.0
    %3154 = vmatpush1.xpose.msra.mxu0 0.0
    %3155 = vmatprep.subr.mxu0 0.0
    %3156 = vmatpush1.xpose.msra.mxu0 0.0
    %3157 = vmatprep.subr.mxu0 0.0
    %3158 = vmatpush1.xpose.msra.mxu0 0.0
    %3159 = vmatprep.subr.mxu0 0.0
    %3160 = vmatpush1.xpose.msra.mxu0 0.0
    %3161 = vmatprep.subr.mxu0 0.0
    %3162 = vmatpush1.xpose.msra.mxu0 0.0
    %3163 = vmatprep.subr.mxu0 0.0
    %3164 = vmatpush1.xpose.msra.mxu0 0.0
    %3165 = vmatprep.subr.mxu0 0.0
    %3166 = vmatpush1.xpose.msra.mxu0 0.0
    %3167 = vmatprep.subr.mxu0 0.0
    %3168 = vmatpush1.xpose.msra.mxu0 0.0
    %3169 = vmatprep.subr.mxu0 0.0
    %3170 = vmatpush1.xpose.msra.mxu0 0.0
    %3171 = vmatprep.subr.mxu0 0.0
    %3172 = vmatpush1.xpose.msra.mxu0 0.0
    %3173 = vmatprep.subr.mxu0 0.0
    %3174 = vmatpush1.xpose.msra.mxu0 0.0
    %3175 = vmatprep.subr.mxu0 0.0
    %3176 = vmatpush1.xpose.msra.mxu0 0.0
    %3177 = vmatprep.subr.mxu0 0.0
    %3178 = vmatpush1.xpose.msra.mxu0 0.0
    %3179 = vmatprep.subr.mxu0 0.0
    %3180 = vmatpush1.xpose.msra.mxu0 0.0
    %3181 = vmatprep.subr.mxu0 0.0
    %3182 = vmatpush1.xpose.msra.mxu0 0.0
    %3183 = vmatprep.subr.mxu0 0.0
    %3184 = vmatpush1.xpose.msra.mxu0 0.0
    %3185 = vmatprep.subr.mxu0 0.0
    %3186 = vmatpush1.xpose.msra.mxu0 0.0
    %3187 = vmatprep.subr.mxu0 0.0
    %3188 = vmatpush1.xpose.msra.mxu0 0.0
    %3189 = vmatprep.subr.mxu0 0.0
    %3190 = vmatpush1.xpose.msra.mxu0 0.0
    %3191 = vmatprep.subr.mxu0 0.0
    %3192 = vmatpush1.xpose.msra.mxu0 0.0
    %3193 = vmatprep.subr.mxu0 0.0
    %3194 = vmatpush1.xpose.msra.mxu0 0.0
    %3195 = vmatprep.mubr.f32.mxu0 0.0
    %3196 = vmatmul.mubr.f32.gmra.mrb[0].mxu0 %v3125
    %v3197 = vpop.f32.mrb[0].mxu0
    %v3198 = vadd.f32 0.0, %v3197
    %v3199 = vpop.f32.mrb[0].mxu0
    %3200 = vdwg.mxu0
    %v3201 = vsel %vm256, %v3198, -inf
    %3202 = vmax.xlane.f32.xlu0 %v3201
    %v3203 = vpop.xlane.xlu0 %3202
    %v3204 = vsub.f32 %v3198, %v3203
    %v3205 = vmul.f32 %v3204, 1.442695
    %v3206 = vpow.pop %v3205
    %v3207 = vsel %vm256, %v3206, 0.0
    %3208 = vadd.xlane.f32.xlu0 %v3207
    %v3209 = vpop.xlane.xlu0 %3208
    %v3210 = vrcp.pop %v3209
    %v3211 = vmul.f32 %v3206, %v3210
    %3212 = vrot.lane.b32.xlu0 %v1897, 16
    %v3213 = vpop.permute.xlu0 %3212
    %3214 = vrot.lane.b32.xlu0 %v1903, 16
    %v3215 = vpop.permute.xlu0 %3214
    %v3219 = vsel %vm256, %v3211, 0
    %3221 = vmatprep.subr.mxu0 0.0
    %3222 = vmatpush1.msra.mxu0 %v3213
    %3223 = vmatprep.subr.mxu0 0.0
    %3224 = vmatpush1.msra.mxu0 %v3215
    %3225 = vmatprep.subr.mxu0 0.0
    %3226 = vmatpush1.msra.mxu0 0.0
    %3227 = vmatprep.subr.mxu0 0.0
    %3228 = vmatpush1.msra.mxu0 0.0
    %3229 = vmatprep.subr.mxu0 0.0
    %3230 = vmatpush1.msra.mxu0 0.0
    %3231 = vmatprep.subr.mxu0 0.0
    %3232 = vmatpush1.msra.mxu0 0.0
    %3233 = vmatprep.subr.mxu0 0.0
    %3234 = vmatpush1.msra.mxu0 0.0
    %3235 = vmatprep.subr.mxu0 0.0
    %3236 = vmatpush1.msra.mxu0 0.0
    %3237 = vmatprep.subr.mxu0 0.0
    %3238 = vmatpush1.msra.mxu0 0.0
    %3239 = vmatprep.subr.mxu0 0.0
    %3240 = vmatpush1.msra.mxu0 0.0
    %3241 = vmatprep.subr.mxu0 0.0
    %3242 = vmatpush1.msra.mxu0 0.0
    %3243 = vmatprep.subr.mxu0 0.0
    %3244 = vmatpush1.msra.mxu0 0.0
    %3245 = vmatprep.subr.mxu0 0.0
    %3246 = vmatpush1.msra.mxu0 0.0
    %3247 = vmatprep.subr.mxu0 0.0
    %3248 = vmatpush1.msra.mxu0 0.0
    %3249 = vmatprep.subr.mxu0 0.0
    %3250 = vmatpush1.msra.mxu0 0.0
    %3251 = vmatprep.subr.mxu0 0.0
    %3252 = vmatpush1.msra.mxu0 0.0
    %3253 = vmatprep.subr.mxu0 0.0
    %3254 = vmatpush1.msra.mxu0 0.0
    %3255 = vmatprep.subr.mxu0 0.0
    %3256 = vmatpush1.msra.mxu0 0.0
    %3257 = vmatprep.subr.mxu0 0.0
    %3258 = vmatpush1.msra.mxu0 0.0
    %3259 = vmatprep.subr.mxu0 0.0
    %3260 = vmatpush1.msra.mxu0 0.0
    %3261 = vmatprep.subr.mxu0 0.0
    %3262 = vmatpush1.msra.mxu0 0.0
    %3263 = vmatprep.subr.mxu0 0.0
    %3264 = vmatpush1.msra.mxu0 0.0
    %3265 = vmatprep.subr.mxu0 0.0
    %3266 = vmatpush1.msra.mxu0 0.0
    %3267 = vmatprep.subr.mxu0 0.0
    %3268 = vmatpush1.msra.mxu0 0.0
    %3269 = vmatprep.subr.mxu0 0.0
    %3270 = vmatpush1.msra.mxu0 0.0
    %3271 = vmatprep.subr.mxu0 0.0
    %3272 = vmatpush1.msra.mxu0 0.0
    %3273 = vmatprep.subr.mxu0 0.0
    %3274 = vmatpush1.msra.mxu0 0.0
    %3275 = vmatprep.subr.mxu0 0.0
    %3276 = vmatpush1.msra.mxu0 0.0
    %3277 = vmatprep.subr.mxu0 0.0
    %3278 = vmatpush1.msra.mxu0 0.0
    %3279 = vmatprep.subr.mxu0 0.0
    %3280 = vmatpush1.msra.mxu0 0.0
    %3281 = vmatprep.subr.mxu0 0.0
    %3282 = vmatpush1.msra.mxu0 0.0
    %3283 = vmatprep.subr.mxu0 0.0
    %3284 = vmatpush1.msra.mxu0 0.0
    %3285 = vmatprep.mubr.f32.mxu0 0.0
    %3286 = vmatmul.mubr.f32.gmra.mrb[0].mxu0 %v3219
    %v3287 = vpop.f32.mrb[0].mxu0
    %v3288 = vadd.f32 0.0, %v3287
    %v3289 = vpop.f32.mrb[0].mxu0
    %3290 = vdwg.mxu0
    %3292 = vrot.lane.b32.xlu0 %v2256, 16
    %v3293 = vpop.permute.xlu0 %3292
    %3296 = vrot.lane.b32.xlu0 %v2428, 32
    %v3297 = vpop.permute.xlu0 %3296
    %3300 = vrot.lane.b32.xlu0 %v2600, 48
    %v3301 = vpop.permute.xlu0 %3300
    %3304 = vrot.lane.b32.xlu0 %v2772, 64
    %v3305 = vpop.permute.xlu0 %3304
    %3308 = vrot.lane.b32.xlu0 %v2944, 80
    %v3309 = vpop.permute.xlu0 %3308
    %3312 = vrot.lane.b32.xlu0 %v3116, 96
    %v3313 = vpop.permute.xlu0 %3312
    %3316 = vrot.lane.b32.xlu0 %v3288, 112
    %v3317 = vpop.permute.xlu0 %3316
    %v3319 = vsel %vm256, %v2082, %v3293
    %v3320 = vsel %vm94, %v3319, %v3297
    %v3321 = vsel %vm1604, %v3320, %v3301
    %v3322 = vsel %vm1606, %v3321, %v3305
    %v3323 = vsel %vm1608, %v3322, %v3309
    %v3324 = vsel %vm1610, %v3323, %v3313
    %v3325 = vsel %vm1612, %v3324, %v3317
    %v3327 = vlaneseq
    %v3328 = vshrl.u32 %v3327, 7
    %v3329 = vsub.s32 0, %v3328
    %v3330 = vrot.slane %v1921, %v3329
    %3332 = vmatprep.subr.mxu0 0.0
    %3333 = vmatpush1.msra.mxu0 %v1905
    %3334 = vmatprep.subr.mxu0 0.0
    %3335 = vmatpush1.msra.mxu0 %v1906
    %3336 = vmatprep.subr.mxu0 0.0
    %3337 = vmatpush1.msra.mxu0 %v1907
    %3338 = vmatprep.subr.mxu0 0.0
    %3339 = vmatpush1.msra.mxu0 %v1908
    %3340 = vmatprep.subr.mxu0 0.0
    %3341 = vmatpush1.msra.mxu0 %v1909
    %3342 = vmatprep.subr.mxu0 0.0
    %3343 = vmatpush1.msra.mxu0 %v1910
    %3344 = vmatprep.subr.mxu0 0.0
    %3345 = vmatpush1.msra.mxu0 %v1911
    %3346 = vmatprep.subr.mxu0 0.0
    %3347 = vmatpush1.msra.mxu0 %v1912
    %3348 = vmatprep.subr.mxu0 0.0
    %3349 = vmatpush1.msra.mxu0 %v1913
    %3350 = vmatprep.subr.mxu0 0.0
    %3351 = vmatpush1.msra.mxu0 %v1914
    %3352 = vmatprep.subr.mxu0 0.0
    %3353 = vmatpush1.msra.mxu0 %v1915
    %3354 = vmatprep.subr.mxu0 0.0
    %3355 = vmatpush1.msra.mxu0 %v1916
    %3356 = vmatprep.subr.mxu0 0.0
    %3357 = vmatpush1.msra.mxu0 %v1917
    %3358 = vmatprep.subr.mxu0 0.0
    %3359 = vmatpush1.msra.mxu0 %v1918
    %3360 = vmatprep.subr.mxu0 0.0
    %3361 = vmatpush1.msra.mxu0 %v1919
    %3362 = vmatprep.subr.mxu0 0.0
    %3363 = vmatpush1.msra.mxu0 %v1920
    %3364 = vmatprep.subr.mxu0 0.0
    %3365 = vmatpush1.msra.mxu0 0.0
    %3366 = vmatprep.subr.mxu0 0.0
    %3367 = vmatpush1.msra.mxu0 0.0
    %3368 = vmatprep.subr.mxu0 0.0
    %3369 = vmatpush1.msra.mxu0 0.0
    %3370 = vmatprep.subr.mxu0 0.0
    %3371 = vmatpush1.msra.mxu0 0.0
    %3372 = vmatprep.subr.mxu0 0.0
    %3373 = vmatpush1.msra.mxu0 0.0
    %3374 = vmatprep.subr.mxu0 0.0
    %3375 = vmatpush1.msra.mxu0 0.0
    %3376 = vmatprep.subr.mxu0 0.0
    %3377 = vmatpush1.msra.mxu0 0.0
    %3378 = vmatprep.subr.mxu0 0.0
    %3379 = vmatpush1.msra.mxu0 0.0
    %3380 = vmatprep.subr.mxu0 0.0
    %3381 = vmatpush1.msra.mxu0 0.0
    %3382 = vmatprep.subr.mxu0 0.0
    %3383 = vmatpush1.msra.mxu0 0.0
    %3384 = vmatprep.subr.mxu0 0.0
    %3385 = vmatpush1.msra.mxu0 0.0
    %3386 = vmatprep.subr.mxu0 0.0
    %3387 = vmatpush1.msra.mxu0 0.0
    %3388 = vmatprep.subr.mxu0 0.0
    %3389 = vmatpush1.msra.mxu0 0.0
    %3390 = vmatprep.subr.mxu0 0.0
    %3391 = vmatpush1.msra.mxu0 0.0
    %3392 = vmatprep.subr.mxu0 0.0
    %3393 = vmatpush1.msra.mxu0 0.0
    %3394 = vmatprep.subr.mxu0 0.0
    %3395 = vmatpush1.msra.mxu0 0.0
    %3396 = vmatprep.mubr.f32.mxu0 0.0
    %3397 = vmatmul.mubr.f32.gmra.mrb[0].mxu0 %v3325
    %v3398 = vpop.f32.mrb[0].mxu0
    %v3399 = vadd.f32 %v3330, %v3398
    %v3400 = vpop.f32.mrb[0].mxu0
    %3401 = vdwg.mxu0
    %v3402 = vadd.f32 %v3399, %v1717
    %v3403 = vsel %vm94, %v3402, 0.0
    %3404 = vadd.xlane.f32.xlu0 %v3403
    %v3405 = vpop.xlane.xlu0 %3404
    %v3406 = vmul.f32 %v3405, 0.03125
    %v3407 = vsub.f32 %v3402, %v3406
    %v3408 = vmul.f32 %v3407, %v3407
    %v3409 = vsel %vm94, %v3408, 0.0
    %3410 = vadd.xlane.f32.xlu0 %v3409
    %v3411 = vpop.xlane.xlu0 %3410
    %v3412 = vmul.f32 %v3411, 0.03125
    %v3413 = vadd.f32 %v3412, 1e-05
    %v3414 = vrsqrt.pop %v3413
    %v3415 = vmul.f32 %v3407, %v3414
    %v3416 = vmul.f32 %v3415, %v1708
    %v3417 = vadd.f32 %v3416, %v1715
    %v3418 = vld [vmem:[%s14] sm:$0xff]
    %v3419 = vld [vmem:[%s14 + $0x8] sm:$0xff]
    %v3420 = vld [vmem:[%s14 + $0x10] sm:$0xff]
    %v3421 = vld [vmem:[%s14 + $0x18] sm:$0xff]
    %v3422 = vld [vmem:[%s15] sm:$0x1]
    %v3424 = vlaneseq
    %v3425 = vshrl.u32 %v3424, 7
    %v3426 = vsub.s32 0, %v3425
    %v3427 = vrot.slane %v3422, %v3426
    %v3430 = vsel %vm94, %v3417, 0
    %3432 = vmatprep.subr.mxu0 0.0
    %3433 = vmatpush1.msra.mxu0 %v3418
    %3434 = vmatprep.subr.mxu0 0.0
    %3435 = vmatpush1.msra.mxu0 %v3419
    %3436 = vmatprep.subr.mxu0 0.0
    %3437 = vmatpush1.msra.mxu0 %v3420
    %3438 = vmatprep.subr.mxu0 0.0
    %3439 = vmatpush1.msra.mxu0 %v3421
    %3440 = vmatprep.subr.mxu0 0.0
    %3441 = vmatpush1.msra.mxu0 0.0
    %3442 = vmatprep.subr.mxu0 0.0
    %3443 = vmatpush1.msra.mxu0 0.0
    %3444 = vmatprep.subr.mxu0 0.0
    %3445 = vmatpush1.msra.mxu0 0.0
    %3446 = vmatprep.subr.mxu0 0.0
    %3447 = vmatpush1.msra.mxu0 0.0
    %3448 = vmatprep.subr.mxu0 0.0
    %3449 = vmatpush1.msra.mxu0 0.0
    %3450 = vmatprep.subr.mxu0 0.0
    %3451 = vmatpush1.msra.mxu0 0.0
    %3452 = vmatprep.subr.mxu0 0.0
    %3453 = vmatpush1.msra.mxu0 0.0
    %3454 = vmatprep.subr.mxu0 0.0
    %3455 = vmatpush1.msra.mxu0 0.0
    %3456 = vmatprep.subr.mxu0 0.0
    %3457 = vmatpush1.msra.mxu0 0.0
    %3458 = vmatprep.subr.mxu0 0.0
    %3459 = vmatpush1.msra.mxu0 0.0
    %3460 = vmatprep.subr.mxu0 0.0
    %3461 = vmatpush1.msra.mxu0 0.0
    %3462 = vmatprep.subr.mxu0 0.0
    %3463 = vmatpush1.msra.mxu0 0.0
    %3464 = vmatprep.subr.mxu0 0.0
    %3465 = vmatpush1.msra.mxu0 0.0
    %3466 = vmatprep.subr.mxu0 0.0
    %3467 = vmatpush1.msra.mxu0 0.0
    %3468 = vmatprep.subr.mxu0 0.0
    %3469 = vmatpush1.msra.mxu0 0.0
    %3470 = vmatprep.subr.mxu0 0.0
    %3471 = vmatpush1.msra.mxu0 0.0
    %3472 = vmatprep.subr.mxu0 0.0
    %3473 = vmatpush1.msra.mxu0 0.0
    %3474 = vmatprep.subr.mxu0 0.0
    %3475 = vmatpush1.msra.mxu0 0.0
    %3476 = vmatprep.subr.mxu0 0.0
    %3477 = vmatpush1.msra.mxu0 0.0
    %3478 = vmatprep.subr.mxu0 0.0
    %3479 = vmatpush1.msra.mxu0 0.0
    %3480 = vmatprep.subr.mxu0 0.0
    %3481 = vmatpush1.msra.mxu0 0.0
    %3482 = vmatprep.subr.mxu0 0.0
    %3483 = vmatpush1.msra.mxu0 0.0
    %3484 = vmatprep.subr.mxu0 0.0
    %3485 = vmatpush1.msra.mxu0 0.0
    %3486 = vmatprep.subr.mxu0 0.0
    %3487 = vmatpush1.msra.mxu0 0.0
    %3488 = vmatprep.subr.mxu0 0.0
    %3489 = vmatpush1.msra.mxu0 0.0
    %3490 = vmatprep.subr.mxu0 0.0
    %3491 = vmatpush1.msra.mxu0 0.0
    %3492 = vmatprep.subr.mxu0 0.0
    %3493 = vmatpush1.msra.mxu0 0.0
    %3494 = vmatprep.subr.mxu0 0.0
    %3495 = vmatpush1.msra.mxu0 0.0
    %3496 = vmatprep.mubr.f32.mxu0 0.0
    %3497 = vmatmul.mubr.f32.gmra.mrb[0].mxu0 %v3430
    %v3498 = vpop.f32.mrb[0].mxu0
    %v3499 = vadd.f32 %v3427, %v3498
    %v3500 = vpop.f32.mrb[0].mxu0
    %3501 = vdwg.mxu0
    %v3502 = vadd.f32 %v3499, %v3417
    %v3503 = vsel %vm94, %v3502, 0.0
    %3504 = vadd.xlane.f32.xlu0 %v3503
    %v3505 = vpop.xlane.xlu0 %3504
    %v3506 = vmul.f32 %v3505, 0.03125
    %v3507 = vsub.f32 %v3502, %v3506
    %v3508 = vmul.f32 %v3507, %v3507
    %v3509 = vsel %vm94, %v3508, 0.0
    %3510 = vadd.xlane.f32.xlu0 %v3509
    %v3511 = vpop.xlane.xlu0 %3510
    %v3512 = vmul.f32 %v3511, 0.03125
    %v3513 = vadd.f32 %v3512, 1e-05
    %v3514 = vrsqrt.pop %v3513
    %v3515 = vmul.f32 %v3507, %v3514
    %v3516 = vmul.f32 %v3515, %v1708
    %v3517 = vadd.f32 %v3516, %v1715
    %3518 = vst.msk [vmem:[#allocation2] sm:$0xff] %vm94, %v3517
    // Predicated region
    $region66: #{tpu_custom_call.1} parent=1 // pred_check
      _
    $region67: #{tpu_custom_call.1} parent=1 // pred_check_branch
      %3520 = sbr.rel (0) target = $region69
    $region68: #{tpu_custom_call.1} parent=1 // pred_region
      %s3522 = ssub.s32 128, 128
      %3523 = vsyncadd [#allocation3], %s3522
      %s3525 = sshll.u32 [#allocation2], 4
      %s3526 = int_to_ptr.vmem [resolvable:$true] %s3525
      %3528 = dma.vmem_to_hbm [thread:$0]  %s3526, 128, %s16, [#allocation3]
    $region69: #{tpu_custom_call.1} parent=1 // pred_fallthru
      _
    // Predicated region
    $region70: #{tpu_custom_call.1} parent=1 // pred_check
      _
    $region71: #{tpu_custom_call.1} parent=1 // pred_check_branch
      %3530 = sbr.rel (0) target = $region73
    $region72: #{tpu_custom_call.1} parent=1 // pred_region
      %3531 = dma.done [#allocation3], 128
    $region73: #{tpu_custom_call.1} parent=1 // pred_fallthru
      _
    %3532 = vsyncpa [#allocation3], 1

</llo_original>
